<compile_context>
chip_gen: v7x
topology: tpu7x:2x2x1
jax: 0.10.0
libtpu: 0.0.40
codegen_flags: <defaults>
</compile_context>

<pallas_src>
import jax
import jax.numpy as jnp
from jax import lax
from jax.experimental import pallas as pl
from jax.experimental.pallas import tpu as pltpu

# ---- module hyperparameters (from the PyTorch source) ----
BLOCK_SIZE = 8                    # g_block_size (sequence length T)
N_EMBED = 32                      # g_n_embed (C)
N_HEADS = 4                       # g_n_heads
HEAD_SIZE = N_EMBED // N_HEADS    # 8
N_LAYERS = 6                      # g_n_layers
FF_DIM = 4 * N_EMBED              # 128
VOCAB = 65                        # g_vocab_size (char-level vocab)
VOCAB_PAD = 128                   # vocab padded to a full 128-lane register
LN_EPS = 1e-5                     # nn.LayerNorm default eps
NEG_INF = -1e30                   # large finite negative (safe: every row keeps its diagonal)

BATCH = 2
SEQ = BLOCK_SIZE
NTOK = BATCH * SEQ                # 16 rows after folding batch into rows
HN = N_HEADS * NTOK               # 64 lanes in the head-stacked score matrix


# ------------------------------ Pallas kernel -------------------------------
def decoder_kernel(x_ref, bias_ref, sel_ref,
                   wqkv_ref, bqkv_ref, wproj_ref, bproj_ref,
                   wff1_ref, bff1_ref, wff2_ref, bff2_ref,
                   wlm_ref, blm_ref, o_ref):
    """Whole DecoderTransformer forward in one grid step, activations (B*T, C)."""
    C = N_EMBED
    f32 = jnp.float32
    bf16 = jnp.bfloat16

    x = x_ref[...]                       # (NTOK, C) f32 residual stream
    bias = bias_ref[...]                 # (NTOK, HN) causal + batch-block mask
    sel = sel_ref[...]                   # (HN, C) head-selection mask
    sel_bf = sel.astype(bf16)            # hoisted once: RHS for denominator matmul

    def ln_center(h):
        # LayerNorm with the affine (gamma/beta) folded into downstream weights.
        mu = jnp.mean(h, axis=-1, keepdims=True)
        hc = h - mu
        var = jnp.mean(hc * hc, axis=-1, keepdims=True)
        return hc * lax.rsqrt(var + LN_EPS)

    for l in range(N_LAYERS):
        # ---------------- multi-head causal self-attention ----------------
        h = ln_center(x)
        # Fused QKV projection; ln1 affine and the n_embed**-0.5 score scale
        # are folded into wqkv / bqkv at pack time.
        qkv = jnp.dot(h.astype(bf16), wqkv_ref[l],
                      preferred_element_type=f32) + bqkv_ref[l]      # (NTOK, 3C)
        q = qkv[:, 0:C]
        k = qkv[:, C:2 * C]
        v = qkv[:, 2 * C:3 * C]

        # Head-masked, sublane-stacked K: block h keeps only head h's lanes, so
        # a single (NTOK,C)x(HN,C)^T matmul yields all heads' scores lane-dense.
        k_exp = (jnp.concatenate([k, k, k, k], axis=0) * sel).astype(bf16)
        s = lax.dot_general(q.astype(bf16), k_exp, (((1,), (1,)), ((), ())),
                            preferred_element_type=f32) + bias        # (NTOK, HN)

        # Softmax: one global row max is mathematically identical per head.
        m = jnp.max(s, axis=-1, keepdims=True)
        e = jnp.exp(s - m)                                             # (NTOK, HN)
        e_bf = e.astype(bf16)
        # (attention-weight dropout skipped: eval mode)

        v_exp = (jnp.concatenate([v, v, v, v], axis=0) * sel).astype(bf16)
        ctx_un = jnp.dot(e_bf, v_exp, preferred_element_type=f32)      # (NTOK, C)
        den = jnp.dot(e_bf, sel_bf, preferred_element_type=f32)        # per-head sums,
        ctx = ctx_un * pl.reciprocal(den)                              # already on head lanes

        att = jnp.dot(ctx.astype(bf16), wproj_ref[l],
                      preferred_element_type=f32) + bproj_ref[l]
        # (projection dropout skipped: eval mode)
        x = x + att

        # ---------------------- feed-forward ------------------------------
        h2 = ln_center(x)
        f = jnp.dot(h2.astype(bf16), wff1_ref[l],
                    preferred_element_type=f32) + bff1_ref[l]
        f = jnp.maximum(f, 0.0)
        y = jnp.dot(f.astype(bf16), wff2_ref[l],
                    preferred_element_type=f32) + bff2_ref[l]
        # (feed-forward dropout skipped: eval mode)
        x = x + y

    # ------ final LayerNorm (affine folded into lm head) + LM head ------
    xf = ln_center(x)
    o_ref[...] = (jnp.dot(xf.astype(bf16), wlm_ref[...],
                          preferred_element_type=f32) + blm_ref[...]).astype(o_ref.dtype)


def _full_spec(a):
    nd = a.ndim
    return pl.BlockSpec(a.shape, lambda i, _nd=nd: (0,) * _nd)


@jax.jit
def decoder_transformer_forward(idx, params):
    """idx: (B, T) int32 token ids -> logits (B, T, VOCAB). Eval mode (no loss)."""
    B, T = idx.shape
    # Token + position embedding hoisted to the wrapper: one tiny gather + add
    # HLO keeps two more MXU ops off the serial in-kernel chain.
    x0 = params["tok"][idx] + params["pos"][jnp.arange(T)][None, :, :]
    x0 = x0.reshape(B * T, N_EMBED).astype(jnp.float32)

    inputs = (x0, params["attn_bias"], params["head_sel"],
              params["wqkv"], params["bqkv"], params["wproj"], params["bproj"],
              params["wff1"], params["bff1"], params["wff2"], params["bff2"],
              params["wlm_pad"], params["blm_pad"])

    # Advisory cost estimate for XLA's scheduler around the custom call.
    flops = 2 * (B * T) * N_LAYERS * (N_EMBED * 3 * N_EMBED      # qkv
                                      + N_EMBED * HN             # scores
                                      + HN * N_EMBED * 2         # ctx + denom
                                      + N_EMBED * N_EMBED        # proj
                                      + 2 * N_EMBED * FF_DIM     # ffwd
                                      ) + 2 * (B * T) * N_EMBED * VOCAB_PAD
    transcend = (B * T) * (HN + N_EMBED) * N_LAYERS
    bytes_accessed = (sum(int(a.size) * a.dtype.itemsize for a in inputs)
                      + (B * T) * VOCAB_PAD * 4)

    logits_pad = pl.pallas_call(
        decoder_kernel,
        out_shape=jax.ShapeDtypeStruct((B * T, VOCAB_PAD), jnp.float32),
        grid=(1,),                                   # single step: whole model fused
        in_specs=[_full_spec(a) for a in inputs],
        out_specs=pl.BlockSpec((B * T, VOCAB_PAD), lambda i: (0, 0)),
        compiler_params=pltpu.CompilerParams(dimension_semantics=("arbitrary",)),
        cost_estimate=pl.CostEstimate(flops=int(flops),
                                      transcendentals=int(transcend),
                                      bytes_accessed=int(bytes_accessed)),
    )(*inputs)

    return logits_pad[:, :VOCAB].reshape(B, T, VOCAB)


# ----------------------------- parameter packing -----------------------------
def pack_params(tok_table, pos_table, wq, wk, wv, wproj, bproj,
                ln1g, ln1b, ln2g, ln2b, wff1, bff1, wff2, bff2,
                lnfg, lnfb, wlm, blm):
    """Fold LN affines + attention scale into weights, build constant masks,
    store MXU operands in bf16."""
    L, C, Fd, Vp = N_LAYERS, N_EMBED, FF_DIM, VOCAB_PAD
    f32, bf16 = jnp.float32, jnp.bfloat16

    # Attention: fused QKV with the n_embed**-0.5 score scale pre-folded into Wq
    # and ln1 affine folded in:  (xhat*g + b) @ W == xhat @ (g[:,None]*W) + b @ W
    wqkv = jnp.concatenate([wq * (C ** -0.5), wk, wv], axis=2)          # (L, C, 3C)
    bqkv = jnp.einsum("lc,lcd->ld", ln1b, wqkv)                          # (L, 3C)
    wqkv = ln1g[:, :, None] * wqkv

    # Feed-forward: ln2 affine folded into the first linear.
    bff1_f = jnp.einsum("lc,lcf->lf", ln2b, wff1) + bff1                 # (L, Fd)
    wff1_f = ln2g[:, :, None] * wff1

    # LM head: ln_f affine folded in, vocab zero-padded to 128 lanes.
    wlm_f = lnfg[:, None] * wlm                                          # (C, V)
    blm_f = lnfb @ wlm + blm                                             # (V,)
    wlm_pad = jnp.zeros((C, Vp), f32).at[:, :VOCAB].set(wlm_f)
    blm_pad = jnp.zeros((1, Vp), f32).at[0, :VOCAB].set(blm_f)

    # Constant masks: causal + same-batch-block bias (tiled per head along lanes)
    # and the head-selection mask used for K/V stacking and the denominators.
    qi = jnp.arange(NTOK)[:, None]
    kj = jnp.arange(NTOK)[None, :]
    ok = (qi // SEQ == kj // SEQ) & (kj % SEQ <= qi % SEQ)
    attn_bias = jnp.tile(jnp.where(ok, 0.0, NEG_INF).astype(f32), (1, N_HEADS))

    head_of_row = jnp.arange(HN)[:, None] // NTOK
    head_of_col = jnp.arange(N_EMBED)[None, :] // HEAD_SIZE
    head_sel = (head_of_row == head_of_col).astype(f32)                 # (HN, C)

    return dict(
        tok=tok_table, pos=pos_table,                                    # gathered in wrapper
        attn_bias=attn_bias, head_sel=head_sel,
        wqkv=wqkv.astype(bf16), bqkv=bqkv.reshape(L, 1, 3 * C),
        wproj=wproj.astype(bf16), bproj=bproj.reshape(L, 1, C),
        wff1=wff1_f.astype(bf16), bff1=bff1_f.reshape(L, 1, Fd),
        wff2=wff2.astype(bf16), bff2=bff2.reshape(L, 1, C),
        wlm_pad=wlm_pad.astype(bf16), blm_pad=blm_pad,
    )


# ------------------------------ references -----------------------------------
def _ln_center_ref(x):
    mu = jnp.mean(x, axis=-1, keepdims=True)
    xc = x - mu
    var = jnp.mean(xc * xc, axis=-1, keepdims=True)
    return xc * lax.rsqrt(var + LN_EPS)


def packed_reference(x0, P):
    """Plain-JAX mirror of the packed / bf16 kernel math (tight structural check)."""
    f32, bf16 = jnp.float32, jnp.bfloat16
    C = N_EMBED
    bias, sel = P["attn_bias"], P["head_sel"]
    x = x0
    for l in range(N_LAYERS):
        h = _ln_center_ref(x)
        qkv = jnp.dot(h.astype(bf16), P["wqkv"][l], preferred_element_type=f32) + P["bqkv"][l]
        q, k, v = qkv[:, 0:C], qkv[:, C:2 * C], qkv[:, 2 * C:3 * C]
        k_exp = (jnp.concatenate([k] * N_HEADS, axis=0) * sel).astype(bf16)
        s = lax.dot_general(q.astype(bf16), k_exp, (((1,), (1,)), ((), ())),
                            preferred_element_type=f32) + bias
        e = jnp.exp(s - jnp.max(s, axis=-1, keepdims=True))
        v_exp = (jnp.concatenate([v] * N_HEADS, axis=0) * sel).astype(bf16)
        ctx = (jnp.dot(e.astype(bf16), v_exp, preferred_element_type=f32)
               / jnp.dot(e.astype(bf16), sel.astype(bf16), preferred_element_type=f32))
        x = x + jnp.dot(ctx.astype(bf16), P["wproj"][l], preferred_element_type=f32) + P["bproj"][l]
        h2 = _ln_center_ref(x)
        f = jnp.maximum(jnp.dot(h2.astype(bf16), P["wff1"][l],
                                preferred_element_type=f32) + P["bff1"][l], 0.0)
        x = x + jnp.dot(f.astype(bf16), P["wff2"][l], preferred_element_type=f32) + P["bff2"][l]
    xf = _ln_center_ref(x)
    return jnp.dot(xf.astype(bf16), P["wlm_pad"], preferred_element_type=f32) + P["blm_pad"]


def _layer_norm_ref(x, g, b):
    return _ln_center_ref(x) * g + b


def reference_forward(idx, tok_table, pos_table, wq, wk, wv, wproj, bproj,
                      ln1g, ln1b, ln2g, ln2b, wff1, bff1, wff2, bff2,
                      lnfg, lnfb, wlm, blm):
    """Mirrors the PyTorch DecoderTransformer.forward exactly (eval, f32)."""
    B, T = idx.shape
    hp = lax.Precision.HIGHEST
    x = tok_table[idx] + pos_table[jnp.arange(T)][None]                # (B, T, C)
    tril = jnp.tril(jnp.ones((T, T), dtype=bool))
    for l in range(N_LAYERS):
        h = _layer_norm_ref(x, ln1g[l], ln1b[l])
        q = jnp.einsum("btc,cd->btd", h, wq[l], precision=hp)
        k = jnp.einsum("btc,cd->btd", h, wk[l], precision=hp)
        v = jnp.einsum("btc,cd->btd", h, wv[l], precision=hp)
        outs = []
        for hh in range(N_HEADS):
            sl = slice(hh * HEAD_SIZE, (hh + 1) * HEAD_SIZE)
            wei = jnp.einsum("bqd,bkd->bqk", q[..., sl], k[..., sl],
                             precision=hp) * (N_EMBED ** -0.5)
            wei = jnp.where(tril[None], wei, -jnp.inf)
            wei = jax.nn.softmax(wei, axis=-1)
            outs.append(jnp.einsum("bqk,bkd->bqd", wei, v[..., sl], precision=hp))
        att = jnp.concatenate(outs, axis=-1)
        att = jnp.einsum("btc,cd->btd", att, wproj[l], precision=hp) + bproj[l]
        x = x + att
        h2 = _layer_norm_ref(x, ln2g[l], ln2b[l])
        f = jnp.maximum(jnp.einsum("btc,cd->btd", h2, wff1[l], precision=hp) + bff1[l], 0.0)
        f = jnp.einsum("btc,cd->btd", f, wff2[l], precision=hp) + bff2[l]
        x = x + f
    x = _layer_norm_ref(x, lnfg, lnfb)
    return jnp.einsum("btc,cv->btv", x, wlm, precision=hp) + blm


if __name__ == "__main__":
    keys = iter(jax.random.split(jax.random.PRNGKey(0), 32))
    nk = lambda: next(keys)

    s_in = 1.0 / (N_EMBED ** 0.5)
    s_ff = 1.0 / (FF_DIM ** 0.5)
    L, C, Fd = N_LAYERS, N_EMBED, FF_DIM

    idx = jax.random.randint(nk(), (BATCH, SEQ), 0, VOCAB, dtype=jnp.int32)

    tok_table = jax.random.normal(nk(), (VOCAB, C), jnp.float32)
    pos_table = jax.random.normal(nk(), (BLOCK_SIZE, C), jnp.float32)

    wq = jax.random.uniform(nk(), (L, C, C), jnp.float32, -s_in, s_in)
    wk = jax.random.uniform(nk(), (L, C, C), jnp.float32, -s_in, s_in)
    wv = jax.random.uniform(nk(), (L, C, C), jnp.float32, -s_in, s_in)
    wproj = jax.random.uniform(nk(), (L, C, C), jnp.float32, -s_in, s_in)
    bproj = jax.random.uniform(nk(), (L, C), jnp.float32, -s_in, s_in)
    wff1 = jax.random.uniform(nk(), (L, C, Fd), jnp.float32, -s_in, s_in)
    bff1 = jax.random.uniform(nk(), (L, Fd), jnp.float32, -s_in, s_in)
    wff2 = jax.random.uniform(nk(), (L, Fd, C), jnp.float32, -s_ff, s_ff)
    bff2 = jax.random.uniform(nk(), (L, C), jnp.float32, -s_ff, s_ff)
    ln1g = 1.0 + 0.1 * jax.random.normal(nk(), (L, C), jnp.float32)
    ln1b = 0.1 * jax.random.normal(nk(), (L, C), jnp.float32)
    ln2g = 1.0 + 0.1 * jax.random.normal(nk(), (L, C), jnp.float32)
    ln2b = 0.1 * jax.random.normal(nk(), (L, C), jnp.float32)
    lnfg = 1.0 + 0.1 * jax.random.normal(nk(), (C,), jnp.float32)
    lnfb = 0.1 * jax.random.normal(nk(), (C,), jnp.float32)
    wlm = jax.random.uniform(nk(), (C, VOCAB), jnp.float32, -s_in, s_in)
    blm = jax.random.uniform(nk(), (VOCAB,), jnp.float32, -s_in, s_in)

    params = pack_params(tok_table, pos_table, wq, wk, wv, wproj, bproj,
                         ln1g, ln1b, ln2g, ln2b, wff1, bff1, wff2, bff2,
                         lnfg, lnfb, wlm, blm)

    out = decoder_transformer_forward(idx, params)
    out = jax.block_until_ready(out)
    assert out.shape == (BATCH, SEQ, VOCAB)

    # (1) Tight check against a plain-JAX mirror of the packed / bf16 kernel
    #     math: validates the Pallas lowering (masks, layouts, folding) exactly.
    x0 = (tok_table[idx] + pos_table[jnp.arange(SEQ)][None]).reshape(NTOK, C)
    ref_packed = packed_reference(x0, params)[:, :VOCAB].reshape(BATCH, SEQ, VOCAB)
    assert jnp.allclose(out, ref_packed, atol=2e-2, rtol=2e-2), (
        "kernel vs packed-math reference: max abs diff "
        f"{float(jnp.max(jnp.abs(out - ref_packed)))}")

    # (2) Sanity check against the exact f32 PyTorch-mirroring reference; the
    #     residual difference is the intended bf16 rounding of the MXU operands.
    ref = reference_forward(idx, tok_table, pos_table, wq, wk, wv, wproj, bproj,
                            ln1g, ln1b, ln2g, ln2b, wff1, bff1, wff2, bff2,
                            lnfg, lnfb, wlm, blm)
    rel = float(jnp.sqrt(jnp.sum((out - ref) ** 2) / jnp.sum(ref ** 2)))
    assert rel < 0.1, f"relative error vs exact f32 reference too large: {rel}"

    print("KERNEL_OK")
</pallas_src>

<mosaic_0001>
module attributes {stable_mosaic.version = 11 : i64} {
  func.func @decoder_kernel(%arg0: i32, %arg1: memref<16x32xf32, #tpu.memory_space<vmem>>, %arg2: memref<16x64xf32, #tpu.memory_space<vmem>>, %arg3: memref<64x32xf32, #tpu.memory_space<vmem>>, %arg4: memref<6x32x96xbf16, #tpu.memory_space<vmem>>, %arg5: memref<6x1x96xf32, #tpu.memory_space<vmem>>, %arg6: memref<6x32x32xbf16, #tpu.memory_space<vmem>>, %arg7: memref<6x1x32xf32, #tpu.memory_space<vmem>>, %arg8: memref<6x32x128xbf16, #tpu.memory_space<vmem>>, %arg9: memref<6x1x128xf32, #tpu.memory_space<vmem>>, %arg10: memref<6x128x32xbf16, #tpu.memory_space<vmem>>, %arg11: memref<6x1x32xf32, #tpu.memory_space<vmem>>, %arg12: memref<32x128xbf16, #tpu.memory_space<vmem>>, %arg13: memref<1x128xf32, #tpu.memory_space<vmem>>, %arg14: memref<16x128xf32, #tpu.memory_space<vmem>>) attributes {dimension_semantics = [#tpu.dimension_semantics<arbitrary>], iteration_bounds = array<i64: 1>, scalar_prefetch = 0 : i64, scratch_operands = 0 : i64, tpu.core_type = #tpu.core_type<tc>, window_params = [{pipeline_mode = #tpu.pipeline_mode<synchronous>, transform_indices = @transform_0, window_bounds = array<i64: 16, 32>}, {pipeline_mode = #tpu.pipeline_mode<synchronous>, transform_indices = @transform_1, window_bounds = array<i64: 16, 64>}, {pipeline_mode = #tpu.pipeline_mode<synchronous>, transform_indices = @transform_2, window_bounds = array<i64: 64, 32>}, {pipeline_mode = #tpu.pipeline_mode<synchronous>, transform_indices = @transform_3, window_bounds = array<i64: 6, 32, 96>}, {pipeline_mode = #tpu.pipeline_mode<synchronous>, transform_indices = @transform_4, window_bounds = array<i64: 6, 1, 96>}, {pipeline_mode = #tpu.pipeline_mode<synchronous>, transform_indices = @transform_5, window_bounds = array<i64: 6, 32, 32>}, {pipeline_mode = #tpu.pipeline_mode<synchronous>, transform_indices = @transform_6, window_bounds = array<i64: 6, 1, 32>}, {pipeline_mode = #tpu.pipeline_mode<synchronous>, transform_indices = @transform_7, window_bounds = array<i64: 6, 32, 128>}, {pipeline_mode = #tpu.pipeline_mode<synchronous>, transform_indices = @transform_8, window_bounds = array<i64: 6, 1, 128>}, {pipeline_mode = #tpu.pipeline_mode<synchronous>, transform_indices = @transform_9, window_bounds = array<i64: 6, 128, 32>}, {pipeline_mode = #tpu.pipeline_mode<synchronous>, transform_indices = @transform_10, window_bounds = array<i64: 6, 1, 32>}, {pipeline_mode = #tpu.pipeline_mode<synchronous>, transform_indices = @transform_11, window_bounds = array<i64: 32, 128>}, {pipeline_mode = #tpu.pipeline_mode<synchronous>, transform_indices = @transform_12, window_bounds = array<i64: 1, 128>}, {pipeline_mode = #tpu.pipeline_mode<synchronous>, transform_indices = @transform_13, window_bounds = array<i64: 16, 128>}]} {
    %c0 = arith.constant 0 : index
    %c0_0 = arith.constant 0 : index
    %0 = vector.load %arg1[%c0, %c0_0] : memref<16x32xf32, #tpu.memory_space<vmem>>, vector<16x32xf32>
    %c0_1 = arith.constant 0 : index
    %c0_2 = arith.constant 0 : index
    %1 = vector.load %arg2[%c0_1, %c0_2] : memref<16x64xf32, #tpu.memory_space<vmem>>, vector<16x64xf32>
    %c0_3 = arith.constant 0 : index
    %c0_4 = arith.constant 0 : index
    %2 = vector.load %arg3[%c0_3, %c0_4] : memref<64x32xf32, #tpu.memory_space<vmem>>, vector<64x32xf32>
    %3 = arith.truncf %2 : vector<64x32xf32> to vector<64x32xbf16>
    %cst = arith.constant dense<0.000000e+00> : vector<16xf32>
    %4 = vector.multi_reduction <add>, %0, %cst [1] : vector<16x32xf32> to vector<16xf32>
    %5 = vector.shape_cast %4 : vector<16xf32> to vector<16x1xf32>
    %cst_5 = arith.constant 3.200000e+01 : f32
    %6 = vector.broadcast %cst_5 : f32 to vector<16x1xf32>
    %7 = arith.divf %5, %6 : vector<16x1xf32>
    %8 = vector.broadcast %7 : vector<16x1xf32> to vector<16x32xf32>
    %9 = arith.subf %0, %8 : vector<16x32xf32>
    %10 = arith.mulf %9, %9 : vector<16x32xf32>
    %cst_6 = arith.constant dense<0.000000e+00> : vector<16xf32>
    %11 = vector.multi_reduction <add>, %10, %cst_6 [1] : vector<16x32xf32> to vector<16xf32>
    %12 = vector.shape_cast %11 : vector<16xf32> to vector<16x1xf32>
    %cst_7 = arith.constant 3.200000e+01 : f32
    %13 = vector.broadcast %cst_7 : f32 to vector<16x1xf32>
    %14 = arith.divf %12, %13 : vector<16x1xf32>
    %cst_8 = arith.constant 9.99999974E-6 : f32
    %15 = vector.broadcast %cst_8 : f32 to vector<16x1xf32>
    %16 = arith.addf %14, %15 : vector<16x1xf32>
    %17 = math.rsqrt %16 : vector<16x1xf32>
    %18 = vector.broadcast %17 : vector<16x1xf32> to vector<16x32xf32>
    %19 = arith.mulf %9, %18 : vector<16x32xf32>
    %20 = arith.truncf %19 : vector<16x32xf32> to vector<16x32xbf16>
    %c0_9 = arith.constant 0 : index
    %c0_10 = arith.constant 0 : index
    %c0_11 = arith.constant 0 : index
    %21 = vector.load %arg4[%c0_9, %c0_10, %c0_11] : memref<6x32x96xbf16, #tpu.memory_space<vmem>>, vector<1x32x96xbf16>
    %22 = vector.shape_cast %21 : vector<1x32x96xbf16> to vector<32x96xbf16>
    %cst_12 = arith.constant dense<0.000000e+00> : vector<16x96xf32>
    %23 = tpu.matmul %20, %22, %cst_12 {dimension_numbers = #tpu.dot_dimension_numbers<[1], [0], [0], [1], [0, 0, 1, 1], [], []>} : vector<16x32xbf16>, vector<32x96xbf16>, vector<16x96xf32> -> vector<16x96xf32>
    %c0_13 = arith.constant 0 : index
    %c0_14 = arith.constant 0 : index
    %c0_15 = arith.constant 0 : index
    %24 = vector.load %arg5[%c0_13, %c0_14, %c0_15] : memref<6x1x96xf32, #tpu.memory_space<vmem>>, vector<1x1x96xf32>
    %25 = vector.shape_cast %24 : vector<1x1x96xf32> to vector<1x96xf32>
    %26 = vector.broadcast %25 : vector<1x96xf32> to vector<16x96xf32>
    %27 = arith.addf %23, %26 : vector<16x96xf32>
    %28 = vector.extract_strided_slice %27 {offsets = [0, 0], sizes = [16, 32], strides = [1, 1]} : vector<16x96xf32> to vector<16x32xf32>
    %29 = vector.extract_strided_slice %27 {offsets = [0, 32], sizes = [16, 32], strides = [1, 1]} : vector<16x96xf32> to vector<16x32xf32>
    %30 = vector.extract_strided_slice %27 {offsets = [0, 64], sizes = [16, 32], strides = [1, 1]} : vector<16x96xf32> to vector<16x32xf32>
    %31 = tpu.concatenate %29, %29, %29, %29 in 0 : vector<16x32xf32>, vector<16x32xf32>, vector<16x32xf32>, vector<16x32xf32> -> vector<64x32xf32>
    %32 = arith.mulf %31, %2 : vector<64x32xf32>
    %33 = arith.truncf %32 : vector<64x32xf32> to vector<64x32xbf16>
    %34 = arith.truncf %28 : vector<16x32xf32> to vector<16x32xbf16>
    %cst_16 = arith.constant dense<0.000000e+00> : vector<16x64xf32>
    %35 = tpu.matmul %34, %33, %cst_16 {dimension_numbers = #tpu.dot_dimension_numbers<[1], [1], [0], [0], [0, 0, 1, 0], [], []>} : vector<16x32xbf16>, vector<64x32xbf16>, vector<16x64xf32> -> vector<16x64xf32>
    %36 = arith.addf %35, %1 : vector<16x64xf32>
    %cst_17 = arith.constant dense<0xFF800000> : vector<16xf32>
    %37 = vector.multi_reduction <maximumf>, %36, %cst_17 [1] : vector<16x64xf32> to vector<16xf32>
    %38 = vector.shape_cast %37 : vector<16xf32> to vector<16x1xf32>
    %39 = vector.broadcast %38 : vector<16x1xf32> to vector<16x64xf32>
    %40 = arith.subf %36, %39 : vector<16x64xf32>
    %41 = math.exp %40 : vector<16x64xf32>
    %42 = arith.truncf %41 : vector<16x64xf32> to vector<16x64xbf16>
    %43 = tpu.concatenate %30, %30, %30, %30 in 0 : vector<16x32xf32>, vector<16x32xf32>, vector<16x32xf32>, vector<16x32xf32> -> vector<64x32xf32>
    %44 = arith.mulf %43, %2 : vector<64x32xf32>
    %45 = arith.truncf %44 : vector<64x32xf32> to vector<64x32xbf16>
    %cst_18 = arith.constant dense<0.000000e+00> : vector<16x32xf32>
    %46 = tpu.matmul %42, %45, %cst_18 {dimension_numbers = #tpu.dot_dimension_numbers<[1], [0], [0], [1], [0, 0, 1, 1], [], []>} : vector<16x64xbf16>, vector<64x32xbf16>, vector<16x32xf32> -> vector<16x32xf32>
    %cst_19 = arith.constant dense<0.000000e+00> : vector<16x32xf32>
    %47 = tpu.matmul %42, %3, %cst_19 {dimension_numbers = #tpu.dot_dimension_numbers<[1], [0], [0], [1], [0, 0, 1, 1], [], []>} : vector<16x64xbf16>, vector<64x32xbf16>, vector<16x32xf32> -> vector<16x32xf32>
    %48 = tpu.reciprocal %47 : vector<16x32xf32> -> vector<16x32xf32>
    %49 = arith.mulf %46, %48 : vector<16x32xf32>
    %50 = arith.truncf %49 : vector<16x32xf32> to vector<16x32xbf16>
    %c0_20 = arith.constant 0 : index
    %c0_21 = arith.constant 0 : index
    %c0_22 = arith.constant 0 : index
    %51 = vector.load %arg6[%c0_20, %c0_21, %c0_22] : memref<6x32x32xbf16, #tpu.memory_space<vmem>>, vector<1x32x32xbf16>
    %52 = vector.shape_cast %51 : vector<1x32x32xbf16> to vector<32x32xbf16>
    %cst_23 = arith.constant dense<0.000000e+00> : vector<16x32xf32>
    %53 = tpu.matmul %50, %52, %cst_23 {dimension_numbers = #tpu.dot_dimension_numbers<[1], [0], [0], [1], [0, 0, 1, 1], [], []>} : vector<16x32xbf16>, vector<32x32xbf16>, vector<16x32xf32> -> vector<16x32xf32>
    %c0_24 = arith.constant 0 : index
    %c0_25 = arith.constant 0 : index
    %c0_26 = arith.constant 0 : index
    %54 = vector.load %arg7[%c0_24, %c0_25, %c0_26] : memref<6x1x32xf32, #tpu.memory_space<vmem>>, vector<1x1x32xf32>
    %55 = vector.shape_cast %54 : vector<1x1x32xf32> to vector<1x32xf32>
    %56 = vector.broadcast %55 : vector<1x32xf32> to vector<16x32xf32>
    %57 = arith.addf %53, %56 : vector<16x32xf32>
    %58 = arith.addf %0, %57 : vector<16x32xf32>
    %cst_27 = arith.constant dense<0.000000e+00> : vector<16xf32>
    %59 = vector.multi_reduction <add>, %58, %cst_27 [1] : vector<16x32xf32> to vector<16xf32>
    %60 = vector.shape_cast %59 : vector<16xf32> to vector<16x1xf32>
    %cst_28 = arith.constant 3.200000e+01 : f32
    %61 = vector.broadcast %cst_28 : f32 to vector<16x1xf32>
    %62 = arith.divf %60, %61 : vector<16x1xf32>
    %63 = vector.broadcast %62 : vector<16x1xf32> to vector<16x32xf32>
    %64 = arith.subf %58, %63 : vector<16x32xf32>
    %65 = arith.mulf %64, %64 : vector<16x32xf32>
    %cst_29 = arith.constant dense<0.000000e+00> : vector<16xf32>
    %66 = vector.multi_reduction <add>, %65, %cst_29 [1] : vector<16x32xf32> to vector<16xf32>
    %67 = vector.shape_cast %66 : vector<16xf32> to vector<16x1xf32>
    %cst_30 = arith.constant 3.200000e+01 : f32
    %68 = vector.broadcast %cst_30 : f32 to vector<16x1xf32>
    %69 = arith.divf %67, %68 : vector<16x1xf32>
    %cst_31 = arith.constant 9.99999974E-6 : f32
    %70 = vector.broadcast %cst_31 : f32 to vector<16x1xf32>
    %71 = arith.addf %69, %70 : vector<16x1xf32>
    %72 = math.rsqrt %71 : vector<16x1xf32>
    %73 = vector.broadcast %72 : vector<16x1xf32> to vector<16x32xf32>
    %74 = arith.mulf %64, %73 : vector<16x32xf32>
    %75 = arith.truncf %74 : vector<16x32xf32> to vector<16x32xbf16>
    %c0_32 = arith.constant 0 : index
    %c0_33 = arith.constant 0 : index
    %c0_34 = arith.constant 0 : index
    %76 = vector.load %arg8[%c0_32, %c0_33, %c0_34] : memref<6x32x128xbf16, #tpu.memory_space<vmem>>, vector<1x32x128xbf16>
    %77 = vector.shape_cast %76 : vector<1x32x128xbf16> to vector<32x128xbf16>
    %cst_35 = arith.constant dense<0.000000e+00> : vector<16x128xf32>
    %78 = tpu.matmul %75, %77, %cst_35 {dimension_numbers = #tpu.dot_dimension_numbers<[1], [0], [0], [1], [0, 0, 1, 1], [], []>} : vector<16x32xbf16>, vector<32x128xbf16>, vector<16x128xf32> -> vector<16x128xf32>
    %c0_36 = arith.constant 0 : index
    %c0_37 = arith.constant 0 : index
    %c0_38 = arith.constant 0 : index
    %79 = vector.load %arg9[%c0_36, %c0_37, %c0_38] : memref<6x1x128xf32, #tpu.memory_space<vmem>>, vector<1x1x128xf32>
    %80 = vector.shape_cast %79 : vector<1x1x128xf32> to vector<1x128xf32>
    %81 = vector.broadcast %80 : vector<1x128xf32> to vector<16x128xf32>
    %82 = arith.addf %78, %81 : vector<16x128xf32>
    %cst_39 = arith.constant 0.000000e+00 : f32
    %83 = vector.broadcast %cst_39 : f32 to vector<16x128xf32>
    %84 = arith.maximumf %82, %83 : vector<16x128xf32>
    %85 = arith.truncf %84 : vector<16x128xf32> to vector<16x128xbf16>
    %c0_40 = arith.constant 0 : index
    %c0_41 = arith.constant 0 : index
    %c0_42 = arith.constant 0 : index
    %86 = vector.load %arg10[%c0_40, %c0_41, %c0_42] : memref<6x128x32xbf16, #tpu.memory_space<vmem>>, vector<1x128x32xbf16>
    %87 = vector.shape_cast %86 : vector<1x128x32xbf16> to vector<128x32xbf16>
    %cst_43 = arith.constant dense<0.000000e+00> : vector<16x32xf32>
    %88 = tpu.matmul %85, %87, %cst_43 {dimension_numbers = #tpu.dot_dimension_numbers<[1], [0], [0], [1], [0, 0, 1, 1], [], []>} : vector<16x128xbf16>, vector<128x32xbf16>, vector<16x32xf32> -> vector<16x32xf32>
    %c0_44 = arith.constant 0 : index
    %c0_45 = arith.constant 0 : index
    %c0_46 = arith.constant 0 : index
    %89 = vector.load %arg11[%c0_44, %c0_45, %c0_46] : memref<6x1x32xf32, #tpu.memory_space<vmem>>, vector<1x1x32xf32>
    %90 = vector.shape_cast %89 : vector<1x1x32xf32> to vector<1x32xf32>
    %91 = vector.broadcast %90 : vector<1x32xf32> to vector<16x32xf32>
    %92 = arith.addf %88, %91 : vector<16x32xf32>
    %93 = arith.addf %58, %92 : vector<16x32xf32>
    %cst_47 = arith.constant dense<0.000000e+00> : vector<16xf32>
    %94 = vector.multi_reduction <add>, %93, %cst_47 [1] : vector<16x32xf32> to vector<16xf32>
    %95 = vector.shape_cast %94 : vector<16xf32> to vector<16x1xf32>
    %cst_48 = arith.constant 3.200000e+01 : f32
    %96 = vector.broadcast %cst_48 : f32 to vector<16x1xf32>
    %97 = arith.divf %95, %96 : vector<16x1xf32>
    %98 = vector.broadcast %97 : vector<16x1xf32> to vector<16x32xf32>
    %99 = arith.subf %93, %98 : vector<16x32xf32>
    %100 = arith.mulf %99, %99 : vector<16x32xf32>
    %cst_49 = arith.constant dense<0.000000e+00> : vector<16xf32>
    %101 = vector.multi_reduction <add>, %100, %cst_49 [1] : vector<16x32xf32> to vector<16xf32>
    %102 = vector.shape_cast %101 : vector<16xf32> to vector<16x1xf32>
    %cst_50 = arith.constant 3.200000e+01 : f32
    %103 = vector.broadcast %cst_50 : f32 to vector<16x1xf32>
    %104 = arith.divf %102, %103 : vector<16x1xf32>
    %cst_51 = arith.constant 9.99999974E-6 : f32
    %105 = vector.broadcast %cst_51 : f32 to vector<16x1xf32>
    %106 = arith.addf %104, %105 : vector<16x1xf32>
    %107 = math.rsqrt %106 : vector<16x1xf32>
    %108 = vector.broadcast %107 : vector<16x1xf32> to vector<16x32xf32>
    %109 = arith.mulf %99, %108 : vector<16x32xf32>
    %110 = arith.truncf %109 : vector<16x32xf32> to vector<16x32xbf16>
    %c1 = arith.constant 1 : index
    %c0_52 = arith.constant 0 : index
    %c0_53 = arith.constant 0 : index
    %111 = vector.load %arg4[%c1, %c0_52, %c0_53] : memref<6x32x96xbf16, #tpu.memory_space<vmem>>, vector<1x32x96xbf16>
    %112 = vector.shape_cast %111 : vector<1x32x96xbf16> to vector<32x96xbf16>
    %cst_54 = arith.constant dense<0.000000e+00> : vector<16x96xf32>
    %113 = tpu.matmul %110, %112, %cst_54 {dimension_numbers = #tpu.dot_dimension_numbers<[1], [0], [0], [1], [0, 0, 1, 1], [], []>} : vector<16x32xbf16>, vector<32x96xbf16>, vector<16x96xf32> -> vector<16x96xf32>
    %c1_55 = arith.constant 1 : index
    %c0_56 = arith.constant 0 : index
    %c0_57 = arith.constant 0 : index
    %114 = vector.load %arg5[%c1_55, %c0_56, %c0_57] : memref<6x1x96xf32, #tpu.memory_space<vmem>>, vector<1x1x96xf32>
    %115 = vector.shape_cast %114 : vector<1x1x96xf32> to vector<1x96xf32>
    %116 = vector.broadcast %115 : vector<1x96xf32> to vector<16x96xf32>
    %117 = arith.addf %113, %116 : vector<16x96xf32>
    %118 = vector.extract_strided_slice %117 {offsets = [0, 0], sizes = [16, 32], strides = [1, 1]} : vector<16x96xf32> to vector<16x32xf32>
    %119 = vector.extract_strided_slice %117 {offsets = [0, 32], sizes = [16, 32], strides = [1, 1]} : vector<16x96xf32> to vector<16x32xf32>
    %120 = vector.extract_strided_slice %117 {offsets = [0, 64], sizes = [16, 32], strides = [1, 1]} : vector<16x96xf32> to vector<16x32xf32>
    %121 = tpu.concatenate %119, %119, %119, %119 in 0 : vector<16x32xf32>, vector<16x32xf32>, vector<16x32xf32>, vector<16x32xf32> -> vector<64x32xf32>
    %122 = arith.mulf %121, %2 : vector<64x32xf32>
    %123 = arith.truncf %122 : vector<64x32xf32> to vector<64x32xbf16>
    %124 = arith.truncf %118 : vector<16x32xf32> to vector<16x32xbf16>
    %cst_58 = arith.constant dense<0.000000e+00> : vector<16x64xf32>
    %125 = tpu.matmul %124, %123, %cst_58 {dimension_numbers = #tpu.dot_dimension_numbers<[1], [1], [0], [0], [0, 0, 1, 0], [], []>} : vector<16x32xbf16>, vector<64x32xbf16>, vector<16x64xf32> -> vector<16x64xf32>
    %126 = arith.addf %125, %1 : vector<16x64xf32>
    %cst_59 = arith.constant dense<0xFF800000> : vector<16xf32>
    %127 = vector.multi_reduction <maximumf>, %126, %cst_59 [1] : vector<16x64xf32> to vector<16xf32>
    %128 = vector.shape_cast %127 : vector<16xf32> to vector<16x1xf32>
    %129 = vector.broadcast %128 : vector<16x1xf32> to vector<16x64xf32>
    %130 = arith.subf %126, %129 : vector<16x64xf32>
    %131 = math.exp %130 : vector<16x64xf32>
    %132 = arith.truncf %131 : vector<16x64xf32> to vector<16x64xbf16>
    %133 = tpu.concatenate %120, %120, %120, %120 in 0 : vector<16x32xf32>, vector<16x32xf32>, vector<16x32xf32>, vector<16x32xf32> -> vector<64x32xf32>
    %134 = arith.mulf %133, %2 : vector<64x32xf32>
    %135 = arith.truncf %134 : vector<64x32xf32> to vector<64x32xbf16>
    %cst_60 = arith.constant dense<0.000000e+00> : vector<16x32xf32>
    %136 = tpu.matmul %132, %135, %cst_60 {dimension_numbers = #tpu.dot_dimension_numbers<[1], [0], [0], [1], [0, 0, 1, 1], [], []>} : vector<16x64xbf16>, vector<64x32xbf16>, vector<16x32xf32> -> vector<16x32xf32>
    %cst_61 = arith.constant dense<0.000000e+00> : vector<16x32xf32>
    %137 = tpu.matmul %132, %3, %cst_61 {dimension_numbers = #tpu.dot_dimension_numbers<[1], [0], [0], [1], [0, 0, 1, 1], [], []>} : vector<16x64xbf16>, vector<64x32xbf16>, vector<16x32xf32> -> vector<16x32xf32>
    %138 = tpu.reciprocal %137 : vector<16x32xf32> -> vector<16x32xf32>
    %139 = arith.mulf %136, %138 : vector<16x32xf32>
    %140 = arith.truncf %139 : vector<16x32xf32> to vector<16x32xbf16>
    %c1_62 = arith.constant 1 : index
    %c0_63 = arith.constant 0 : index
    %c0_64 = arith.constant 0 : index
    %141 = vector.load %arg6[%c1_62, %c0_63, %c0_64] : memref<6x32x32xbf16, #tpu.memory_space<vmem>>, vector<1x32x32xbf16>
    %142 = vector.shape_cast %141 : vector<1x32x32xbf16> to vector<32x32xbf16>
    %cst_65 = arith.constant dense<0.000000e+00> : vector<16x32xf32>
    %143 = tpu.matmul %140, %142, %cst_65 {dimension_numbers = #tpu.dot_dimension_numbers<[1], [0], [0], [1], [0, 0, 1, 1], [], []>} : vector<16x32xbf16>, vector<32x32xbf16>, vector<16x32xf32> -> vector<16x32xf32>
    %c1_66 = arith.constant 1 : index
    %c0_67 = arith.constant 0 : index
    %c0_68 = arith.constant 0 : index
    %144 = vector.load %arg7[%c1_66, %c0_67, %c0_68] : memref<6x1x32xf32, #tpu.memory_space<vmem>>, vector<1x1x32xf32>
    %145 = vector.shape_cast %144 : vector<1x1x32xf32> to vector<1x32xf32>
    %146 = vector.broadcast %145 : vector<1x32xf32> to vector<16x32xf32>
    %147 = arith.addf %143, %146 : vector<16x32xf32>
    %148 = arith.addf %93, %147 : vector<16x32xf32>
    %cst_69 = arith.constant dense<0.000000e+00> : vector<16xf32>
    %149 = vector.multi_reduction <add>, %148, %cst_69 [1] : vector<16x32xf32> to vector<16xf32>
    %150 = vector.shape_cast %149 : vector<16xf32> to vector<16x1xf32>
    %cst_70 = arith.constant 3.200000e+01 : f32
    %151 = vector.broadcast %cst_70 : f32 to vector<16x1xf32>
    %152 = arith.divf %150, %151 : vector<16x1xf32>
    %153 = vector.broadcast %152 : vector<16x1xf32> to vector<16x32xf32>
    %154 = arith.subf %148, %153 : vector<16x32xf32>
    %155 = arith.mulf %154, %154 : vector<16x32xf32>
    %cst_71 = arith.constant dense<0.000000e+00> : vector<16xf32>
    %156 = vector.multi_reduction <add>, %155, %cst_71 [1] : vector<16x32xf32> to vector<16xf32>
    %157 = vector.shape_cast %156 : vector<16xf32> to vector<16x1xf32>
    %cst_72 = arith.constant 3.200000e+01 : f32
    %158 = vector.broadcast %cst_72 : f32 to vector<16x1xf32>
    %159 = arith.divf %157, %158 : vector<16x1xf32>
    %cst_73 = arith.constant 9.99999974E-6 : f32
    %160 = vector.broadcast %cst_73 : f32 to vector<16x1xf32>
    %161 = arith.addf %159, %160 : vector<16x1xf32>
    %162 = math.rsqrt %161 : vector<16x1xf32>
    %163 = vector.broadcast %162 : vector<16x1xf32> to vector<16x32xf32>
    %164 = arith.mulf %154, %163 : vector<16x32xf32>
    %165 = arith.truncf %164 : vector<16x32xf32> to vector<16x32xbf16>
    %c1_74 = arith.constant 1 : index
    %c0_75 = arith.constant 0 : index
    %c0_76 = arith.constant 0 : index
    %166 = vector.load %arg8[%c1_74, %c0_75, %c0_76] : memref<6x32x128xbf16, #tpu.memory_space<vmem>>, vector<1x32x128xbf16>
    %167 = vector.shape_cast %166 : vector<1x32x128xbf16> to vector<32x128xbf16>
    %cst_77 = arith.constant dense<0.000000e+00> : vector<16x128xf32>
    %168 = tpu.matmul %165, %167, %cst_77 {dimension_numbers = #tpu.dot_dimension_numbers<[1], [0], [0], [1], [0, 0, 1, 1], [], []>} : vector<16x32xbf16>, vector<32x128xbf16>, vector<16x128xf32> -> vector<16x128xf32>
    %c1_78 = arith.constant 1 : index
    %c0_79 = arith.constant 0 : index
    %c0_80 = arith.constant 0 : index
    %169 = vector.load %arg9[%c1_78, %c0_79, %c0_80] : memref<6x1x128xf32, #tpu.memory_space<vmem>>, vector<1x1x128xf32>
    %170 = vector.shape_cast %169 : vector<1x1x128xf32> to vector<1x128xf32>
    %171 = vector.broadcast %170 : vector<1x128xf32> to vector<16x128xf32>
    %172 = arith.addf %168, %171 : vector<16x128xf32>
    %cst_81 = arith.constant 0.000000e+00 : f32
    %173 = vector.broadcast %cst_81 : f32 to vector<16x128xf32>
    %174 = arith.maximumf %172, %173 : vector<16x128xf32>
    %175 = arith.truncf %174 : vector<16x128xf32> to vector<16x128xbf16>
    %c1_82 = arith.constant 1 : index
    %c0_83 = arith.constant 0 : index
    %c0_84 = arith.constant 0 : index
    %176 = vector.load %arg10[%c1_82, %c0_83, %c0_84] : memref<6x128x32xbf16, #tpu.memory_space<vmem>>, vector<1x128x32xbf16>
    %177 = vector.shape_cast %176 : vector<1x128x32xbf16> to vector<128x32xbf16>
    %cst_85 = arith.constant dense<0.000000e+00> : vector<16x32xf32>
    %178 = tpu.matmul %175, %177, %cst_85 {dimension_numbers = #tpu.dot_dimension_numbers<[1], [0], [0], [1], [0, 0, 1, 1], [], []>} : vector<16x128xbf16>, vector<128x32xbf16>, vector<16x32xf32> -> vector<16x32xf32>
    %c1_86 = arith.constant 1 : index
    %c0_87 = arith.constant 0 : index
    %c0_88 = arith.constant 0 : index
    %179 = vector.load %arg11[%c1_86, %c0_87, %c0_88] : memref<6x1x32xf32, #tpu.memory_space<vmem>>, vector<1x1x32xf32>
    %180 = vector.shape_cast %179 : vector<1x1x32xf32> to vector<1x32xf32>
    %181 = vector.broadcast %180 : vector<1x32xf32> to vector<16x32xf32>
    %182 = arith.addf %178, %181 : vector<16x32xf32>
    %183 = arith.addf %148, %182 : vector<16x32xf32>
    %cst_89 = arith.constant dense<0.000000e+00> : vector<16xf32>
    %184 = vector.multi_reduction <add>, %183, %cst_89 [1] : vector<16x32xf32> to vector<16xf32>
    %185 = vector.shape_cast %184 : vector<16xf32> to vector<16x1xf32>
    %cst_90 = arith.constant 3.200000e+01 : f32
    %186 = vector.broadcast %cst_90 : f32 to vector<16x1xf32>
    %187 = arith.divf %185, %186 : vector<16x1xf32>
    %188 = vector.broadcast %187 : vector<16x1xf32> to vector<16x32xf32>
    %189 = arith.subf %183, %188 : vector<16x32xf32>
    %190 = arith.mulf %189, %189 : vector<16x32xf32>
    %cst_91 = arith.constant dense<0.000000e+00> : vector<16xf32>
    %191 = vector.multi_reduction <add>, %190, %cst_91 [1] : vector<16x32xf32> to vector<16xf32>
    %192 = vector.shape_cast %191 : vector<16xf32> to vector<16x1xf32>
    %cst_92 = arith.constant 3.200000e+01 : f32
    %193 = vector.broadcast %cst_92 : f32 to vector<16x1xf32>
    %194 = arith.divf %192, %193 : vector<16x1xf32>
    %cst_93 = arith.constant 9.99999974E-6 : f32
    %195 = vector.broadcast %cst_93 : f32 to vector<16x1xf32>
    %196 = arith.addf %194, %195 : vector<16x1xf32>
    %197 = math.rsqrt %196 : vector<16x1xf32>
    %198 = vector.broadcast %197 : vector<16x1xf32> to vector<16x32xf32>
    %199 = arith.mulf %189, %198 : vector<16x32xf32>
    %200 = arith.truncf %199 : vector<16x32xf32> to vector<16x32xbf16>
    %c2 = arith.constant 2 : index
    %c0_94 = arith.constant 0 : index
    %c0_95 = arith.constant 0 : index
    %201 = vector.load %arg4[%c2, %c0_94, %c0_95] : memref<6x32x96xbf16, #tpu.memory_space<vmem>>, vector<1x32x96xbf16>
    %202 = vector.shape_cast %201 : vector<1x32x96xbf16> to vector<32x96xbf16>
    %cst_96 = arith.constant dense<0.000000e+00> : vector<16x96xf32>
    %203 = tpu.matmul %200, %202, %cst_96 {dimension_numbers = #tpu.dot_dimension_numbers<[1], [0], [0], [1], [0, 0, 1, 1], [], []>} : vector<16x32xbf16>, vector<32x96xbf16>, vector<16x96xf32> -> vector<16x96xf32>
    %c2_97 = arith.constant 2 : index
    %c0_98 = arith.constant 0 : index
    %c0_99 = arith.constant 0 : index
    %204 = vector.load %arg5[%c2_97, %c0_98, %c0_99] : memref<6x1x96xf32, #tpu.memory_space<vmem>>, vector<1x1x96xf32>
    %205 = vector.shape_cast %204 : vector<1x1x96xf32> to vector<1x96xf32>
    %206 = vector.broadcast %205 : vector<1x96xf32> to vector<16x96xf32>
    %207 = arith.addf %203, %206 : vector<16x96xf32>
    %208 = vector.extract_strided_slice %207 {offsets = [0, 0], sizes = [16, 32], strides = [1, 1]} : vector<16x96xf32> to vector<16x32xf32>
    %209 = vector.extract_strided_slice %207 {offsets = [0, 32], sizes = [16, 32], strides = [1, 1]} : vector<16x96xf32> to vector<16x32xf32>
    %210 = vector.extract_strided_slice %207 {offsets = [0, 64], sizes = [16, 32], strides = [1, 1]} : vector<16x96xf32> to vector<16x32xf32>
    %211 = tpu.concatenate %209, %209, %209, %209 in 0 : vector<16x32xf32>, vector<16x32xf32>, vector<16x32xf32>, vector<16x32xf32> -> vector<64x32xf32>
    %212 = arith.mulf %211, %2 : vector<64x32xf32>
    %213 = arith.truncf %212 : vector<64x32xf32> to vector<64x32xbf16>
    %214 = arith.truncf %208 : vector<16x32xf32> to vector<16x32xbf16>
    %cst_100 = arith.constant dense<0.000000e+00> : vector<16x64xf32>
    %215 = tpu.matmul %214, %213, %cst_100 {dimension_numbers = #tpu.dot_dimension_numbers<[1], [1], [0], [0], [0, 0, 1, 0], [], []>} : vector<16x32xbf16>, vector<64x32xbf16>, vector<16x64xf32> -> vector<16x64xf32>
    %216 = arith.addf %215, %1 : vector<16x64xf32>
    %cst_101 = arith.constant dense<0xFF800000> : vector<16xf32>
    %217 = vector.multi_reduction <maximumf>, %216, %cst_101 [1] : vector<16x64xf32> to vector<16xf32>
    %218 = vector.shape_cast %217 : vector<16xf32> to vector<16x1xf32>
    %219 = vector.broadcast %218 : vector<16x1xf32> to vector<16x64xf32>
    %220 = arith.subf %216, %219 : vector<16x64xf32>
    %221 = math.exp %220 : vector<16x64xf32>
    %222 = arith.truncf %221 : vector<16x64xf32> to vector<16x64xbf16>
    %223 = tpu.concatenate %210, %210, %210, %210 in 0 : vector<16x32xf32>, vector<16x32xf32>, vector<16x32xf32>, vector<16x32xf32> -> vector<64x32xf32>
    %224 = arith.mulf %223, %2 : vector<64x32xf32>
    %225 = arith.truncf %224 : vector<64x32xf32> to vector<64x32xbf16>
    %cst_102 = arith.constant dense<0.000000e+00> : vector<16x32xf32>
    %226 = tpu.matmul %222, %225, %cst_102 {dimension_numbers = #tpu.dot_dimension_numbers<[1], [0], [0], [1], [0, 0, 1, 1], [], []>} : vector<16x64xbf16>, vector<64x32xbf16>, vector<16x32xf32> -> vector<16x32xf32>
    %cst_103 = arith.constant dense<0.000000e+00> : vector<16x32xf32>
    %227 = tpu.matmul %222, %3, %cst_103 {dimension_numbers = #tpu.dot_dimension_numbers<[1], [0], [0], [1], [0, 0, 1, 1], [], []>} : vector<16x64xbf16>, vector<64x32xbf16>, vector<16x32xf32> -> vector<16x32xf32>
    %228 = tpu.reciprocal %227 : vector<16x32xf32> -> vector<16x32xf32>
    %229 = arith.mulf %226, %228 : vector<16x32xf32>
    %230 = arith.truncf %229 : vector<16x32xf32> to vector<16x32xbf16>
    %c2_104 = arith.constant 2 : index
    %c0_105 = arith.constant 0 : index
    %c0_106 = arith.constant 0 : index
    %231 = vector.load %arg6[%c2_104, %c0_105, %c0_106] : memref<6x32x32xbf16, #tpu.memory_space<vmem>>, vector<1x32x32xbf16>
    %232 = vector.shape_cast %231 : vector<1x32x32xbf16> to vector<32x32xbf16>
    %cst_107 = arith.constant dense<0.000000e+00> : vector<16x32xf32>
    %233 = tpu.matmul %230, %232, %cst_107 {dimension_numbers = #tpu.dot_dimension_numbers<[1], [0], [0], [1], [0, 0, 1, 1], [], []>} : vector<16x32xbf16>, vector<32x32xbf16>, vector<16x32xf32> -> vector<16x32xf32>
    %c2_108 = arith.constant 2 : index
    %c0_109 = arith.constant 0 : index
    %c0_110 = arith.constant 0 : index
    %234 = vector.load %arg7[%c2_108, %c0_109, %c0_110] : memref<6x1x32xf32, #tpu.memory_space<vmem>>, vector<1x1x32xf32>
    %235 = vector.shape_cast %234 : vector<1x1x32xf32> to vector<1x32xf32>
    %236 = vector.broadcast %235 : vector<1x32xf32> to vector<16x32xf32>
    %237 = arith.addf %233, %236 : vector<16x32xf32>
    %238 = arith.addf %183, %237 : vector<16x32xf32>
    %cst_111 = arith.constant dense<0.000000e+00> : vector<16xf32>
    %239 = vector.multi_reduction <add>, %238, %cst_111 [1] : vector<16x32xf32> to vector<16xf32>
    %240 = vector.shape_cast %239 : vector<16xf32> to vector<16x1xf32>
    %cst_112 = arith.constant 3.200000e+01 : f32
    %241 = vector.broadcast %cst_112 : f32 to vector<16x1xf32>
    %242 = arith.divf %240, %241 : vector<16x1xf32>
    %243 = vector.broadcast %242 : vector<16x1xf32> to vector<16x32xf32>
    %244 = arith.subf %238, %243 : vector<16x32xf32>
    %245 = arith.mulf %244, %244 : vector<16x32xf32>
    %cst_113 = arith.constant dense<0.000000e+00> : vector<16xf32>
    %246 = vector.multi_reduction <add>, %245, %cst_113 [1] : vector<16x32xf32> to vector<16xf32>
    %247 = vector.shape_cast %246 : vector<16xf32> to vector<16x1xf32>
    %cst_114 = arith.constant 3.200000e+01 : f32
    %248 = vector.broadcast %cst_114 : f32 to vector<16x1xf32>
    %249 = arith.divf %247, %248 : vector<16x1xf32>
    %cst_115 = arith.constant 9.99999974E-6 : f32
    %250 = vector.broadcast %cst_115 : f32 to vector<16x1xf32>
    %251 = arith.addf %249, %250 : vector<16x1xf32>
    %252 = math.rsqrt %251 : vector<16x1xf32>
    %253 = vector.broadcast %252 : vector<16x1xf32> to vector<16x32xf32>
    %254 = arith.mulf %244, %253 : vector<16x32xf32>
    %255 = arith.truncf %254 : vector<16x32xf32> to vector<16x32xbf16>
    %c2_116 = arith.constant 2 : index
    %c0_117 = arith.constant 0 : index
    %c0_118 = arith.constant 0 : index
    %256 = vector.load %arg8[%c2_116, %c0_117, %c0_118] : memref<6x32x128xbf16, #tpu.memory_space<vmem>>, vector<1x32x128xbf16>
    %257 = vector.shape_cast %256 : vector<1x32x128xbf16> to vector<32x128xbf16>
    %cst_119 = arith.constant dense<0.000000e+00> : vector<16x128xf32>
    %258 = tpu.matmul %255, %257, %cst_119 {dimension_numbers = #tpu.dot_dimension_numbers<[1], [0], [0], [1], [0, 0, 1, 1], [], []>} : vector<16x32xbf16>, vector<32x128xbf16>, vector<16x128xf32> -> vector<16x128xf32>
    %c2_120 = arith.constant 2 : index
    %c0_121 = arith.constant 0 : index
    %c0_122 = arith.constant 0 : index
    %259 = vector.load %arg9[%c2_120, %c0_121, %c0_122] : memref<6x1x128xf32, #tpu.memory_space<vmem>>, vector<1x1x128xf32>
    %260 = vector.shape_cast %259 : vector<1x1x128xf32> to vector<1x128xf32>
    %261 = vector.broadcast %260 : vector<1x128xf32> to vector<16x128xf32>
    %262 = arith.addf %258, %261 : vector<16x128xf32>
    %cst_123 = arith.constant 0.000000e+00 : f32
    %263 = vector.broadcast %cst_123 : f32 to vector<16x128xf32>
    %264 = arith.maximumf %262, %263 : vector<16x128xf32>
    %265 = arith.truncf %264 : vector<16x128xf32> to vector<16x128xbf16>
    %c2_124 = arith.constant 2 : index
    %c0_125 = arith.constant 0 : index
    %c0_126 = arith.constant 0 : index
    %266 = vector.load %arg10[%c2_124, %c0_125, %c0_126] : memref<6x128x32xbf16, #tpu.memory_space<vmem>>, vector<1x128x32xbf16>
    %267 = vector.shape_cast %266 : vector<1x128x32xbf16> to vector<128x32xbf16>
    %cst_127 = arith.constant dense<0.000000e+00> : vector<16x32xf32>
    %268 = tpu.matmul %265, %267, %cst_127 {dimension_numbers = #tpu.dot_dimension_numbers<[1], [0], [0], [1], [0, 0, 1, 1], [], []>} : vector<16x128xbf16>, vector<128x32xbf16>, vector<16x32xf32> -> vector<16x32xf32>
    %c2_128 = arith.constant 2 : index
    %c0_129 = arith.constant 0 : index
    %c0_130 = arith.constant 0 : index
    %269 = vector.load %arg11[%c2_128, %c0_129, %c0_130] : memref<6x1x32xf32, #tpu.memory_space<vmem>>, vector<1x1x32xf32>
    %270 = vector.shape_cast %269 : vector<1x1x32xf32> to vector<1x32xf32>
    %271 = vector.broadcast %270 : vector<1x32xf32> to vector<16x32xf32>
    %272 = arith.addf %268, %271 : vector<16x32xf32>
    %273 = arith.addf %238, %272 : vector<16x32xf32>
    %cst_131 = arith.constant dense<0.000000e+00> : vector<16xf32>
    %274 = vector.multi_reduction <add>, %273, %cst_131 [1] : vector<16x32xf32> to vector<16xf32>
    %275 = vector.shape_cast %274 : vector<16xf32> to vector<16x1xf32>
    %cst_132 = arith.constant 3.200000e+01 : f32
    %276 = vector.broadcast %cst_132 : f32 to vector<16x1xf32>
    %277 = arith.divf %275, %276 : vector<16x1xf32>
    %278 = vector.broadcast %277 : vector<16x1xf32> to vector<16x32xf32>
    %279 = arith.subf %273, %278 : vector<16x32xf32>
    %280 = arith.mulf %279, %279 : vector<16x32xf32>
    %cst_133 = arith.constant dense<0.000000e+00> : vector<16xf32>
    %281 = vector.multi_reduction <add>, %280, %cst_133 [1] : vector<16x32xf32> to vector<16xf32>
    %282 = vector.shape_cast %281 : vector<16xf32> to vector<16x1xf32>
    %cst_134 = arith.constant 3.200000e+01 : f32
    %283 = vector.broadcast %cst_134 : f32 to vector<16x1xf32>
    %284 = arith.divf %282, %283 : vector<16x1xf32>
    %cst_135 = arith.constant 9.99999974E-6 : f32
    %285 = vector.broadcast %cst_135 : f32 to vector<16x1xf32>
    %286 = arith.addf %284, %285 : vector<16x1xf32>
    %287 = math.rsqrt %286 : vector<16x1xf32>
    %288 = vector.broadcast %287 : vector<16x1xf32> to vector<16x32xf32>
    %289 = arith.mulf %279, %288 : vector<16x32xf32>
    %290 = arith.truncf %289 : vector<16x32xf32> to vector<16x32xbf16>
    %c3 = arith.constant 3 : index
    %c0_136 = arith.constant 0 : index
    %c0_137 = arith.constant 0 : index
    %291 = vector.load %arg4[%c3, %c0_136, %c0_137] : memref<6x32x96xbf16, #tpu.memory_space<vmem>>, vector<1x32x96xbf16>
    %292 = vector.shape_cast %291 : vector<1x32x96xbf16> to vector<32x96xbf16>
    %cst_138 = arith.constant dense<0.000000e+00> : vector<16x96xf32>
    %293 = tpu.matmul %290, %292, %cst_138 {dimension_numbers = #tpu.dot_dimension_numbers<[1], [0], [0], [1], [0, 0, 1, 1], [], []>} : vector<16x32xbf16>, vector<32x96xbf16>, vector<16x96xf32> -> vector<16x96xf32>
    %c3_139 = arith.constant 3 : index
    %c0_140 = arith.constant 0 : index
    %c0_141 = arith.constant 0 : index
    %294 = vector.load %arg5[%c3_139, %c0_140, %c0_141] : memref<6x1x96xf32, #tpu.memory_space<vmem>>, vector<1x1x96xf32>
    %295 = vector.shape_cast %294 : vector<1x1x96xf32> to vector<1x96xf32>
    %296 = vector.broadcast %295 : vector<1x96xf32> to vector<16x96xf32>
    %297 = arith.addf %293, %296 : vector<16x96xf32>
    %298 = vector.extract_strided_slice %297 {offsets = [0, 0], sizes = [16, 32], strides = [1, 1]} : vector<16x96xf32> to vector<16x32xf32>
    %299 = vector.extract_strided_slice %297 {offsets = [0, 32], sizes = [16, 32], strides = [1, 1]} : vector<16x96xf32> to vector<16x32xf32>
    %300 = vector.extract_strided_slice %297 {offsets = [0, 64], sizes = [16, 32], strides = [1, 1]} : vector<16x96xf32> to vector<16x32xf32>
    %301 = tpu.concatenate %299, %299, %299, %299 in 0 : vector<16x32xf32>, vector<16x32xf32>, vector<16x32xf32>, vector<16x32xf32> -> vector<64x32xf32>
    %302 = arith.mulf %301, %2 : vector<64x32xf32>
    %303 = arith.truncf %302 : vector<64x32xf32> to vector<64x32xbf16>
    %304 = arith.truncf %298 : vector<16x32xf32> to vector<16x32xbf16>
    %cst_142 = arith.constant dense<0.000000e+00> : vector<16x64xf32>
    %305 = tpu.matmul %304, %303, %cst_142 {dimension_numbers = #tpu.dot_dimension_numbers<[1], [1], [0], [0], [0, 0, 1, 0], [], []>} : vector<16x32xbf16>, vector<64x32xbf16>, vector<16x64xf32> -> vector<16x64xf32>
    %306 = arith.addf %305, %1 : vector<16x64xf32>
    %cst_143 = arith.constant dense<0xFF800000> : vector<16xf32>
    %307 = vector.multi_reduction <maximumf>, %306, %cst_143 [1] : vector<16x64xf32> to vector<16xf32>
    %308 = vector.shape_cast %307 : vector<16xf32> to vector<16x1xf32>
    %309 = vector.broadcast %308 : vector<16x1xf32> to vector<16x64xf32>
    %310 = arith.subf %306, %309 : vector<16x64xf32>
    %311 = math.exp %310 : vector<16x64xf32>
    %312 = arith.truncf %311 : vector<16x64xf32> to vector<16x64xbf16>
    %313 = tpu.concatenate %300, %300, %300, %300 in 0 : vector<16x32xf32>, vector<16x32xf32>, vector<16x32xf32>, vector<16x32xf32> -> vector<64x32xf32>
    %314 = arith.mulf %313, %2 : vector<64x32xf32>
    %315 = arith.truncf %314 : vector<64x32xf32> to vector<64x32xbf16>
    %cst_144 = arith.constant dense<0.000000e+00> : vector<16x32xf32>
    %316 = tpu.matmul %312, %315, %cst_144 {dimension_numbers = #tpu.dot_dimension_numbers<[1], [0], [0], [1], [0, 0, 1, 1], [], []>} : vector<16x64xbf16>, vector<64x32xbf16>, vector<16x32xf32> -> vector<16x32xf32>
    %cst_145 = arith.constant dense<0.000000e+00> : vector<16x32xf32>
    %317 = tpu.matmul %312, %3, %cst_145 {dimension_numbers = #tpu.dot_dimension_numbers<[1], [0], [0], [1], [0, 0, 1, 1], [], []>} : vector<16x64xbf16>, vector<64x32xbf16>, vector<16x32xf32> -> vector<16x32xf32>
    %318 = tpu.reciprocal %317 : vector<16x32xf32> -> vector<16x32xf32>
    %319 = arith.mulf %316, %318 : vector<16x32xf32>
    %320 = arith.truncf %319 : vector<16x32xf32> to vector<16x32xbf16>
    %c3_146 = arith.constant 3 : index
    %c0_147 = arith.constant 0 : index
    %c0_148 = arith.constant 0 : index
    %321 = vector.load %arg6[%c3_146, %c0_147, %c0_148] : memref<6x32x32xbf16, #tpu.memory_space<vmem>>, vector<1x32x32xbf16>
    %322 = vector.shape_cast %321 : vector<1x32x32xbf16> to vector<32x32xbf16>
    %cst_149 = arith.constant dense<0.000000e+00> : vector<16x32xf32>
    %323 = tpu.matmul %320, %322, %cst_149 {dimension_numbers = #tpu.dot_dimension_numbers<[1], [0], [0], [1], [0, 0, 1, 1], [], []>} : vector<16x32xbf16>, vector<32x32xbf16>, vector<16x32xf32> -> vector<16x32xf32>
    %c3_150 = arith.constant 3 : index
    %c0_151 = arith.constant 0 : index
    %c0_152 = arith.constant 0 : index
    %324 = vector.load %arg7[%c3_150, %c0_151, %c0_152] : memref<6x1x32xf32, #tpu.memory_space<vmem>>, vector<1x1x32xf32>
    %325 = vector.shape_cast %324 : vector<1x1x32xf32> to vector<1x32xf32>
    %326 = vector.broadcast %325 : vector<1x32xf32> to vector<16x32xf32>
    %327 = arith.addf %323, %326 : vector<16x32xf32>
    %328 = arith.addf %273, %327 : vector<16x32xf32>
    %cst_153 = arith.constant dense<0.000000e+00> : vector<16xf32>
    %329 = vector.multi_reduction <add>, %328, %cst_153 [1] : vector<16x32xf32> to vector<16xf32>
    %330 = vector.shape_cast %329 : vector<16xf32> to vector<16x1xf32>
    %cst_154 = arith.constant 3.200000e+01 : f32
    %331 = vector.broadcast %cst_154 : f32 to vector<16x1xf32>
    %332 = arith.divf %330, %331 : vector<16x1xf32>
    %333 = vector.broadcast %332 : vector<16x1xf32> to vector<16x32xf32>
    %334 = arith.subf %328, %333 : vector<16x32xf32>
    %335 = arith.mulf %334, %334 : vector<16x32xf32>
    %cst_155 = arith.constant dense<0.000000e+00> : vector<16xf32>
    %336 = vector.multi_reduction <add>, %335, %cst_155 [1] : vector<16x32xf32> to vector<16xf32>
    %337 = vector.shape_cast %336 : vector<16xf32> to vector<16x1xf32>
    %cst_156 = arith.constant 3.200000e+01 : f32
    %338 = vector.broadcast %cst_156 : f32 to vector<16x1xf32>
    %339 = arith.divf %337, %338 : vector<16x1xf32>
    %cst_157 = arith.constant 9.99999974E-6 : f32
    %340 = vector.broadcast %cst_157 : f32 to vector<16x1xf32>
    %341 = arith.addf %339, %340 : vector<16x1xf32>
    %342 = math.rsqrt %341 : vector<16x1xf32>
    %343 = vector.broadcast %342 : vector<16x1xf32> to vector<16x32xf32>
    %344 = arith.mulf %334, %343 : vector<16x32xf32>
    %345 = arith.truncf %344 : vector<16x32xf32> to vector<16x32xbf16>
    %c3_158 = arith.constant 3 : index
    %c0_159 = arith.constant 0 : index
    %c0_160 = arith.constant 0 : index
    %346 = vector.load %arg8[%c3_158, %c0_159, %c0_160] : memref<6x32x128xbf16, #tpu.memory_space<vmem>>, vector<1x32x128xbf16>
    %347 = vector.shape_cast %346 : vector<1x32x128xbf16> to vector<32x128xbf16>
    %cst_161 = arith.constant dense<0.000000e+00> : vector<16x128xf32>
    %348 = tpu.matmul %345, %347, %cst_161 {dimension_numbers = #tpu.dot_dimension_numbers<[1], [0], [0], [1], [0, 0, 1, 1], [], []>} : vector<16x32xbf16>, vector<32x128xbf16>, vector<16x128xf32> -> vector<16x128xf32>
    %c3_162 = arith.constant 3 : index
    %c0_163 = arith.constant 0 : index
    %c0_164 = arith.constant 0 : index
    %349 = vector.load %arg9[%c3_162, %c0_163, %c0_164] : memref<6x1x128xf32, #tpu.memory_space<vmem>>, vector<1x1x128xf32>
    %350 = vector.shape_cast %349 : vector<1x1x128xf32> to vector<1x128xf32>
    %351 = vector.broadcast %350 : vector<1x128xf32> to vector<16x128xf32>
    %352 = arith.addf %348, %351 : vector<16x128xf32>
    %cst_165 = arith.constant 0.000000e+00 : f32
    %353 = vector.broadcast %cst_165 : f32 to vector<16x128xf32>
    %354 = arith.maximumf %352, %353 : vector<16x128xf32>
    %355 = arith.truncf %354 : vector<16x128xf32> to vector<16x128xbf16>
    %c3_166 = arith.constant 3 : index
    %c0_167 = arith.constant 0 : index
    %c0_168 = arith.constant 0 : index
    %356 = vector.load %arg10[%c3_166, %c0_167, %c0_168] : memref<6x128x32xbf16, #tpu.memory_space<vmem>>, vector<1x128x32xbf16>
    %357 = vector.shape_cast %356 : vector<1x128x32xbf16> to vector<128x32xbf16>
    %cst_169 = arith.constant dense<0.000000e+00> : vector<16x32xf32>
    %358 = tpu.matmul %355, %357, %cst_169 {dimension_numbers = #tpu.dot_dimension_numbers<[1], [0], [0], [1], [0, 0, 1, 1], [], []>} : vector<16x128xbf16>, vector<128x32xbf16>, vector<16x32xf32> -> vector<16x32xf32>
    %c3_170 = arith.constant 3 : index
    %c0_171 = arith.constant 0 : index
    %c0_172 = arith.constant 0 : index
    %359 = vector.load %arg11[%c3_170, %c0_171, %c0_172] : memref<6x1x32xf32, #tpu.memory_space<vmem>>, vector<1x1x32xf32>
    %360 = vector.shape_cast %359 : vector<1x1x32xf32> to vector<1x32xf32>
    %361 = vector.broadcast %360 : vector<1x32xf32> to vector<16x32xf32>
    %362 = arith.addf %358, %361 : vector<16x32xf32>
    %363 = arith.addf %328, %362 : vector<16x32xf32>
    %cst_173 = arith.constant dense<0.000000e+00> : vector<16xf32>
    %364 = vector.multi_reduction <add>, %363, %cst_173 [1] : vector<16x32xf32> to vector<16xf32>
    %365 = vector.shape_cast %364 : vector<16xf32> to vector<16x1xf32>
    %cst_174 = arith.constant 3.200000e+01 : f32
    %366 = vector.broadcast %cst_174 : f32 to vector<16x1xf32>
    %367 = arith.divf %365, %366 : vector<16x1xf32>
    %368 = vector.broadcast %367 : vector<16x1xf32> to vector<16x32xf32>
    %369 = arith.subf %363, %368 : vector<16x32xf32>
    %370 = arith.mulf %369, %369 : vector<16x32xf32>
    %cst_175 = arith.constant dense<0.000000e+00> : vector<16xf32>
    %371 = vector.multi_reduction <add>, %370, %cst_175 [1] : vector<16x32xf32> to vector<16xf32>
    %372 = vector.shape_cast %371 : vector<16xf32> to vector<16x1xf32>
    %cst_176 = arith.constant 3.200000e+01 : f32
    %373 = vector.broadcast %cst_176 : f32 to vector<16x1xf32>
    %374 = arith.divf %372, %373 : vector<16x1xf32>
    %cst_177 = arith.constant 9.99999974E-6 : f32
    %375 = vector.broadcast %cst_177 : f32 to vector<16x1xf32>
    %376 = arith.addf %374, %375 : vector<16x1xf32>
    %377 = math.rsqrt %376 : vector<16x1xf32>
    %378 = vector.broadcast %377 : vector<16x1xf32> to vector<16x32xf32>
    %379 = arith.mulf %369, %378 : vector<16x32xf32>
    %380 = arith.truncf %379 : vector<16x32xf32> to vector<16x32xbf16>
    %c4 = arith.constant 4 : index
    %c0_178 = arith.constant 0 : index
    %c0_179 = arith.constant 0 : index
    %381 = vector.load %arg4[%c4, %c0_178, %c0_179] : memref<6x32x96xbf16, #tpu.memory_space<vmem>>, vector<1x32x96xbf16>
    %382 = vector.shape_cast %381 : vector<1x32x96xbf16> to vector<32x96xbf16>
    %cst_180 = arith.constant dense<0.000000e+00> : vector<16x96xf32>
    %383 = tpu.matmul %380, %382, %cst_180 {dimension_numbers = #tpu.dot_dimension_numbers<[1], [0], [0], [1], [0, 0, 1, 1], [], []>} : vector<16x32xbf16>, vector<32x96xbf16>, vector<16x96xf32> -> vector<16x96xf32>
    %c4_181 = arith.constant 4 : index
    %c0_182 = arith.constant 0 : index
    %c0_183 = arith.constant 0 : index
    %384 = vector.load %arg5[%c4_181, %c0_182, %c0_183] : memref<6x1x96xf32, #tpu.memory_space<vmem>>, vector<1x1x96xf32>
    %385 = vector.shape_cast %384 : vector<1x1x96xf32> to vector<1x96xf32>
    %386 = vector.broadcast %385 : vector<1x96xf32> to vector<16x96xf32>
    %387 = arith.addf %383, %386 : vector<16x96xf32>
    %388 = vector.extract_strided_slice %387 {offsets = [0, 0], sizes = [16, 32], strides = [1, 1]} : vector<16x96xf32> to vector<16x32xf32>
    %389 = vector.extract_strided_slice %387 {offsets = [0, 32], sizes = [16, 32], strides = [1, 1]} : vector<16x96xf32> to vector<16x32xf32>
    %390 = vector.extract_strided_slice %387 {offsets = [0, 64], sizes = [16, 32], strides = [1, 1]} : vector<16x96xf32> to vector<16x32xf32>
    %391 = tpu.concatenate %389, %389, %389, %389 in 0 : vector<16x32xf32>, vector<16x32xf32>, vector<16x32xf32>, vector<16x32xf32> -> vector<64x32xf32>
    %392 = arith.mulf %391, %2 : vector<64x32xf32>
    %393 = arith.truncf %392 : vector<64x32xf32> to vector<64x32xbf16>
    %394 = arith.truncf %388 : vector<16x32xf32> to vector<16x32xbf16>
    %cst_184 = arith.constant dense<0.000000e+00> : vector<16x64xf32>
    %395 = tpu.matmul %394, %393, %cst_184 {dimension_numbers = #tpu.dot_dimension_numbers<[1], [1], [0], [0], [0, 0, 1, 0], [], []>} : vector<16x32xbf16>, vector<64x32xbf16>, vector<16x64xf32> -> vector<16x64xf32>
    %396 = arith.addf %395, %1 : vector<16x64xf32>
    %cst_185 = arith.constant dense<0xFF800000> : vector<16xf32>
    %397 = vector.multi_reduction <maximumf>, %396, %cst_185 [1] : vector<16x64xf32> to vector<16xf32>
    %398 = vector.shape_cast %397 : vector<16xf32> to vector<16x1xf32>
    %399 = vector.broadcast %398 : vector<16x1xf32> to vector<16x64xf32>
    %400 = arith.subf %396, %399 : vector<16x64xf32>
    %401 = math.exp %400 : vector<16x64xf32>
    %402 = arith.truncf %401 : vector<16x64xf32> to vector<16x64xbf16>
    %403 = tpu.concatenate %390, %390, %390, %390 in 0 : vector<16x32xf32>, vector<16x32xf32>, vector<16x32xf32>, vector<16x32xf32> -> vector<64x32xf32>
    %404 = arith.mulf %403, %2 : vector<64x32xf32>
    %405 = arith.truncf %404 : vector<64x32xf32> to vector<64x32xbf16>
    %cst_186 = arith.constant dense<0.000000e+00> : vector<16x32xf32>
    %406 = tpu.matmul %402, %405, %cst_186 {dimension_numbers = #tpu.dot_dimension_numbers<[1], [0], [0], [1], [0, 0, 1, 1], [], []>} : vector<16x64xbf16>, vector<64x32xbf16>, vector<16x32xf32> -> vector<16x32xf32>
    %cst_187 = arith.constant dense<0.000000e+00> : vector<16x32xf32>
    %407 = tpu.matmul %402, %3, %cst_187 {dimension_numbers = #tpu.dot_dimension_numbers<[1], [0], [0], [1], [0, 0, 1, 1], [], []>} : vector<16x64xbf16>, vector<64x32xbf16>, vector<16x32xf32> -> vector<16x32xf32>
    %408 = tpu.reciprocal %407 : vector<16x32xf32> -> vector<16x32xf32>
    %409 = arith.mulf %406, %408 : vector<16x32xf32>
    %410 = arith.truncf %409 : vector<16x32xf32> to vector<16x32xbf16>
    %c4_188 = arith.constant 4 : index
    %c0_189 = arith.constant 0 : index
    %c0_190 = arith.constant 0 : index
    %411 = vector.load %arg6[%c4_188, %c0_189, %c0_190] : memref<6x32x32xbf16, #tpu.memory_space<vmem>>, vector<1x32x32xbf16>
    %412 = vector.shape_cast %411 : vector<1x32x32xbf16> to vector<32x32xbf16>
    %cst_191 = arith.constant dense<0.000000e+00> : vector<16x32xf32>
    %413 = tpu.matmul %410, %412, %cst_191 {dimension_numbers = #tpu.dot_dimension_numbers<[1], [0], [0], [1], [0, 0, 1, 1], [], []>} : vector<16x32xbf16>, vector<32x32xbf16>, vector<16x32xf32> -> vector<16x32xf32>
    %c4_192 = arith.constant 4 : index
    %c0_193 = arith.constant 0 : index
    %c0_194 = arith.constant 0 : index
    %414 = vector.load %arg7[%c4_192, %c0_193, %c0_194] : memref<6x1x32xf32, #tpu.memory_space<vmem>>, vector<1x1x32xf32>
    %415 = vector.shape_cast %414 : vector<1x1x32xf32> to vector<1x32xf32>
    %416 = vector.broadcast %415 : vector<1x32xf32> to vector<16x32xf32>
    %417 = arith.addf %413, %416 : vector<16x32xf32>
    %418 = arith.addf %363, %417 : vector<16x32xf32>
    %cst_195 = arith.constant dense<0.000000e+00> : vector<16xf32>
    %419 = vector.multi_reduction <add>, %418, %cst_195 [1] : vector<16x32xf32> to vector<16xf32>
    %420 = vector.shape_cast %419 : vector<16xf32> to vector<16x1xf32>
    %cst_196 = arith.constant 3.200000e+01 : f32
    %421 = vector.broadcast %cst_196 : f32 to vector<16x1xf32>
    %422 = arith.divf %420, %421 : vector<16x1xf32>
    %423 = vector.broadcast %422 : vector<16x1xf32> to vector<16x32xf32>
    %424 = arith.subf %418, %423 : vector<16x32xf32>
    %425 = arith.mulf %424, %424 : vector<16x32xf32>
    %cst_197 = arith.constant dense<0.000000e+00> : vector<16xf32>
    %426 = vector.multi_reduction <add>, %425, %cst_197 [1] : vector<16x32xf32> to vector<16xf32>
    %427 = vector.shape_cast %426 : vector<16xf32> to vector<16x1xf32>
    %cst_198 = arith.constant 3.200000e+01 : f32
    %428 = vector.broadcast %cst_198 : f32 to vector<16x1xf32>
    %429 = arith.divf %427, %428 : vector<16x1xf32>
    %cst_199 = arith.constant 9.99999974E-6 : f32
    %430 = vector.broadcast %cst_199 : f32 to vector<16x1xf32>
    %431 = arith.addf %429, %430 : vector<16x1xf32>
    %432 = math.rsqrt %431 : vector<16x1xf32>
    %433 = vector.broadcast %432 : vector<16x1xf32> to vector<16x32xf32>
    %434 = arith.mulf %424, %433 : vector<16x32xf32>
    %435 = arith.truncf %434 : vector<16x32xf32> to vector<16x32xbf16>
    %c4_200 = arith.constant 4 : index
    %c0_201 = arith.constant 0 : index
    %c0_202 = arith.constant 0 : index
    %436 = vector.load %arg8[%c4_200, %c0_201, %c0_202] : memref<6x32x128xbf16, #tpu.memory_space<vmem>>, vector<1x32x128xbf16>
    %437 = vector.shape_cast %436 : vector<1x32x128xbf16> to vector<32x128xbf16>
    %cst_203 = arith.constant dense<0.000000e+00> : vector<16x128xf32>
    %438 = tpu.matmul %435, %437, %cst_203 {dimension_numbers = #tpu.dot_dimension_numbers<[1], [0], [0], [1], [0, 0, 1, 1], [], []>} : vector<16x32xbf16>, vector<32x128xbf16>, vector<16x128xf32> -> vector<16x128xf32>
    %c4_204 = arith.constant 4 : index
    %c0_205 = arith.constant 0 : index
    %c0_206 = arith.constant 0 : index
    %439 = vector.load %arg9[%c4_204, %c0_205, %c0_206] : memref<6x1x128xf32, #tpu.memory_space<vmem>>, vector<1x1x128xf32>
    %440 = vector.shape_cast %439 : vector<1x1x128xf32> to vector<1x128xf32>
    %441 = vector.broadcast %440 : vector<1x128xf32> to vector<16x128xf32>
    %442 = arith.addf %438, %441 : vector<16x128xf32>
    %cst_207 = arith.constant 0.000000e+00 : f32
    %443 = vector.broadcast %cst_207 : f32 to vector<16x128xf32>
    %444 = arith.maximumf %442, %443 : vector<16x128xf32>
    %445 = arith.truncf %444 : vector<16x128xf32> to vector<16x128xbf16>
    %c4_208 = arith.constant 4 : index
    %c0_209 = arith.constant 0 : index
    %c0_210 = arith.constant 0 : index
    %446 = vector.load %arg10[%c4_208, %c0_209, %c0_210] : memref<6x128x32xbf16, #tpu.memory_space<vmem>>, vector<1x128x32xbf16>
    %447 = vector.shape_cast %446 : vector<1x128x32xbf16> to vector<128x32xbf16>
    %cst_211 = arith.constant dense<0.000000e+00> : vector<16x32xf32>
    %448 = tpu.matmul %445, %447, %cst_211 {dimension_numbers = #tpu.dot_dimension_numbers<[1], [0], [0], [1], [0, 0, 1, 1], [], []>} : vector<16x128xbf16>, vector<128x32xbf16>, vector<16x32xf32> -> vector<16x32xf32>
    %c4_212 = arith.constant 4 : index
    %c0_213 = arith.constant 0 : index
    %c0_214 = arith.constant 0 : index
    %449 = vector.load %arg11[%c4_212, %c0_213, %c0_214] : memref<6x1x32xf32, #tpu.memory_space<vmem>>, vector<1x1x32xf32>
    %450 = vector.shape_cast %449 : vector<1x1x32xf32> to vector<1x32xf32>
    %451 = vector.broadcast %450 : vector<1x32xf32> to vector<16x32xf32>
    %452 = arith.addf %448, %451 : vector<16x32xf32>
    %453 = arith.addf %418, %452 : vector<16x32xf32>
    %cst_215 = arith.constant dense<0.000000e+00> : vector<16xf32>
    %454 = vector.multi_reduction <add>, %453, %cst_215 [1] : vector<16x32xf32> to vector<16xf32>
    %455 = vector.shape_cast %454 : vector<16xf32> to vector<16x1xf32>
    %cst_216 = arith.constant 3.200000e+01 : f32
    %456 = vector.broadcast %cst_216 : f32 to vector<16x1xf32>
    %457 = arith.divf %455, %456 : vector<16x1xf32>
    %458 = vector.broadcast %457 : vector<16x1xf32> to vector<16x32xf32>
    %459 = arith.subf %453, %458 : vector<16x32xf32>
    %460 = arith.mulf %459, %459 : vector<16x32xf32>
    %cst_217 = arith.constant dense<0.000000e+00> : vector<16xf32>
    %461 = vector.multi_reduction <add>, %460, %cst_217 [1] : vector<16x32xf32> to vector<16xf32>
    %462 = vector.shape_cast %461 : vector<16xf32> to vector<16x1xf32>
    %cst_218 = arith.constant 3.200000e+01 : f32
    %463 = vector.broadcast %cst_218 : f32 to vector<16x1xf32>
    %464 = arith.divf %462, %463 : vector<16x1xf32>
    %cst_219 = arith.constant 9.99999974E-6 : f32
    %465 = vector.broadcast %cst_219 : f32 to vector<16x1xf32>
    %466 = arith.addf %464, %465 : vector<16x1xf32>
    %467 = math.rsqrt %466 : vector<16x1xf32>
    %468 = vector.broadcast %467 : vector<16x1xf32> to vector<16x32xf32>
    %469 = arith.mulf %459, %468 : vector<16x32xf32>
    %470 = arith.truncf %469 : vector<16x32xf32> to vector<16x32xbf16>
    %c5 = arith.constant 5 : index
    %c0_220 = arith.constant 0 : index
    %c0_221 = arith.constant 0 : index
    %471 = vector.load %arg4[%c5, %c0_220, %c0_221] : memref<6x32x96xbf16, #tpu.memory_space<vmem>>, vector<1x32x96xbf16>
    %472 = vector.shape_cast %471 : vector<1x32x96xbf16> to vector<32x96xbf16>
    %cst_222 = arith.constant dense<0.000000e+00> : vector<16x96xf32>
    %473 = tpu.matmul %470, %472, %cst_222 {dimension_numbers = #tpu.dot_dimension_numbers<[1], [0], [0], [1], [0, 0, 1, 1], [], []>} : vector<16x32xbf16>, vector<32x96xbf16>, vector<16x96xf32> -> vector<16x96xf32>
    %c5_223 = arith.constant 5 : index
    %c0_224 = arith.constant 0 : index
    %c0_225 = arith.constant 0 : index
    %474 = vector.load %arg5[%c5_223, %c0_224, %c0_225] : memref<6x1x96xf32, #tpu.memory_space<vmem>>, vector<1x1x96xf32>
    %475 = vector.shape_cast %474 : vector<1x1x96xf32> to vector<1x96xf32>
    %476 = vector.broadcast %475 : vector<1x96xf32> to vector<16x96xf32>
    %477 = arith.addf %473, %476 : vector<16x96xf32>
    %478 = vector.extract_strided_slice %477 {offsets = [0, 0], sizes = [16, 32], strides = [1, 1]} : vector<16x96xf32> to vector<16x32xf32>
    %479 = vector.extract_strided_slice %477 {offsets = [0, 32], sizes = [16, 32], strides = [1, 1]} : vector<16x96xf32> to vector<16x32xf32>
    %480 = vector.extract_strided_slice %477 {offsets = [0, 64], sizes = [16, 32], strides = [1, 1]} : vector<16x96xf32> to vector<16x32xf32>
    %481 = tpu.concatenate %479, %479, %479, %479 in 0 : vector<16x32xf32>, vector<16x32xf32>, vector<16x32xf32>, vector<16x32xf32> -> vector<64x32xf32>
    %482 = arith.mulf %481, %2 : vector<64x32xf32>
    %483 = arith.truncf %482 : vector<64x32xf32> to vector<64x32xbf16>
    %484 = arith.truncf %478 : vector<16x32xf32> to vector<16x32xbf16>
    %cst_226 = arith.constant dense<0.000000e+00> : vector<16x64xf32>
    %485 = tpu.matmul %484, %483, %cst_226 {dimension_numbers = #tpu.dot_dimension_numbers<[1], [1], [0], [0], [0, 0, 1, 0], [], []>} : vector<16x32xbf16>, vector<64x32xbf16>, vector<16x64xf32> -> vector<16x64xf32>
    %486 = arith.addf %485, %1 : vector<16x64xf32>
    %cst_227 = arith.constant dense<0xFF800000> : vector<16xf32>
    %487 = vector.multi_reduction <maximumf>, %486, %cst_227 [1] : vector<16x64xf32> to vector<16xf32>
    %488 = vector.shape_cast %487 : vector<16xf32> to vector<16x1xf32>
    %489 = vector.broadcast %488 : vector<16x1xf32> to vector<16x64xf32>
    %490 = arith.subf %486, %489 : vector<16x64xf32>
    %491 = math.exp %490 : vector<16x64xf32>
    %492 = arith.truncf %491 : vector<16x64xf32> to vector<16x64xbf16>
    %493 = tpu.concatenate %480, %480, %480, %480 in 0 : vector<16x32xf32>, vector<16x32xf32>, vector<16x32xf32>, vector<16x32xf32> -> vector<64x32xf32>
    %494 = arith.mulf %493, %2 : vector<64x32xf32>
    %495 = arith.truncf %494 : vector<64x32xf32> to vector<64x32xbf16>
    %cst_228 = arith.constant dense<0.000000e+00> : vector<16x32xf32>
    %496 = tpu.matmul %492, %495, %cst_228 {dimension_numbers = #tpu.dot_dimension_numbers<[1], [0], [0], [1], [0, 0, 1, 1], [], []>} : vector<16x64xbf16>, vector<64x32xbf16>, vector<16x32xf32> -> vector<16x32xf32>
    %cst_229 = arith.constant dense<0.000000e+00> : vector<16x32xf32>
    %497 = tpu.matmul %492, %3, %cst_229 {dimension_numbers = #tpu.dot_dimension_numbers<[1], [0], [0], [1], [0, 0, 1, 1], [], []>} : vector<16x64xbf16>, vector<64x32xbf16>, vector<16x32xf32> -> vector<16x32xf32>
    %498 = tpu.reciprocal %497 : vector<16x32xf32> -> vector<16x32xf32>
    %499 = arith.mulf %496, %498 : vector<16x32xf32>
    %500 = arith.truncf %499 : vector<16x32xf32> to vector<16x32xbf16>
    %c5_230 = arith.constant 5 : index
    %c0_231 = arith.constant 0 : index
    %c0_232 = arith.constant 0 : index
    %501 = vector.load %arg6[%c5_230, %c0_231, %c0_232] : memref<6x32x32xbf16, #tpu.memory_space<vmem>>, vector<1x32x32xbf16>
    %502 = vector.shape_cast %501 : vector<1x32x32xbf16> to vector<32x32xbf16>
    %cst_233 = arith.constant dense<0.000000e+00> : vector<16x32xf32>
    %503 = tpu.matmul %500, %502, %cst_233 {dimension_numbers = #tpu.dot_dimension_numbers<[1], [0], [0], [1], [0, 0, 1, 1], [], []>} : vector<16x32xbf16>, vector<32x32xbf16>, vector<16x32xf32> -> vector<16x32xf32>
    %c5_234 = arith.constant 5 : index
    %c0_235 = arith.constant 0 : index
    %c0_236 = arith.constant 0 : index
    %504 = vector.load %arg7[%c5_234, %c0_235, %c0_236] : memref<6x1x32xf32, #tpu.memory_space<vmem>>, vector<1x1x32xf32>
    %505 = vector.shape_cast %504 : vector<1x1x32xf32> to vector<1x32xf32>
    %506 = vector.broadcast %505 : vector<1x32xf32> to vector<16x32xf32>
    %507 = arith.addf %503, %506 : vector<16x32xf32>
    %508 = arith.addf %453, %507 : vector<16x32xf32>
    %cst_237 = arith.constant dense<0.000000e+00> : vector<16xf32>
    %509 = vector.multi_reduction <add>, %508, %cst_237 [1] : vector<16x32xf32> to vector<16xf32>
    %510 = vector.shape_cast %509 : vector<16xf32> to vector<16x1xf32>
    %cst_238 = arith.constant 3.200000e+01 : f32
    %511 = vector.broadcast %cst_238 : f32 to vector<16x1xf32>
    %512 = arith.divf %510, %511 : vector<16x1xf32>
    %513 = vector.broadcast %512 : vector<16x1xf32> to vector<16x32xf32>
    %514 = arith.subf %508, %513 : vector<16x32xf32>
    %515 = arith.mulf %514, %514 : vector<16x32xf32>
    %cst_239 = arith.constant dense<0.000000e+00> : vector<16xf32>
    %516 = vector.multi_reduction <add>, %515, %cst_239 [1] : vector<16x32xf32> to vector<16xf32>
    %517 = vector.shape_cast %516 : vector<16xf32> to vector<16x1xf32>
    %cst_240 = arith.constant 3.200000e+01 : f32
    %518 = vector.broadcast %cst_240 : f32 to vector<16x1xf32>
    %519 = arith.divf %517, %518 : vector<16x1xf32>
    %cst_241 = arith.constant 9.99999974E-6 : f32
    %520 = vector.broadcast %cst_241 : f32 to vector<16x1xf32>
    %521 = arith.addf %519, %520 : vector<16x1xf32>
    %522 = math.rsqrt %521 : vector<16x1xf32>
    %523 = vector.broadcast %522 : vector<16x1xf32> to vector<16x32xf32>
    %524 = arith.mulf %514, %523 : vector<16x32xf32>
    %525 = arith.truncf %524 : vector<16x32xf32> to vector<16x32xbf16>
    %c5_242 = arith.constant 5 : index
    %c0_243 = arith.constant 0 : index
    %c0_244 = arith.constant 0 : index
    %526 = vector.load %arg8[%c5_242, %c0_243, %c0_244] : memref<6x32x128xbf16, #tpu.memory_space<vmem>>, vector<1x32x128xbf16>
    %527 = vector.shape_cast %526 : vector<1x32x128xbf16> to vector<32x128xbf16>
    %cst_245 = arith.constant dense<0.000000e+00> : vector<16x128xf32>
    %528 = tpu.matmul %525, %527, %cst_245 {dimension_numbers = #tpu.dot_dimension_numbers<[1], [0], [0], [1], [0, 0, 1, 1], [], []>} : vector<16x32xbf16>, vector<32x128xbf16>, vector<16x128xf32> -> vector<16x128xf32>
    %c5_246 = arith.constant 5 : index
    %c0_247 = arith.constant 0 : index
    %c0_248 = arith.constant 0 : index
    %529 = vector.load %arg9[%c5_246, %c0_247, %c0_248] : memref<6x1x128xf32, #tpu.memory_space<vmem>>, vector<1x1x128xf32>
    %530 = vector.shape_cast %529 : vector<1x1x128xf32> to vector<1x128xf32>
    %531 = vector.broadcast %530 : vector<1x128xf32> to vector<16x128xf32>
    %532 = arith.addf %528, %531 : vector<16x128xf32>
    %cst_249 = arith.constant 0.000000e+00 : f32
    %533 = vector.broadcast %cst_249 : f32 to vector<16x128xf32>
    %534 = arith.maximumf %532, %533 : vector<16x128xf32>
    %535 = arith.truncf %534 : vector<16x128xf32> to vector<16x128xbf16>
    %c5_250 = arith.constant 5 : index
    %c0_251 = arith.constant 0 : index
    %c0_252 = arith.constant 0 : index
    %536 = vector.load %arg10[%c5_250, %c0_251, %c0_252] : memref<6x128x32xbf16, #tpu.memory_space<vmem>>, vector<1x128x32xbf16>
    %537 = vector.shape_cast %536 : vector<1x128x32xbf16> to vector<128x32xbf16>
    %cst_253 = arith.constant dense<0.000000e+00> : vector<16x32xf32>
    %538 = tpu.matmul %535, %537, %cst_253 {dimension_numbers = #tpu.dot_dimension_numbers<[1], [0], [0], [1], [0, 0, 1, 1], [], []>} : vector<16x128xbf16>, vector<128x32xbf16>, vector<16x32xf32> -> vector<16x32xf32>
    %c5_254 = arith.constant 5 : index
    %c0_255 = arith.constant 0 : index
    %c0_256 = arith.constant 0 : index
    %539 = vector.load %arg11[%c5_254, %c0_255, %c0_256] : memref<6x1x32xf32, #tpu.memory_space<vmem>>, vector<1x1x32xf32>
    %540 = vector.shape_cast %539 : vector<1x1x32xf32> to vector<1x32xf32>
    %541 = vector.broadcast %540 : vector<1x32xf32> to vector<16x32xf32>
    %542 = arith.addf %538, %541 : vector<16x32xf32>
    %543 = arith.addf %508, %542 : vector<16x32xf32>
    %cst_257 = arith.constant dense<0.000000e+00> : vector<16xf32>
    %544 = vector.multi_reduction <add>, %543, %cst_257 [1] : vector<16x32xf32> to vector<16xf32>
    %545 = vector.shape_cast %544 : vector<16xf32> to vector<16x1xf32>
    %cst_258 = arith.constant 3.200000e+01 : f32
    %546 = vector.broadcast %cst_258 : f32 to vector<16x1xf32>
    %547 = arith.divf %545, %546 : vector<16x1xf32>
    %548 = vector.broadcast %547 : vector<16x1xf32> to vector<16x32xf32>
    %549 = arith.subf %543, %548 : vector<16x32xf32>
    %550 = arith.mulf %549, %549 : vector<16x32xf32>
    %cst_259 = arith.constant dense<0.000000e+00> : vector<16xf32>
    %551 = vector.multi_reduction <add>, %550, %cst_259 [1] : vector<16x32xf32> to vector<16xf32>
    %552 = vector.shape_cast %551 : vector<16xf32> to vector<16x1xf32>
    %cst_260 = arith.constant 3.200000e+01 : f32
    %553 = vector.broadcast %cst_260 : f32 to vector<16x1xf32>
    %554 = arith.divf %552, %553 : vector<16x1xf32>
    %cst_261 = arith.constant 9.99999974E-6 : f32
    %555 = vector.broadcast %cst_261 : f32 to vector<16x1xf32>
    %556 = arith.addf %554, %555 : vector<16x1xf32>
    %557 = math.rsqrt %556 : vector<16x1xf32>
    %558 = vector.broadcast %557 : vector<16x1xf32> to vector<16x32xf32>
    %559 = arith.mulf %549, %558 : vector<16x32xf32>
    %560 = arith.truncf %559 : vector<16x32xf32> to vector<16x32xbf16>
    %c0_262 = arith.constant 0 : index
    %c0_263 = arith.constant 0 : index
    %561 = vector.load %arg12[%c0_262, %c0_263] : memref<32x128xbf16, #tpu.memory_space<vmem>>, vector<32x128xbf16>
    %cst_264 = arith.constant dense<0.000000e+00> : vector<16x128xf32>
    %562 = tpu.matmul %560, %561, %cst_264 {dimension_numbers = #tpu.dot_dimension_numbers<[1], [0], [0], [1], [0, 0, 1, 1], [], []>} : vector<16x32xbf16>, vector<32x128xbf16>, vector<16x128xf32> -> vector<16x128xf32>
    %c0_265 = arith.constant 0 : index
    %c0_266 = arith.constant 0 : index
    %563 = vector.load %arg13[%c0_265, %c0_266] : memref<1x128xf32, #tpu.memory_space<vmem>>, vector<1x128xf32>
    %564 = vector.broadcast %563 : vector<1x128xf32> to vector<16x128xf32>
    %565 = arith.addf %562, %564 : vector<16x128xf32>
    %c0_267 = arith.constant 0 : index
    %c0_268 = arith.constant 0 : index
    %566 = vector.load %arg14[%c0_267, %c0_268] : memref<16x128xf32, #tpu.memory_space<vmem>>, vector<16x128xf32>
    tpu.vector_store %arg14[%c0_267, %c0_268], %565 {strides = array<i32>} : memref<16x128xf32, #tpu.memory_space<vmem>>, vector<16x128xf32>,
    return
  }
  func.func @transform_0(%arg0: i32) -> (i32, i32) {
    %c0_i32 = arith.constant 0 : i32
    %c0_i32_0 = arith.constant 0 : i32
    %c0_i32_1 = arith.constant 0 : i32
    return %c0_i32, %c0_i32_0 : i32, i32
  }
  func.func @transform_1(%arg0: i32) -> (i32, i32) {
    %c0_i32 = arith.constant 0 : i32
    %c0_i32_0 = arith.constant 0 : i32
    %c0_i32_1 = arith.constant 0 : i32
    return %c0_i32, %c0_i32_0 : i32, i32
  }
  func.func @transform_2(%arg0: i32) -> (i32, i32) {
    %c0_i32 = arith.constant 0 : i32
    %c0_i32_0 = arith.constant 0 : i32
    %c0_i32_1 = arith.constant 0 : i32
    return %c0_i32, %c0_i32_0 : i32, i32
  }
  func.func @transform_3(%arg0: i32) -> (i32, i32, i32) {
    %c0_i32 = arith.constant 0 : i32
    %c0_i32_0 = arith.constant 0 : i32
    %c0_i32_1 = arith.constant 0 : i32
    %c0_i32_2 = arith.constant 0 : i32
    return %c0_i32, %c0_i32_0, %c0_i32_1 : i32, i32, i32
  }
  func.func @transform_4(%arg0: i32) -> (i32, i32, i32) {
    %c0_i32 = arith.constant 0 : i32
    %c0_i32_0 = arith.constant 0 : i32
    %c0_i32_1 = arith.constant 0 : i32
    %c0_i32_2 = arith.constant 0 : i32
    return %c0_i32, %c0_i32_0, %c0_i32_1 : i32, i32, i32
  }
  func.func @transform_5(%arg0: i32) -> (i32, i32, i32) {
    %c0_i32 = arith.constant 0 : i32
    %c0_i32_0 = arith.constant 0 : i32
    %c0_i32_1 = arith.constant 0 : i32
    %c0_i32_2 = arith.constant 0 : i32
    return %c0_i32, %c0_i32_0, %c0_i32_1 : i32, i32, i32
  }
  func.func @transform_6(%arg0: i32) -> (i32, i32, i32) {
    %c0_i32 = arith.constant 0 : i32
    %c0_i32_0 = arith.constant 0 : i32
    %c0_i32_1 = arith.constant 0 : i32
    %c0_i32_2 = arith.constant 0 : i32
    return %c0_i32, %c0_i32_0, %c0_i32_1 : i32, i32, i32
  }
  func.func @transform_7(%arg0: i32) -> (i32, i32, i32) {
    %c0_i32 = arith.constant 0 : i32
    %c0_i32_0 = arith.constant 0 : i32
    %c0_i32_1 = arith.constant 0 : i32
    %c0_i32_2 = arith.constant 0 : i32
    return %c0_i32, %c0_i32_0, %c0_i32_1 : i32, i32, i32
  }
  func.func @transform_8(%arg0: i32) -> (i32, i32, i32) {
    %c0_i32 = arith.constant 0 : i32
    %c0_i32_0 = arith.constant 0 : i32
    %c0_i32_1 = arith.constant 0 : i32
    %c0_i32_2 = arith.constant 0 : i32
    return %c0_i32, %c0_i32_0, %c0_i32_1 : i32, i32, i32
  }
  func.func @transform_9(%arg0: i32) -> (i32, i32, i32) {
    %c0_i32 = arith.constant 0 : i32
    %c0_i32_0 = arith.constant 0 : i32
    %c0_i32_1 = arith.constant 0 : i32
    %c0_i32_2 = arith.constant 0 : i32
    return %c0_i32, %c0_i32_0, %c0_i32_1 : i32, i32, i32
  }
  func.func @transform_10(%arg0: i32) -> (i32, i32, i32) {
    %c0_i32 = arith.constant 0 : i32
    %c0_i32_0 = arith.constant 0 : i32
    %c0_i32_1 = arith.constant 0 : i32
    %c0_i32_2 = arith.constant 0 : i32
    return %c0_i32, %c0_i32_0, %c0_i32_1 : i32, i32, i32
  }
  func.func @transform_11(%arg0: i32) -> (i32, i32) {
    %c0_i32 = arith.constant 0 : i32
    %c0_i32_0 = arith.constant 0 : i32
    %c0_i32_1 = arith.constant 0 : i32
    return %c0_i32, %c0_i32_0 : i32, i32
  }
  func.func @transform_12(%arg0: i32) -> (i32, i32) {
    %c0_i32 = arith.constant 0 : i32
    %c0_i32_0 = arith.constant 0 : i32
    %c0_i32_1 = arith.constant 0 : i32
    return %c0_i32, %c0_i32_0 : i32, i32
  }
  func.func @transform_13(%arg0: i32) -> (i32, i32) {
    %c0_i32 = arith.constant 0 : i32
    %c0_i32_0 = arith.constant 0 : i32
    %c0_i32_1 = arith.constant 0 : i32
    return %c0_i32, %c0_i32_0 : i32, i32
  }
}

</mosaic_0001>

<llo_original>
// kernel: decoder_transformer_forward.1
$region0: #{decoder_transformer_forward.1}
  #allocation0 [shape = 'u32[]', space=smem, size = 0x4, offset = 0x4, fixed_abs, tag = 'smem constant byte address 0x4 - core index']
  #allocation1 [shape = 'u32[144,128]{1,0:T(1,128)}', space=vmem, size = 0x12000, scoped, tag = 'internal scratch']
  %s0 = inlined_call_operand.vmem [shape: f32[16,32], index: 0, kind: input, shape index: {}]
  %s1 = inlined_call_operand.vmem [shape: f32[16,64], index: 1, kind: input, shape index: {}]
  %s2 = inlined_call_operand.vmem [shape: f32[64,32], index: 2, kind: input, shape index: {}]
  %s3 = inlined_call_operand.vmem [shape: bf16[6,32,96], index: 3, kind: input, shape index: {}]
  %s4 = inlined_call_operand.vmem [shape: f32[6,1,96], index: 4, kind: input, shape index: {}]
  %s5 = inlined_call_operand.vmem [shape: bf16[6,32,32], index: 5, kind: input, shape index: {}]
  %s6 = inlined_call_operand.vmem [shape: f32[6,1,32], index: 6, kind: input, shape index: {}]
  %s7 = inlined_call_operand.vmem [shape: bf16[6,32,128], index: 7, kind: input, shape index: {}]
  %s8 = inlined_call_operand.vmem [shape: f32[6,1,128], index: 8, kind: input, shape index: {}]
  %s9 = inlined_call_operand.vmem [shape: bf16[6,128,32], index: 9, kind: input, shape index: {}]
  %s10 = inlined_call_operand.vmem [shape: f32[6,1,32], index: 10, kind: input, shape index: {}]
  %s11 = inlined_call_operand.vmem [shape: bf16[32,128], index: 11, kind: input, shape index: {}]
  %s12 = inlined_call_operand.vmem [shape: f32[1,128], index: 12, kind: input, shape index: {}]
  %s13 = inlined_call_operand.vmem [shape: f32[16,128], index: 13, kind: output, shape index: {}]
  %s14 = sld [smem:[#allocation0]]
  $region62: #{decoder_transformer_forward.1} parent=0
    _
  %s16 = ssub.s32 1, %s14
  %s17 = scalar_select 0, %s16, %s14
  // Predicated region
  $region2: #{decoder_transformer_forward.1} parent=0 // pred_check
    _
  $region3: #{decoder_transformer_forward.1} parent=0 // pred_check_branch
    %19 = sbr.rel (0) target = $region5
  $region4: #{decoder_transformer_forward.1} parent=0 // pred_region
    _
  $region5: #{decoder_transformer_forward.1} parent=0 // pred_fallthru
    _
  // Predicated region
  $region6: #{decoder_transformer_forward.1} parent=0 // pred_check
    _
  $region7: #{decoder_transformer_forward.1} parent=0 // pred_check_branch
    %21 = sbr.rel (0) target = $region9
  $region8: #{decoder_transformer_forward.1} parent=0 // pred_region
    _
  $region9: #{decoder_transformer_forward.1} parent=0 // pred_fallthru
    _
  // Predicated region
  $region10: #{decoder_transformer_forward.1} parent=0 // pred_check
    _
  $region11: #{decoder_transformer_forward.1} parent=0 // pred_check_branch
    %23 = sbr.rel (0) target = $region13
  $region12: #{decoder_transformer_forward.1} parent=0 // pred_region
    _
  $region13: #{decoder_transformer_forward.1} parent=0 // pred_fallthru
    _
  // Predicated region
  $region14: #{decoder_transformer_forward.1} parent=0 // pred_check
    _
  $region15: #{decoder_transformer_forward.1} parent=0 // pred_check_branch
    %25 = sbr.rel (0) target = $region17
  $region16: #{decoder_transformer_forward.1} parent=0 // pred_region
    _
  $region17: #{decoder_transformer_forward.1} parent=0 // pred_fallthru
    _
  // Predicated region
  $region18: #{decoder_transformer_forward.1} parent=0 // pred_check
    _
  $region19: #{decoder_transformer_forward.1} parent=0 // pred_check_branch
    %27 = sbr.rel (0) target = $region21
  $region20: #{decoder_transformer_forward.1} parent=0 // pred_region
    _
  $region21: #{decoder_transformer_forward.1} parent=0 // pred_fallthru
    _
  // Predicated region
  $region22: #{decoder_transformer_forward.1} parent=0 // pred_check
    _
  $region23: #{decoder_transformer_forward.1} parent=0 // pred_check_branch
    %29 = sbr.rel (0) target = $region25
  $region24: #{decoder_transformer_forward.1} parent=0 // pred_region
    _
  $region25: #{decoder_transformer_forward.1} parent=0 // pred_fallthru
    _
  // Predicated region
  $region26: #{decoder_transformer_forward.1} parent=0 // pred_check
    _
  $region27: #{decoder_transformer_forward.1} parent=0 // pred_check_branch
    %31 = sbr.rel (0) target = $region29
  $region28: #{decoder_transformer_forward.1} parent=0 // pred_region
    _
  $region29: #{decoder_transformer_forward.1} parent=0 // pred_fallthru
    _
  // Predicated region
  $region30: #{decoder_transformer_forward.1} parent=0 // pred_check
    _
  $region31: #{decoder_transformer_forward.1} parent=0 // pred_check_branch
    %33 = sbr.rel (0) target = $region33
  $region32: #{decoder_transformer_forward.1} parent=0 // pred_region
    _
  $region33: #{decoder_transformer_forward.1} parent=0 // pred_fallthru
    _
  // Predicated region
  $region34: #{decoder_transformer_forward.1} parent=0 // pred_check
    _
  $region35: #{decoder_transformer_forward.1} parent=0 // pred_check_branch
    %35 = sbr.rel (0) target = $region37
  $region36: #{decoder_transformer_forward.1} parent=0 // pred_region
    _
  $region37: #{decoder_transformer_forward.1} parent=0 // pred_fallthru
    _
  // Predicated region
  $region38: #{decoder_transformer_forward.1} parent=0 // pred_check
    _
  $region39: #{decoder_transformer_forward.1} parent=0 // pred_check_branch
    %37 = sbr.rel (0) target = $region41
  $region40: #{decoder_transformer_forward.1} parent=0 // pred_region
    _
  $region41: #{decoder_transformer_forward.1} parent=0 // pred_fallthru
    _
  // Predicated region
  $region42: #{decoder_transformer_forward.1} parent=0 // pred_check
    _
  $region43: #{decoder_transformer_forward.1} parent=0 // pred_check_branch
    %39 = sbr.rel (0) target = $region45
  $region44: #{decoder_transformer_forward.1} parent=0 // pred_region
    _
  $region45: #{decoder_transformer_forward.1} parent=0 // pred_fallthru
    _
  // Predicated region
  $region46: #{decoder_transformer_forward.1} parent=0 // pred_check
    _
  $region47: #{decoder_transformer_forward.1} parent=0 // pred_check_branch
    %41 = sbr.rel (0) target = $region49
  $region48: #{decoder_transformer_forward.1} parent=0 // pred_region
    _
  $region49: #{decoder_transformer_forward.1} parent=0 // pred_fallthru
    _
  // Predicated region
  $region50: #{decoder_transformer_forward.1} parent=0 // pred_check
    _
  $region51: #{decoder_transformer_forward.1} parent=0 // pred_check_branch
    %43 = sbr.rel (0) target = $region53
  $region52: #{decoder_transformer_forward.1} parent=0 // pred_region
    _
  $region53: #{decoder_transformer_forward.1} parent=0 // pred_fallthru
    _
  %v45 = vld [vmem:[%s0] sm:$0xff]
  %v46 = vld [vmem:[%s0 + $0x8] sm:$0xff]
  %v47 = vld [vmem:[%s1] sm:$0xff]
  %v48 = vld [vmem:[%s1 + $0x8] sm:$0xff]
  %v49 = vld [vmem:[%s2] sm:$0xff]
  %v50 = vld [vmem:[%s2 + $0x8] sm:$0xff]
  %v51 = vld [vmem:[%s2 + $0x10] sm:$0xff]
  %v52 = vld [vmem:[%s2 + $0x18] sm:$0xff]
  %v53 = vld [vmem:[%s2 + $0x20] sm:$0xff]
  %v54 = vld [vmem:[%s2 + $0x28] sm:$0xff]
  %v55 = vld [vmem:[%s2 + $0x30] sm:$0xff]
  %v56 = vld [vmem:[%s2 + $0x38] sm:$0xff]
  %v57 = vpack.c.bf16 %v50, %v49
  %v58 = vpack.c.bf16 %v52, %v51
  %v59 = vpack.c.bf16 %v54, %v53
  %v60 = vpack.c.bf16 %v56, %v55
  %vm61 = vcmask 261120
  %v62 = vsel %vm61, %v45, 0.0
  %63 = vadd.xlane.f32.xlu0 %v62
  %v64 = vpop.xlane.xlu0 %63
  %v65 = vsel %vm61, %v46, 0.0
  %66 = vadd.xlane.f32.xlu0 %v65
  %v67 = vpop.xlane.xlu0 %66
  %v68 = vrcp.pop 32.0
  %v69 = vmul.f32 %v64, %v68
  %v70 = vmul.f32 %v67, %v68
  %v71 = vsub.f32 %v45, %v69
  %v72 = vsub.f32 %v46, %v70
  %v73 = vmul.f32 %v71, %v71
  %v74 = vmul.f32 %v72, %v72
  %v75 = vsel %vm61, %v73, 0.0
  %76 = vadd.xlane.f32.xlu0 %v75
  %v77 = vpop.xlane.xlu0 %76
  %v78 = vsel %vm61, %v74, 0.0
  %79 = vadd.xlane.f32.xlu0 %v78
  %v80 = vpop.xlane.xlu0 %79
  %v81 = vmul.f32 %v77, %v68
  %v82 = vmul.f32 %v80, %v68
  %v83 = vadd.f32 %v81, 1e-05
  %v84 = vadd.f32 %v82, 1e-05
  %v85 = vrsqrt.pop %v83
  %v86 = vrsqrt.pop %v84
  %v87 = vmul.f32 %v71, %v85
  %v88 = vmul.f32 %v72, %v86
  %v89 = vpack.c.bf16 %v88, %v87
  %v90 = vld [vmem:[%s3] sm:$0xf]
  %v91 = vld [vmem:[%s3 + $0x4] sm:$0xf]
  %v92 = vld [vmem:[%s3 + $0x8] sm:$0xf]
  %v93 = vld [vmem:[%s3 + $0xc] sm:$0xf]
  %v94 = vld [vmem:[%s4] sm:$0x1]
  %v96 = vlaneseq
  %v97 = vshrl.u32 %v96, 7
  %v98 = vsub.s32 0, %v97
  %v99 = vrot.slane %v94, %v98
  %v105 = vunpack.c.l.b16 %v90
  %v106 = vunpack.c.l.b16 %v91
  %v107 = vunpack.c.l.b16 %v92
  %v108 = vunpack.c.l.b16 %v93
  %v109 = vpack.c.b16 %v106, %v105
  %v110 = vpack.c.b16 %v108, %v107
  %v114 = vsel %vm61, %v89, 0
  %116 = vmatprep.subr.bf16.mxu0 0
  %117 = vmatpush1.bf16.msra.mxu0 %v109
  %118 = vmatprep.subr.bf16.mxu0 0
  %119 = vmatpush1.bf16.msra.mxu0 %v110
  %120 = vmatprep.subr.bf16.mxu0 0
  %121 = vmatpush1.bf16.msra.mxu0 0
  %122 = vmatprep.subr.bf16.mxu0 0
  %123 = vmatpush1.bf16.msra.mxu0 0
  %124 = vmatprep.subr.bf16.mxu0 0
  %125 = vmatpush1.bf16.msra.mxu0 0
  %126 = vmatprep.subr.bf16.mxu0 0
  %127 = vmatpush1.bf16.msra.mxu0 0
  %128 = vmatprep.subr.bf16.mxu0 0
  %129 = vmatpush1.bf16.msra.mxu0 0
  %130 = vmatprep.subr.bf16.mxu0 0
  %131 = vmatpush1.bf16.msra.mxu0 0
  %132 = vmatprep.subr.bf16.mxu0 0
  %133 = vmatpush1.bf16.msra.mxu0 0
  %134 = vmatprep.subr.bf16.mxu0 0
  %135 = vmatpush1.bf16.msra.mxu0 0
  %136 = vmatprep.subr.bf16.mxu0 0
  %137 = vmatpush1.bf16.msra.mxu0 0
  %138 = vmatprep.subr.bf16.mxu0 0
  %139 = vmatpush1.bf16.msra.mxu0 0
  %140 = vmatprep.subr.bf16.mxu0 0
  %141 = vmatpush1.bf16.msra.mxu0 0
  %142 = vmatprep.subr.bf16.mxu0 0
  %143 = vmatpush1.bf16.msra.mxu0 0
  %144 = vmatprep.subr.bf16.mxu0 0
  %145 = vmatpush1.bf16.msra.mxu0 0
  %146 = vmatprep.subr.bf16.mxu0 0
  %147 = vmatpush1.bf16.msra.mxu0 0
  %148 = vmatprep.mubr.bf16.mxu0 0
  %149 = vmatmul.mubr.bf16.gmra.mrb[0].mxu0 %v114
  %v150 = vpop.f32.mrb[0].mxu0
  %v151 = vadd.f32 %v99, %v150
  %v152 = vpop.f32.mrb[0].mxu0
  %v153 = vpop.f32.mrb[0].mxu0
  %v154 = vadd.f32 %v99, %v153
  %v155 = vpop.f32.mrb[0].mxu0
  %156 = vdwg.mxu0
  %165 = vrot.lane.b32.xlu0 %v49, 32
  %v166 = vpop.permute.xlu0 %165
  %167 = vrot.lane.b32.xlu0 %v50, 32
  %v168 = vpop.permute.xlu0 %167
  %169 = vrot.lane.b32.xlu0 %v51, 32
  %v170 = vpop.permute.xlu0 %169
  %171 = vrot.lane.b32.xlu0 %v52, 32
  %v172 = vpop.permute.xlu0 %171
  %173 = vrot.lane.b32.xlu0 %v53, 32
  %v174 = vpop.permute.xlu0 %173
  %175 = vrot.lane.b32.xlu0 %v54, 32
  %v176 = vpop.permute.xlu0 %175
  %177 = vrot.lane.b32.xlu0 %v55, 32
  %v178 = vpop.permute.xlu0 %177
  %179 = vrot.lane.b32.xlu0 %v56, 32
  %v180 = vpop.permute.xlu0 %179
  %v189 = vmul.f32 %v151, %v166
  %v190 = vmul.f32 %v154, %v168
  %v191 = vmul.f32 %v151, %v170
  %v192 = vmul.f32 %v154, %v172
  %v193 = vmul.f32 %v151, %v174
  %v194 = vmul.f32 %v154, %v176
  %v195 = vmul.f32 %v151, %v178
  %v196 = vmul.f32 %v154, %v180
  %v197 = vpack.c.bf16 %v190, %v189
  %v198 = vpack.c.bf16 %v192, %v191
  %v199 = vpack.c.bf16 %v194, %v193
  %v200 = vpack.c.bf16 %v196, %v195
  %v201 = vpack.c.bf16 %v154, %v151
  %206 = vrot.lane.b32.xlu0 %v197, 96
  %v207 = vpop.permute.xlu0 %206
  %208 = vrot.lane.b32.xlu0 %v198, 96
  %v209 = vpop.permute.xlu0 %208
  %210 = vrot.lane.b32.xlu0 %v199, 96
  %v211 = vpop.permute.xlu0 %210
  %212 = vrot.lane.b32.xlu0 %v200, 96
  %v213 = vpop.permute.xlu0 %212
  %v215 = vsel %vm61, %v201, 0
  %v218 = vsel %vm61, %v207, 0
  %v221 = vsel %vm61, %v209, 0
  %v224 = vsel %vm61, %v211, 0
  %v227 = vsel %vm61, %v213, 0
  %229 = vmatprep.subr.bf16.mxu0 0
  %230 = vmatpush1.bf16.xpose.msra.mxu0 %v218
  %231 = vmatprep.subr.bf16.mxu0 0
  %232 = vmatpush1.bf16.xpose.msra.mxu0 %v221
  %233 = vmatprep.subr.bf16.mxu0 0
  %234 = vmatpush1.bf16.xpose.msra.mxu0 %v224
  %235 = vmatprep.subr.bf16.mxu0 0
  %236 = vmatpush1.bf16.xpose.msra.mxu0 %v227
  %237 = vmatprep.subr.bf16.mxu0 0
  %238 = vmatpush1.bf16.xpose.msra.mxu0 0
  %239 = vmatprep.subr.bf16.mxu0 0
  %240 = vmatpush1.bf16.xpose.msra.mxu0 0
  %241 = vmatprep.subr.bf16.mxu0 0
  %242 = vmatpush1.bf16.xpose.msra.mxu0 0
  %243 = vmatprep.subr.bf16.mxu0 0
  %244 = vmatpush1.bf16.xpose.msra.mxu0 0
  %245 = vmatprep.subr.bf16.mxu0 0
  %246 = vmatpush1.bf16.xpose.msra.mxu0 0
  %247 = vmatprep.subr.bf16.mxu0 0
  %248 = vmatpush1.bf16.xpose.msra.mxu0 0
  %249 = vmatprep.subr.bf16.mxu0 0
  %250 = vmatpush1.bf16.xpose.msra.mxu0 0
  %251 = vmatprep.subr.bf16.mxu0 0
  %252 = vmatpush1.bf16.xpose.msra.mxu0 0
  %253 = vmatprep.subr.bf16.mxu0 0
  %254 = vmatpush1.bf16.xpose.msra.mxu0 0
  %255 = vmatprep.subr.bf16.mxu0 0
  %256 = vmatpush1.bf16.xpose.msra.mxu0 0
  %257 = vmatprep.subr.bf16.mxu0 0
  %258 = vmatpush1.bf16.xpose.msra.mxu0 0
  %259 = vmatprep.subr.bf16.mxu0 0
  %260 = vmatpush1.bf16.xpose.msra.mxu0 0
  %261 = vmatprep.mubr.bf16.mxu0 0
  %262 = vmatmul.mubr.bf16.gmra.mrb[0].mxu0 %v215
  %v263 = vpop.f32.mrb[0].mxu0
  %v264 = vadd.f32 %v47, %v263
  %v265 = vpop.f32.mrb[0].mxu0
  %v266 = vpop.f32.mrb[0].mxu0
  %v267 = vadd.f32 %v48, %v266
  %v268 = vpop.f32.mrb[0].mxu0
  %269 = vdwg.mxu0
  %vm270 = vcmask 523264
  %v271 = vsel %vm270, %v264, -inf
  %272 = vmax.xlane.f32.xlu0 %v271
  %v273 = vpop.xlane.xlu0 %272
  %v274 = vsel %vm270, %v267, -inf
  %275 = vmax.xlane.f32.xlu0 %v274
  %v276 = vpop.xlane.xlu0 %275
  %v277 = vsub.f32 %v264, %v273
  %v278 = vsub.f32 %v267, %v276
  %v279 = vmul.f32 %v277, 1.442695
  %v280 = vpow.pop %v279
  %v281 = vmul.f32 %v278, 1.442695
  %v282 = vpow.pop %v281
  %v283 = vpack.c.bf16 %v282, %v280
  %284 = vrot.lane.b32.xlu0 %v49, 64
  %v285 = vpop.permute.xlu0 %284
  %286 = vrot.lane.b32.xlu0 %v50, 64
  %v287 = vpop.permute.xlu0 %286
  %288 = vrot.lane.b32.xlu0 %v51, 64
  %v289 = vpop.permute.xlu0 %288
  %290 = vrot.lane.b32.xlu0 %v52, 64
  %v291 = vpop.permute.xlu0 %290
  %292 = vrot.lane.b32.xlu0 %v53, 64
  %v293 = vpop.permute.xlu0 %292
  %294 = vrot.lane.b32.xlu0 %v54, 64
  %v295 = vpop.permute.xlu0 %294
  %296 = vrot.lane.b32.xlu0 %v55, 64
  %v297 = vpop.permute.xlu0 %296
  %298 = vrot.lane.b32.xlu0 %v56, 64
  %v299 = vpop.permute.xlu0 %298
  %v308 = vmul.f32 %v151, %v285
  %v309 = vmul.f32 %v154, %v287
  %v310 = vmul.f32 %v151, %v289
  %v311 = vmul.f32 %v154, %v291
  %v312 = vmul.f32 %v151, %v293
  %v313 = vmul.f32 %v154, %v295
  %v314 = vmul.f32 %v151, %v297
  %v315 = vmul.f32 %v154, %v299
  %v316 = vpack.c.bf16 %v309, %v308
  %v317 = vpack.c.bf16 %v311, %v310
  %v318 = vpack.c.bf16 %v313, %v312
  %v319 = vpack.c.bf16 %v315, %v314
  %324 = vrot.lane.b32.xlu0 %v316, 64
  %v325 = vpop.permute.xlu0 %324
  %326 = vrot.lane.b32.xlu0 %v317, 64
  %v327 = vpop.permute.xlu0 %326
  %328 = vrot.lane.b32.xlu0 %v318, 64
  %v329 = vpop.permute.xlu0 %328
  %330 = vrot.lane.b32.xlu0 %v319, 64
  %v331 = vpop.permute.xlu0 %330
  %v337 = vsel %vm270, %v283, 0
  %339 = vmatprep.subr.bf16.mxu0 0
  %340 = vmatpush1.bf16.msra.mxu0 %v325
  %341 = vmatprep.subr.bf16.mxu0 0
  %342 = vmatpush1.bf16.msra.mxu0 %v327
  %343 = vmatprep.subr.bf16.mxu0 0
  %344 = vmatpush1.bf16.msra.mxu0 %v329
  %345 = vmatprep.subr.bf16.mxu0 0
  %346 = vmatpush1.bf16.msra.mxu0 %v331
  %347 = vmatprep.subr.bf16.mxu0 0
  %348 = vmatpush1.bf16.msra.mxu0 0
  %349 = vmatprep.subr.bf16.mxu0 0
  %350 = vmatpush1.bf16.msra.mxu0 0
  %351 = vmatprep.subr.bf16.mxu0 0
  %352 = vmatpush1.bf16.msra.mxu0 0
  %353 = vmatprep.subr.bf16.mxu0 0
  %354 = vmatpush1.bf16.msra.mxu0 0
  %355 = vmatprep.subr.bf16.mxu0 0
  %356 = vmatpush1.bf16.msra.mxu0 0
  %357 = vmatprep.subr.bf16.mxu0 0
  %358 = vmatpush1.bf16.msra.mxu0 0
  %359 = vmatprep.subr.bf16.mxu0 0
  %360 = vmatpush1.bf16.msra.mxu0 0
  %361 = vmatprep.subr.bf16.mxu0 0
  %362 = vmatpush1.bf16.msra.mxu0 0
  %363 = vmatprep.subr.bf16.mxu0 0
  %364 = vmatpush1.bf16.msra.mxu0 0
  %365 = vmatprep.subr.bf16.mxu0 0
  %366 = vmatpush1.bf16.msra.mxu0 0
  %367 = vmatprep.subr.bf16.mxu0 0
  %368 = vmatpush1.bf16.msra.mxu0 0
  %369 = vmatprep.subr.bf16.mxu0 0
  %370 = vmatpush1.bf16.msra.mxu0 0
  %371 = vmatprep.mubr.bf16.mxu0 0
  %372 = vmatmul.mubr.bf16.gmra.mrb[0].mxu0 %v337
  %v373 = vpop.f32.mrb[0].mxu0
  %v374 = vadd.f32 0.0, %v373
  %v375 = vpop.f32.mrb[0].mxu0
  %v376 = vpop.f32.mrb[0].mxu0
  %v377 = vadd.f32 0.0, %v376
  %v378 = vpop.f32.mrb[0].mxu0
  %379 = vdwg.mxu0
  %380 = vmatprep.subr.bf16.mxu0 0
  %381 = vmatpush1.bf16.msra.mxu0 %v57
  %382 = vmatprep.subr.bf16.mxu0 0
  %383 = vmatpush1.bf16.msra.mxu0 %v58
  %384 = vmatprep.subr.bf16.mxu0 0
  %385 = vmatpush1.bf16.msra.mxu0 %v59
  %386 = vmatprep.subr.bf16.mxu0 0
  %387 = vmatpush1.bf16.msra.mxu0 %v60
  %388 = vmatprep.subr.bf16.mxu0 0
  %389 = vmatpush1.bf16.msra.mxu0 0
  %390 = vmatprep.subr.bf16.mxu0 0
  %391 = vmatpush1.bf16.msra.mxu0 0
  %392 = vmatprep.subr.bf16.mxu0 0
  %393 = vmatpush1.bf16.msra.mxu0 0
  %394 = vmatprep.subr.bf16.mxu0 0
  %395 = vmatpush1.bf16.msra.mxu0 0
  %396 = vmatprep.subr.bf16.mxu0 0
  %397 = vmatpush1.bf16.msra.mxu0 0
  %398 = vmatprep.subr.bf16.mxu0 0
  %399 = vmatpush1.bf16.msra.mxu0 0
  %400 = vmatprep.subr.bf16.mxu0 0
  %401 = vmatpush1.bf16.msra.mxu0 0
  %402 = vmatprep.subr.bf16.mxu0 0
  %403 = vmatpush1.bf16.msra.mxu0 0
  %404 = vmatprep.subr.bf16.mxu0 0
  %405 = vmatpush1.bf16.msra.mxu0 0
  %406 = vmatprep.subr.bf16.mxu0 0
  %407 = vmatpush1.bf16.msra.mxu0 0
  %408 = vmatprep.subr.bf16.mxu0 0
  %409 = vmatpush1.bf16.msra.mxu0 0
  %410 = vmatprep.subr.bf16.mxu0 0
  %411 = vmatpush1.bf16.msra.mxu0 0
  %412 = vmatprep.mubr.bf16.mxu0 0
  %413 = vmatmul.mubr.bf16.gmra.mrb[0].mxu0 %v337
  %v414 = vpop.f32.mrb[0].mxu0
  %v415 = vadd.f32 0.0, %v414
  %v416 = vpop.f32.mrb[0].mxu0
  %v417 = vpop.f32.mrb[0].mxu0
  %v418 = vadd.f32 0.0, %v417
  %v419 = vpop.f32.mrb[0].mxu0
  %420 = vdwg.mxu0
  %v421 = vrcp.pop %v415
  %v422 = vrcp.pop %v418
  %v423 = vmul.f32 %v374, %v421
  %v424 = vmul.f32 %v377, %v422
  %v425 = vpack.c.bf16 %v424, %v423
  %v426 = vld [vmem:[%s5] sm:$0xf]
  %v427 = vld [vmem:[%s5 + $0x4] sm:$0xf]
  %v428 = vld [vmem:[%s5 + $0x8] sm:$0xf]
  %v429 = vld [vmem:[%s5 + $0xc] sm:$0xf]
  %v430 = vld [vmem:[%s6] sm:$0x1]
  %v432 = vlaneseq
  %v433 = vshrl.u32 %v432, 7
  %v434 = vsub.s32 0, %v433
  %v435 = vrot.slane %v430, %v434
  %v441 = vunpack.c.l.b16 %v426
  %v442 = vunpack.c.l.b16 %v427
  %v443 = vunpack.c.l.b16 %v428
  %v444 = vunpack.c.l.b16 %v429
  %v445 = vpack.c.b16 %v442, %v441
  %v446 = vpack.c.b16 %v444, %v443
  %v450 = vsel %vm61, %v425, 0
  %452 = vmatprep.subr.bf16.mxu0 0
  %453 = vmatpush1.bf16.msra.mxu0 %v445
  %454 = vmatprep.subr.bf16.mxu0 0
  %455 = vmatpush1.bf16.msra.mxu0 %v446
  %456 = vmatprep.subr.bf16.mxu0 0
  %457 = vmatpush1.bf16.msra.mxu0 0
  %458 = vmatprep.subr.bf16.mxu0 0
  %459 = vmatpush1.bf16.msra.mxu0 0
  %460 = vmatprep.subr.bf16.mxu0 0
  %461 = vmatpush1.bf16.msra.mxu0 0
  %462 = vmatprep.subr.bf16.mxu0 0
  %463 = vmatpush1.bf16.msra.mxu0 0
  %464 = vmatprep.subr.bf16.mxu0 0
  %465 = vmatpush1.bf16.msra.mxu0 0
  %466 = vmatprep.subr.bf16.mxu0 0
  %467 = vmatpush1.bf16.msra.mxu0 0
  %468 = vmatprep.subr.bf16.mxu0 0
  %469 = vmatpush1.bf16.msra.mxu0 0
  %470 = vmatprep.subr.bf16.mxu0 0
  %471 = vmatpush1.bf16.msra.mxu0 0
  %472 = vmatprep.subr.bf16.mxu0 0
  %473 = vmatpush1.bf16.msra.mxu0 0
  %474 = vmatprep.subr.bf16.mxu0 0
  %475 = vmatpush1.bf16.msra.mxu0 0
  %476 = vmatprep.subr.bf16.mxu0 0
  %477 = vmatpush1.bf16.msra.mxu0 0
  %478 = vmatprep.subr.bf16.mxu0 0
  %479 = vmatpush1.bf16.msra.mxu0 0
  %480 = vmatprep.subr.bf16.mxu0 0
  %481 = vmatpush1.bf16.msra.mxu0 0
  %482 = vmatprep.subr.bf16.mxu0 0
  %483 = vmatpush1.bf16.msra.mxu0 0
  %484 = vmatprep.mubr.bf16.mxu0 0
  %485 = vmatmul.mubr.bf16.gmra.mrb[0].mxu0 %v450
  %v486 = vpop.f32.mrb[0].mxu0
  %v487 = vadd.f32 %v435, %v486
  %v488 = vpop.f32.mrb[0].mxu0
  %v489 = vpop.f32.mrb[0].mxu0
  %v490 = vadd.f32 %v435, %v489
  %v491 = vpop.f32.mrb[0].mxu0
  %492 = vdwg.mxu0
  %v493 = vadd.f32 %v45, %v487
  %v494 = vadd.f32 %v46, %v490
  %v495 = vsel %vm61, %v493, 0.0
  %496 = vadd.xlane.f32.xlu0 %v495
  %v497 = vpop.xlane.xlu0 %496
  %v498 = vsel %vm61, %v494, 0.0
  %499 = vadd.xlane.f32.xlu0 %v498
  %v500 = vpop.xlane.xlu0 %499
  %v501 = vmul.f32 %v497, %v68
  %v502 = vmul.f32 %v500, %v68
  %v503 = vsub.f32 %v493, %v501
  %v504 = vsub.f32 %v494, %v502
  %v505 = vmul.f32 %v503, %v503
  %v506 = vmul.f32 %v504, %v504
  %v507 = vsel %vm61, %v505, 0.0
  %508 = vadd.xlane.f32.xlu0 %v507
  %v509 = vpop.xlane.xlu0 %508
  %v510 = vsel %vm61, %v506, 0.0
  %511 = vadd.xlane.f32.xlu0 %v510
  %v512 = vpop.xlane.xlu0 %511
  %v513 = vmul.f32 %v509, %v68
  %v514 = vmul.f32 %v512, %v68
  %v515 = vadd.f32 %v513, 1e-05
  %v516 = vadd.f32 %v514, 1e-05
  %v517 = vrsqrt.pop %v515
  %v518 = vrsqrt.pop %v516
  %v519 = vmul.f32 %v503, %v517
  %v520 = vmul.f32 %v504, %v518
  %v521 = vpack.c.bf16 %v520, %v519
  %v522 = vld [vmem:[%s7] sm:$0xf]
  %v523 = vld [vmem:[%s7 + $0x4] sm:$0xf]
  %v524 = vld [vmem:[%s7 + $0x8] sm:$0xf]
  %v525 = vld [vmem:[%s7 + $0xc] sm:$0xf]
  %v526 = vld [vmem:[%s8] sm:$0x1]
  %v528 = vlaneseq
  %v529 = vshrl.u32 %v528, 7
  %v530 = vsub.s32 0, %v529
  %v531 = vrot.slane %v526, %v530
  %v537 = vunpack.c.l.b16 %v522
  %v538 = vunpack.c.l.b16 %v523
  %v539 = vunpack.c.l.b16 %v524
  %v540 = vunpack.c.l.b16 %v525
  %v541 = vpack.c.b16 %v538, %v537
  %v542 = vpack.c.b16 %v540, %v539
  %v546 = vsel %vm61, %v521, 0
  %548 = vmatprep.subr.bf16.mxu0 0
  %549 = vmatpush1.bf16.msra.mxu0 %v541
  %550 = vmatprep.subr.bf16.mxu0 0
  %551 = vmatpush1.bf16.msra.mxu0 %v542
  %552 = vmatprep.subr.bf16.mxu0 0
  %553 = vmatpush1.bf16.msra.mxu0 0
  %554 = vmatprep.subr.bf16.mxu0 0
  %555 = vmatpush1.bf16.msra.mxu0 0
  %556 = vmatprep.subr.bf16.mxu0 0
  %557 = vmatpush1.bf16.msra.mxu0 0
  %558 = vmatprep.subr.bf16.mxu0 0
  %559 = vmatpush1.bf16.msra.mxu0 0
  %560 = vmatprep.subr.bf16.mxu0 0
  %561 = vmatpush1.bf16.msra.mxu0 0
  %562 = vmatprep.subr.bf16.mxu0 0
  %563 = vmatpush1.bf16.msra.mxu0 0
  %564 = vmatprep.subr.bf16.mxu0 0
  %565 = vmatpush1.bf16.msra.mxu0 0
  %566 = vmatprep.subr.bf16.mxu0 0
  %567 = vmatpush1.bf16.msra.mxu0 0
  %568 = vmatprep.subr.bf16.mxu0 0
  %569 = vmatpush1.bf16.msra.mxu0 0
  %570 = vmatprep.subr.bf16.mxu0 0
  %571 = vmatpush1.bf16.msra.mxu0 0
  %572 = vmatprep.subr.bf16.mxu0 0
  %573 = vmatpush1.bf16.msra.mxu0 0
  %574 = vmatprep.subr.bf16.mxu0 0
  %575 = vmatpush1.bf16.msra.mxu0 0
  %576 = vmatprep.subr.bf16.mxu0 0
  %577 = vmatpush1.bf16.msra.mxu0 0
  %578 = vmatprep.subr.bf16.mxu0 0
  %579 = vmatpush1.bf16.msra.mxu0 0
  %580 = vmatprep.mubr.bf16.mxu0 0
  %581 = vmatmul.mubr.bf16.gmra.mrb[0].mxu0 %v546
  %v582 = vpop.f32.mrb[0].mxu0
  %v583 = vadd.f32 %v531, %v582
  %v584 = vpop.f32.mrb[0].mxu0
  %v585 = vpop.f32.mrb[0].mxu0
  %v586 = vadd.f32 %v531, %v585
  %v587 = vpop.f32.mrb[0].mxu0
  %588 = vdwg.mxu0
  %v589 = vmax.f32 %v583, 0.0
  %v590 = vmax.f32 %v586, 0.0
  %v591 = vpack.c.bf16 %v590, %v589
  %v592 = vld [vmem:[%s9] sm:$0xf]
  %v593 = vld [vmem:[%s9 + $0x4] sm:$0xf]
  %v594 = vld [vmem:[%s9 + $0x8] sm:$0xf]
  %v595 = vld [vmem:[%s9 + $0xc] sm:$0xf]
  %v596 = vld [vmem:[%s9 + $0x10] sm:$0xf]
  %v597 = vld [vmem:[%s9 + $0x14] sm:$0xf]
  %v598 = vld [vmem:[%s9 + $0x18] sm:$0xf]
  %v599 = vld [vmem:[%s9 + $0x1c] sm:$0xf]
  %v600 = vld [vmem:[%s9 + $0x20] sm:$0xf]
  %v601 = vld [vmem:[%s9 + $0x24] sm:$0xf]
  %v602 = vld [vmem:[%s9 + $0x28] sm:$0xf]
  %v603 = vld [vmem:[%s9 + $0x2c] sm:$0xf]
  %v604 = vld [vmem:[%s9 + $0x30] sm:$0xf]
  %v605 = vld [vmem:[%s9 + $0x34] sm:$0xf]
  %v606 = vld [vmem:[%s9 + $0x38] sm:$0xf]
  %v607 = vld [vmem:[%s9 + $0x3c] sm:$0xf]
  %v608 = vld [vmem:[%s10] sm:$0x1]
  %v610 = vlaneseq
  %v611 = vshrl.u32 %v610, 7
  %v612 = vsub.s32 0, %v611
  %v613 = vrot.slane %v608, %v612
  %v631 = vunpack.c.l.b16 %v592
  %v632 = vunpack.c.l.b16 %v593
  %v633 = vunpack.c.l.b16 %v594
  %v634 = vunpack.c.l.b16 %v595
  %v635 = vunpack.c.l.b16 %v596
  %v636 = vunpack.c.l.b16 %v597
  %v637 = vunpack.c.l.b16 %v598
  %v638 = vunpack.c.l.b16 %v599
  %v639 = vunpack.c.l.b16 %v600
  %v640 = vunpack.c.l.b16 %v601
  %v641 = vunpack.c.l.b16 %v602
  %v642 = vunpack.c.l.b16 %v603
  %v643 = vunpack.c.l.b16 %v604
  %v644 = vunpack.c.l.b16 %v605
  %v645 = vunpack.c.l.b16 %v606
  %v646 = vunpack.c.l.b16 %v607
  %v647 = vpack.c.b16 %v632, %v631
  %v648 = vpack.c.b16 %v634, %v633
  %v649 = vpack.c.b16 %v636, %v635
  %v650 = vpack.c.b16 %v638, %v637
  %v651 = vpack.c.b16 %v640, %v639
  %v652 = vpack.c.b16 %v642, %v641
  %v653 = vpack.c.b16 %v644, %v643
  %v654 = vpack.c.b16 %v646, %v645
  %663 = vmatprep.subr.bf16.mxu0 0
  %664 = vmatpush1.bf16.msra.mxu0 %v647
  %665 = vmatprep.subr.bf16.mxu0 0
  %666 = vmatpush1.bf16.msra.mxu0 %v648
  %667 = vmatprep.subr.bf16.mxu0 0
  %668 = vmatpush1.bf16.msra.mxu0 %v649
  %669 = vmatprep.subr.bf16.mxu0 0
  %670 = vmatpush1.bf16.msra.mxu0 %v650
  %671 = vmatprep.subr.bf16.mxu0 0
  %672 = vmatpush1.bf16.msra.mxu0 %v651
  %673 = vmatprep.subr.bf16.mxu0 0
  %674 = vmatpush1.bf16.msra.mxu0 %v652
  %675 = vmatprep.subr.bf16.mxu0 0
  %676 = vmatpush1.bf16.msra.mxu0 %v653
  %677 = vmatprep.subr.bf16.mxu0 0
  %678 = vmatpush1.bf16.msra.mxu0 %v654
  %679 = vmatprep.subr.bf16.mxu0 0
  %680 = vmatpush1.bf16.msra.mxu0 0
  %681 = vmatprep.subr.bf16.mxu0 0
  %682 = vmatpush1.bf16.msra.mxu0 0
  %683 = vmatprep.subr.bf16.mxu0 0
  %684 = vmatpush1.bf16.msra.mxu0 0
  %685 = vmatprep.subr.bf16.mxu0 0
  %686 = vmatpush1.bf16.msra.mxu0 0
  %687 = vmatprep.subr.bf16.mxu0 0
  %688 = vmatpush1.bf16.msra.mxu0 0
  %689 = vmatprep.subr.bf16.mxu0 0
  %690 = vmatpush1.bf16.msra.mxu0 0
  %691 = vmatprep.subr.bf16.mxu0 0
  %692 = vmatpush1.bf16.msra.mxu0 0
  %693 = vmatprep.subr.bf16.mxu0 0
  %694 = vmatpush1.bf16.msra.mxu0 0
  %695 = vmatprep.mubr.bf16.mxu0 0
  %696 = vmatmul.mubr.bf16.gmra.mrb[0].mxu0 %v591
  %v697 = vpop.f32.mrb[0].mxu0
  %v698 = vadd.f32 %v613, %v697
  %v699 = vpop.f32.mrb[0].mxu0
  %v700 = vpop.f32.mrb[0].mxu0
  %v701 = vadd.f32 %v613, %v700
  %v702 = vpop.f32.mrb[0].mxu0
  %703 = vdwg.mxu0
  %v704 = vadd.f32 %v493, %v698
  %v705 = vadd.f32 %v494, %v701
  %v706 = vsel %vm61, %v704, 0.0
  %707 = vadd.xlane.f32.xlu0 %v706
  %v708 = vpop.xlane.xlu0 %707
  %v709 = vsel %vm61, %v705, 0.0
  %710 = vadd.xlane.f32.xlu0 %v709
  %v711 = vpop.xlane.xlu0 %710
  %v712 = vmul.f32 %v708, %v68
  %v713 = vmul.f32 %v711, %v68
  %v714 = vsub.f32 %v704, %v712
  %v715 = vsub.f32 %v705, %v713
  %v716 = vmul.f32 %v714, %v714
  %v717 = vmul.f32 %v715, %v715
  %v718 = vsel %vm61, %v716, 0.0
  %719 = vadd.xlane.f32.xlu0 %v718
  %v720 = vpop.xlane.xlu0 %719
  %v721 = vsel %vm61, %v717, 0.0
  %722 = vadd.xlane.f32.xlu0 %v721
  %v723 = vpop.xlane.xlu0 %722
  %v724 = vmul.f32 %v720, %v68
  %v725 = vmul.f32 %v723, %v68
  %v726 = vadd.f32 %v724, 1e-05
  %v727 = vadd.f32 %v725, 1e-05
  %v728 = vrsqrt.pop %v726
  %v729 = vrsqrt.pop %v727
  %v730 = vmul.f32 %v714, %v728
  %v731 = vmul.f32 %v715, %v729
  %v732 = vpack.c.bf16 %v731, %v730
  %s733 = scalar_lea.vmem %s3, 16
  %v734 = vld [vmem:[%s733] sm:$0xf]
  %v735 = vld [vmem:[%s733 + $0x4] sm:$0xf]
  %v736 = vld [vmem:[%s733 + $0x8] sm:$0xf]
  %v737 = vld [vmem:[%s733 + $0xc] sm:$0xf]
  %s738 = scalar_lea.vmem %s4, 1
  %v739 = vld [vmem:[%s738] sm:$0x1]
  %v741 = vlaneseq
  %v742 = vshrl.u32 %v741, 7
  %v743 = vsub.s32 0, %v742
  %v744 = vrot.slane %v739, %v743
  %v750 = vunpack.c.l.b16 %v734
  %v751 = vunpack.c.l.b16 %v735
  %v752 = vunpack.c.l.b16 %v736
  %v753 = vunpack.c.l.b16 %v737
  %v754 = vpack.c.b16 %v751, %v750
  %v755 = vpack.c.b16 %v753, %v752
  %v759 = vsel %vm61, %v732, 0
  %761 = vmatprep.subr.bf16.mxu0 0
  %762 = vmatpush1.bf16.msra.mxu0 %v754
  %763 = vmatprep.subr.bf16.mxu0 0
  %764 = vmatpush1.bf16.msra.mxu0 %v755
  %765 = vmatprep.subr.bf16.mxu0 0
  %766 = vmatpush1.bf16.msra.mxu0 0
  %767 = vmatprep.subr.bf16.mxu0 0
  %768 = vmatpush1.bf16.msra.mxu0 0
  %769 = vmatprep.subr.bf16.mxu0 0
  %770 = vmatpush1.bf16.msra.mxu0 0
  %771 = vmatprep.subr.bf16.mxu0 0
  %772 = vmatpush1.bf16.msra.mxu0 0
  %773 = vmatprep.subr.bf16.mxu0 0
  %774 = vmatpush1.bf16.msra.mxu0 0
  %775 = vmatprep.subr.bf16.mxu0 0
  %776 = vmatpush1.bf16.msra.mxu0 0
  %777 = vmatprep.subr.bf16.mxu0 0
  %778 = vmatpush1.bf16.msra.mxu0 0
  %779 = vmatprep.subr.bf16.mxu0 0
  %780 = vmatpush1.bf16.msra.mxu0 0
  %781 = vmatprep.subr.bf16.mxu0 0
  %782 = vmatpush1.bf16.msra.mxu0 0
  %783 = vmatprep.subr.bf16.mxu0 0
  %784 = vmatpush1.bf16.msra.mxu0 0
  %785 = vmatprep.subr.bf16.mxu0 0
  %786 = vmatpush1.bf16.msra.mxu0 0
  %787 = vmatprep.subr.bf16.mxu0 0
  %788 = vmatpush1.bf16.msra.mxu0 0
  %789 = vmatprep.subr.bf16.mxu0 0
  %790 = vmatpush1.bf16.msra.mxu0 0
  %791 = vmatprep.subr.bf16.mxu0 0
  %792 = vmatpush1.bf16.msra.mxu0 0
  %793 = vmatprep.mubr.bf16.mxu0 0
  %794 = vmatmul.mubr.bf16.gmra.mrb[0].mxu0 %v759
  %v795 = vpop.f32.mrb[0].mxu0
  %v796 = vadd.f32 %v744, %v795
  %v797 = vpop.f32.mrb[0].mxu0
  %v798 = vpop.f32.mrb[0].mxu0
  %v799 = vadd.f32 %v744, %v798
  %v800 = vpop.f32.mrb[0].mxu0
  %801 = vdwg.mxu0
  %v802 = vmul.f32 %v796, %v166
  %v803 = vmul.f32 %v799, %v168
  %v804 = vmul.f32 %v796, %v170
  %v805 = vmul.f32 %v799, %v172
  %v806 = vmul.f32 %v796, %v174
  %v807 = vmul.f32 %v799, %v176
  %v808 = vmul.f32 %v796, %v178
  %v809 = vmul.f32 %v799, %v180
  %v810 = vpack.c.bf16 %v803, %v802
  %v811 = vpack.c.bf16 %v805, %v804
  %v812 = vpack.c.bf16 %v807, %v806
  %v813 = vpack.c.bf16 %v809, %v808
  %v814 = vpack.c.bf16 %v799, %v796
  %819 = vrot.lane.b32.xlu0 %v810, 96
  %v820 = vpop.permute.xlu0 %819
  %821 = vrot.lane.b32.xlu0 %v811, 96
  %v822 = vpop.permute.xlu0 %821
  %823 = vrot.lane.b32.xlu0 %v812, 96
  %v824 = vpop.permute.xlu0 %823
  %825 = vrot.lane.b32.xlu0 %v813, 96
  %v826 = vpop.permute.xlu0 %825
  %v828 = vsel %vm61, %v814, 0
  %v831 = vsel %vm61, %v820, 0
  %v834 = vsel %vm61, %v822, 0
  %v837 = vsel %vm61, %v824, 0
  %v840 = vsel %vm61, %v826, 0
  %842 = vmatprep.subr.bf16.mxu0 0
  %843 = vmatpush1.bf16.xpose.msra.mxu0 %v831
  %844 = vmatprep.subr.bf16.mxu0 0
  %845 = vmatpush1.bf16.xpose.msra.mxu0 %v834
  %846 = vmatprep.subr.bf16.mxu0 0
  %847 = vmatpush1.bf16.xpose.msra.mxu0 %v837
  %848 = vmatprep.subr.bf16.mxu0 0
  %849 = vmatpush1.bf16.xpose.msra.mxu0 %v840
  %850 = vmatprep.subr.bf16.mxu0 0
  %851 = vmatpush1.bf16.xpose.msra.mxu0 0
  %852 = vmatprep.subr.bf16.mxu0 0
  %853 = vmatpush1.bf16.xpose.msra.mxu0 0
  %854 = vmatprep.subr.bf16.mxu0 0
  %855 = vmatpush1.bf16.xpose.msra.mxu0 0
  %856 = vmatprep.subr.bf16.mxu0 0
  %857 = vmatpush1.bf16.xpose.msra.mxu0 0
  %858 = vmatprep.subr.bf16.mxu0 0
  %859 = vmatpush1.bf16.xpose.msra.mxu0 0
  %860 = vmatprep.subr.bf16.mxu0 0
  %861 = vmatpush1.bf16.xpose.msra.mxu0 0
  %862 = vmatprep.subr.bf16.mxu0 0
  %863 = vmatpush1.bf16.xpose.msra.mxu0 0
  %864 = vmatprep.subr.bf16.mxu0 0
  %865 = vmatpush1.bf16.xpose.msra.mxu0 0
  %866 = vmatprep.subr.bf16.mxu0 0
  %867 = vmatpush1.bf16.xpose.msra.mxu0 0
  %868 = vmatprep.subr.bf16.mxu0 0
  %869 = vmatpush1.bf16.xpose.msra.mxu0 0
  %870 = vmatprep.subr.bf16.mxu0 0
  %871 = vmatpush1.bf16.xpose.msra.mxu0 0
  %872 = vmatprep.subr.bf16.mxu0 0
  %873 = vmatpush1.bf16.xpose.msra.mxu0 0
  %874 = vmatprep.mubr.bf16.mxu0 0
  %875 = vmatmul.mubr.bf16.gmra.mrb[0].mxu0 %v828
  %v876 = vpop.f32.mrb[0].mxu0
  %v877 = vadd.f32 %v47, %v876
  %v878 = vpop.f32.mrb[0].mxu0
  %v879 = vpop.f32.mrb[0].mxu0
  %v880 = vadd.f32 %v48, %v879
  %v881 = vpop.f32.mrb[0].mxu0
  %882 = vdwg.mxu0
  %v883 = vsel %vm270, %v877, -inf
  %884 = vmax.xlane.f32.xlu0 %v883
  %v885 = vpop.xlane.xlu0 %884
  %v886 = vsel %vm270, %v880, -inf
  %887 = vmax.xlane.f32.xlu0 %v886
  %v888 = vpop.xlane.xlu0 %887
  %v889 = vsub.f32 %v877, %v885
  %v890 = vsub.f32 %v880, %v888
  %v891 = vmul.f32 %v889, 1.442695
  %v892 = vpow.pop %v891
  %v893 = vmul.f32 %v890, 1.442695
  %v894 = vpow.pop %v893
  %v895 = vpack.c.bf16 %v894, %v892
  %v896 = vmul.f32 %v796, %v285
  %v897 = vmul.f32 %v799, %v287
  %v898 = vmul.f32 %v796, %v289
  %v899 = vmul.f32 %v799, %v291
  %v900 = vmul.f32 %v796, %v293
  %v901 = vmul.f32 %v799, %v295
  %v902 = vmul.f32 %v796, %v297
  %v903 = vmul.f32 %v799, %v299
  %v904 = vpack.c.bf16 %v897, %v896
  %v905 = vpack.c.bf16 %v899, %v898
  %v906 = vpack.c.bf16 %v901, %v900
  %v907 = vpack.c.bf16 %v903, %v902
  %912 = vrot.lane.b32.xlu0 %v904, 64
  %v913 = vpop.permute.xlu0 %912
  %914 = vrot.lane.b32.xlu0 %v905, 64
  %v915 = vpop.permute.xlu0 %914
  %916 = vrot.lane.b32.xlu0 %v906, 64
  %v917 = vpop.permute.xlu0 %916
  %918 = vrot.lane.b32.xlu0 %v907, 64
  %v919 = vpop.permute.xlu0 %918
  %v925 = vsel %vm270, %v895, 0
  %927 = vmatprep.subr.bf16.mxu0 0
  %928 = vmatpush1.bf16.msra.mxu0 %v913
  %929 = vmatprep.subr.bf16.mxu0 0
  %930 = vmatpush1.bf16.msra.mxu0 %v915
  %931 = vmatprep.subr.bf16.mxu0 0
  %932 = vmatpush1.bf16.msra.mxu0 %v917
  %933 = vmatprep.subr.bf16.mxu0 0
  %934 = vmatpush1.bf16.msra.mxu0 %v919
  %935 = vmatprep.subr.bf16.mxu0 0
  %936 = vmatpush1.bf16.msra.mxu0 0
  %937 = vmatprep.subr.bf16.mxu0 0
  %938 = vmatpush1.bf16.msra.mxu0 0
  %939 = vmatprep.subr.bf16.mxu0 0
  %940 = vmatpush1.bf16.msra.mxu0 0
  %941 = vmatprep.subr.bf16.mxu0 0
  %942 = vmatpush1.bf16.msra.mxu0 0
  %943 = vmatprep.subr.bf16.mxu0 0
  %944 = vmatpush1.bf16.msra.mxu0 0
  %945 = vmatprep.subr.bf16.mxu0 0
  %946 = vmatpush1.bf16.msra.mxu0 0
  %947 = vmatprep.subr.bf16.mxu0 0
  %948 = vmatpush1.bf16.msra.mxu0 0
  %949 = vmatprep.subr.bf16.mxu0 0
  %950 = vmatpush1.bf16.msra.mxu0 0
  %951 = vmatprep.subr.bf16.mxu0 0
  %952 = vmatpush1.bf16.msra.mxu0 0
  %953 = vmatprep.subr.bf16.mxu0 0
  %954 = vmatpush1.bf16.msra.mxu0 0
  %955 = vmatprep.subr.bf16.mxu0 0
  %956 = vmatpush1.bf16.msra.mxu0 0
  %957 = vmatprep.subr.bf16.mxu0 0
  %958 = vmatpush1.bf16.msra.mxu0 0
  %959 = vmatprep.mubr.bf16.mxu0 0
  %960 = vmatmul.mubr.bf16.gmra.mrb[0].mxu0 %v925
  %v961 = vpop.f32.mrb[0].mxu0
  %v962 = vadd.f32 0.0, %v961
  %v963 = vpop.f32.mrb[0].mxu0
  %v964 = vpop.f32.mrb[0].mxu0
  %v965 = vadd.f32 0.0, %v964
  %v966 = vpop.f32.mrb[0].mxu0
  %967 = vdwg.mxu0
  %968 = vmatprep.subr.bf16.mxu0 0
  %969 = vmatpush1.bf16.msra.mxu0 %v57
  %970 = vmatprep.subr.bf16.mxu0 0
  %971 = vmatpush1.bf16.msra.mxu0 %v58
  %972 = vmatprep.subr.bf16.mxu0 0
  %973 = vmatpush1.bf16.msra.mxu0 %v59
  %974 = vmatprep.subr.bf16.mxu0 0
  %975 = vmatpush1.bf16.msra.mxu0 %v60
  %976 = vmatprep.subr.bf16.mxu0 0
  %977 = vmatpush1.bf16.msra.mxu0 0
  %978 = vmatprep.subr.bf16.mxu0 0
  %979 = vmatpush1.bf16.msra.mxu0 0
  %980 = vmatprep.subr.bf16.mxu0 0
  %981 = vmatpush1.bf16.msra.mxu0 0
  %982 = vmatprep.subr.bf16.mxu0 0
  %983 = vmatpush1.bf16.msra.mxu0 0
  %984 = vmatprep.subr.bf16.mxu0 0
  %985 = vmatpush1.bf16.msra.mxu0 0
  %986 = vmatprep.subr.bf16.mxu0 0
  %987 = vmatpush1.bf16.msra.mxu0 0
  %988 = vmatprep.subr.bf16.mxu0 0
  %989 = vmatpush1.bf16.msra.mxu0 0
  %990 = vmatprep.subr.bf16.mxu0 0
  %991 = vmatpush1.bf16.msra.mxu0 0
  %992 = vmatprep.subr.bf16.mxu0 0
  %993 = vmatpush1.bf16.msra.mxu0 0
  %994 = vmatprep.subr.bf16.mxu0 0
  %995 = vmatpush1.bf16.msra.mxu0 0
  %996 = vmatprep.subr.bf16.mxu0 0
  %997 = vmatpush1.bf16.msra.mxu0 0
  %998 = vmatprep.subr.bf16.mxu0 0
  %999 = vmatpush1.bf16.msra.mxu0 0
  %1000 = vmatprep.mubr.bf16.mxu0 0
  %1001 = vmatmul.mubr.bf16.gmra.mrb[0].mxu0 %v925
  %v1002 = vpop.f32.mrb[0].mxu0
  %v1003 = vadd.f32 0.0, %v1002
  %v1004 = vpop.f32.mrb[0].mxu0
  %v1005 = vpop.f32.mrb[0].mxu0
  %v1006 = vadd.f32 0.0, %v1005
  %v1007 = vpop.f32.mrb[0].mxu0
  %1008 = vdwg.mxu0
  %v1009 = vrcp.pop %v1003
  %v1010 = vrcp.pop %v1006
  %v1011 = vmul.f32 %v962, %v1009
  %v1012 = vmul.f32 %v965, %v1010
  %v1013 = vpack.c.bf16 %v1012, %v1011
  %s1014 = scalar_lea.vmem %s5, 16
  %v1015 = vld [vmem:[%s1014] sm:$0xf]
  %v1016 = vld [vmem:[%s1014 + $0x4] sm:$0xf]
  %v1017 = vld [vmem:[%s1014 + $0x8] sm:$0xf]
  %v1018 = vld [vmem:[%s1014 + $0xc] sm:$0xf]
  %s1019 = scalar_lea.vmem %s6, 1
  %v1020 = vld [vmem:[%s1019] sm:$0x1]
  %v1022 = vlaneseq
  %v1023 = vshrl.u32 %v1022, 7
  %v1024 = vsub.s32 0, %v1023
  %v1025 = vrot.slane %v1020, %v1024
  %v1031 = vunpack.c.l.b16 %v1015
  %v1032 = vunpack.c.l.b16 %v1016
  %v1033 = vunpack.c.l.b16 %v1017
  %v1034 = vunpack.c.l.b16 %v1018
  %v1035 = vpack.c.b16 %v1032, %v1031
  %v1036 = vpack.c.b16 %v1034, %v1033
  %v1040 = vsel %vm61, %v1013, 0
  %1042 = vmatprep.subr.bf16.mxu0 0
  %1043 = vmatpush1.bf16.msra.mxu0 %v1035
  %1044 = vmatprep.subr.bf16.mxu0 0
  %1045 = vmatpush1.bf16.msra.mxu0 %v1036
  %1046 = vmatprep.subr.bf16.mxu0 0
  %1047 = vmatpush1.bf16.msra.mxu0 0
  %1048 = vmatprep.subr.bf16.mxu0 0
  %1049 = vmatpush1.bf16.msra.mxu0 0
  %1050 = vmatprep.subr.bf16.mxu0 0
  %1051 = vmatpush1.bf16.msra.mxu0 0
  %1052 = vmatprep.subr.bf16.mxu0 0
  %1053 = vmatpush1.bf16.msra.mxu0 0
  %1054 = vmatprep.subr.bf16.mxu0 0
  %1055 = vmatpush1.bf16.msra.mxu0 0
  %1056 = vmatprep.subr.bf16.mxu0 0
  %1057 = vmatpush1.bf16.msra.mxu0 0
  %1058 = vmatprep.subr.bf16.mxu0 0
  %1059 = vmatpush1.bf16.msra.mxu0 0
  %1060 = vmatprep.subr.bf16.mxu0 0
  %1061 = vmatpush1.bf16.msra.mxu0 0
  %1062 = vmatprep.subr.bf16.mxu0 0
  %1063 = vmatpush1.bf16.msra.mxu0 0
  %1064 = vmatprep.subr.bf16.mxu0 0
  %1065 = vmatpush1.bf16.msra.mxu0 0
  %1066 = vmatprep.subr.bf16.mxu0 0
  %1067 = vmatpush1.bf16.msra.mxu0 0
  %1068 = vmatprep.subr.bf16.mxu0 0
  %1069 = vmatpush1.bf16.msra.mxu0 0
  %1070 = vmatprep.subr.bf16.mxu0 0
  %1071 = vmatpush1.bf16.msra.mxu0 0
  %1072 = vmatprep.subr.bf16.mxu0 0
  %1073 = vmatpush1.bf16.msra.mxu0 0
  %1074 = vmatprep.mubr.bf16.mxu0 0
  %1075 = vmatmul.mubr.bf16.gmra.mrb[0].mxu0 %v1040
  %v1076 = vpop.f32.mrb[0].mxu0
  %v1077 = vadd.f32 %v1025, %v1076
  %v1078 = vpop.f32.mrb[0].mxu0
  %v1079 = vpop.f32.mrb[0].mxu0
  %v1080 = vadd.f32 %v1025, %v1079
  %v1081 = vpop.f32.mrb[0].mxu0
  %1082 = vdwg.mxu0
  %v1083 = vadd.f32 %v704, %v1077
  %v1084 = vadd.f32 %v705, %v1080
  %v1085 = vsel %vm61, %v1083, 0.0
  %1086 = vadd.xlane.f32.xlu0 %v1085
  %v1087 = vpop.xlane.xlu0 %1086
  %v1088 = vsel %vm61, %v1084, 0.0
  %1089 = vadd.xlane.f32.xlu0 %v1088
  %v1090 = vpop.xlane.xlu0 %1089
  %v1091 = vmul.f32 %v1087, %v68
  %v1092 = vmul.f32 %v1090, %v68
  %v1093 = vsub.f32 %v1083, %v1091
  %v1094 = vsub.f32 %v1084, %v1092
  %v1095 = vmul.f32 %v1093, %v1093
  %v1096 = vmul.f32 %v1094, %v1094
  %v1097 = vsel %vm61, %v1095, 0.0
  %1098 = vadd.xlane.f32.xlu0 %v1097
  %v1099 = vpop.xlane.xlu0 %1098
  %v1100 = vsel %vm61, %v1096, 0.0
  %1101 = vadd.xlane.f32.xlu0 %v1100
  %v1102 = vpop.xlane.xlu0 %1101
  %v1103 = vmul.f32 %v1099, %v68
  %v1104 = vmul.f32 %v1102, %v68
  %v1105 = vadd.f32 %v1103, 1e-05
  %v1106 = vadd.f32 %v1104, 1e-05
  %v1107 = vrsqrt.pop %v1105
  %v1108 = vrsqrt.pop %v1106
  %v1109 = vmul.f32 %v1093, %v1107
  %v1110 = vmul.f32 %v1094, %v1108
  %v1111 = vpack.c.bf16 %v1110, %v1109
  %s1112 = scalar_lea.vmem %s7, 16
  %v1113 = vld [vmem:[%s1112] sm:$0xf]
  %v1114 = vld [vmem:[%s1112 + $0x4] sm:$0xf]
  %v1115 = vld [vmem:[%s1112 + $0x8] sm:$0xf]
  %v1116 = vld [vmem:[%s1112 + $0xc] sm:$0xf]
  %s1117 = scalar_lea.vmem %s8, 1
  %v1118 = vld [vmem:[%s1117] sm:$0x1]
  %v1120 = vlaneseq
  %v1121 = vshrl.u32 %v1120, 7
  %v1122 = vsub.s32 0, %v1121
  %v1123 = vrot.slane %v1118, %v1122
  %v1129 = vunpack.c.l.b16 %v1113
  %v1130 = vunpack.c.l.b16 %v1114
  %v1131 = vunpack.c.l.b16 %v1115
  %v1132 = vunpack.c.l.b16 %v1116
  %v1133 = vpack.c.b16 %v1130, %v1129
  %v1134 = vpack.c.b16 %v1132, %v1131
  %v1138 = vsel %vm61, %v1111, 0
  %1140 = vmatprep.subr.bf16.mxu0 0
  %1141 = vmatpush1.bf16.msra.mxu0 %v1133
  %1142 = vmatprep.subr.bf16.mxu0 0
  %1143 = vmatpush1.bf16.msra.mxu0 %v1134
  %1144 = vmatprep.subr.bf16.mxu0 0
  %1145 = vmatpush1.bf16.msra.mxu0 0
  %1146 = vmatprep.subr.bf16.mxu0 0
  %1147 = vmatpush1.bf16.msra.mxu0 0
  %1148 = vmatprep.subr.bf16.mxu0 0
  %1149 = vmatpush1.bf16.msra.mxu0 0
  %1150 = vmatprep.subr.bf16.mxu0 0
  %1151 = vmatpush1.bf16.msra.mxu0 0
  %1152 = vmatprep.subr.bf16.mxu0 0
  %1153 = vmatpush1.bf16.msra.mxu0 0
  %1154 = vmatprep.subr.bf16.mxu0 0
  %1155 = vmatpush1.bf16.msra.mxu0 0
  %1156 = vmatprep.subr.bf16.mxu0 0
  %1157 = vmatpush1.bf16.msra.mxu0 0
  %1158 = vmatprep.subr.bf16.mxu0 0
  %1159 = vmatpush1.bf16.msra.mxu0 0
  %1160 = vmatprep.subr.bf16.mxu0 0
  %1161 = vmatpush1.bf16.msra.mxu0 0
  %1162 = vmatprep.subr.bf16.mxu0 0
  %1163 = vmatpush1.bf16.msra.mxu0 0
  %1164 = vmatprep.subr.bf16.mxu0 0
  %1165 = vmatpush1.bf16.msra.mxu0 0
  %1166 = vmatprep.subr.bf16.mxu0 0
  %1167 = vmatpush1.bf16.msra.mxu0 0
  %1168 = vmatprep.subr.bf16.mxu0 0
  %1169 = vmatpush1.bf16.msra.mxu0 0
  %1170 = vmatprep.subr.bf16.mxu0 0
  %1171 = vmatpush1.bf16.msra.mxu0 0
  %1172 = vmatprep.mubr.bf16.mxu0 0
  %1173 = vmatmul.mubr.bf16.gmra.mrb[0].mxu0 %v1138
  %v1174 = vpop.f32.mrb[0].mxu0
  %v1175 = vadd.f32 %v1123, %v1174
  %v1176 = vpop.f32.mrb[0].mxu0
  %v1177 = vpop.f32.mrb[0].mxu0
  %v1178 = vadd.f32 %v1123, %v1177
  %v1179 = vpop.f32.mrb[0].mxu0
  %1180 = vdwg.mxu0
  %v1181 = vmax.f32 %v1175, 0.0
  %v1182 = vmax.f32 %v1178, 0.0
  %v1183 = vpack.c.bf16 %v1182, %v1181
  %s1184 = scalar_lea.vmem %s9, 64
  %v1185 = vld [vmem:[%s1184] sm:$0xf]
  %v1186 = vld [vmem:[%s1184 + $0x4] sm:$0xf]
  %v1187 = vld [vmem:[%s1184 + $0x8] sm:$0xf]
  %v1188 = vld [vmem:[%s1184 + $0xc] sm:$0xf]
  %v1189 = vld [vmem:[%s1184 + $0x10] sm:$0xf]
  %v1190 = vld [vmem:[%s1184 + $0x14] sm:$0xf]
  %v1191 = vld [vmem:[%s1184 + $0x18] sm:$0xf]
  %v1192 = vld [vmem:[%s1184 + $0x1c] sm:$0xf]
  %v1193 = vld [vmem:[%s1184 + $0x20] sm:$0xf]
  %v1194 = vld [vmem:[%s1184 + $0x24] sm:$0xf]
  %v1195 = vld [vmem:[%s1184 + $0x28] sm:$0xf]
  %v1196 = vld [vmem:[%s1184 + $0x2c] sm:$0xf]
  %v1197 = vld [vmem:[%s1184 + $0x30] sm:$0xf]
  %v1198 = vld [vmem:[%s1184 + $0x34] sm:$0xf]
  %v1199 = vld [vmem:[%s1184 + $0x38] sm:$0xf]
  %v1200 = vld [vmem:[%s1184 + $0x3c] sm:$0xf]
  %s1201 = scalar_lea.vmem %s10, 1
  %v1202 = vld [vmem:[%s1201] sm:$0x1]
  %v1204 = vlaneseq
  %v1205 = vshrl.u32 %v1204, 7
  %v1206 = vsub.s32 0, %v1205
  %v1207 = vrot.slane %v1202, %v1206
  %v1225 = vunpack.c.l.b16 %v1185
  %v1226 = vunpack.c.l.b16 %v1186
  %v1227 = vunpack.c.l.b16 %v1187
  %v1228 = vunpack.c.l.b16 %v1188
  %v1229 = vunpack.c.l.b16 %v1189
  %v1230 = vunpack.c.l.b16 %v1190
  %v1231 = vunpack.c.l.b16 %v1191
  %v1232 = vunpack.c.l.b16 %v1192
  %v1233 = vunpack.c.l.b16 %v1193
  %v1234 = vunpack.c.l.b16 %v1194
  %v1235 = vunpack.c.l.b16 %v1195
  %v1236 = vunpack.c.l.b16 %v1196
  %v1237 = vunpack.c.l.b16 %v1197
  %v1238 = vunpack.c.l.b16 %v1198
  %v1239 = vunpack.c.l.b16 %v1199
  %v1240 = vunpack.c.l.b16 %v1200
  %v1241 = vpack.c.b16 %v1226, %v1225
  %v1242 = vpack.c.b16 %v1228, %v1227
  %v1243 = vpack.c.b16 %v1230, %v1229
  %v1244 = vpack.c.b16 %v1232, %v1231
  %v1245 = vpack.c.b16 %v1234, %v1233
  %v1246 = vpack.c.b16 %v1236, %v1235
  %v1247 = vpack.c.b16 %v1238, %v1237
  %v1248 = vpack.c.b16 %v1240, %v1239
  %1257 = vmatprep.subr.bf16.mxu0 0
  %1258 = vmatpush1.bf16.msra.mxu0 %v1241
  %1259 = vmatprep.subr.bf16.mxu0 0
  %1260 = vmatpush1.bf16.msra.mxu0 %v1242
  %1261 = vmatprep.subr.bf16.mxu0 0
  %1262 = vmatpush1.bf16.msra.mxu0 %v1243
  %1263 = vmatprep.subr.bf16.mxu0 0
  %1264 = vmatpush1.bf16.msra.mxu0 %v1244
  %1265 = vmatprep.subr.bf16.mxu0 0
  %1266 = vmatpush1.bf16.msra.mxu0 %v1245
  %1267 = vmatprep.subr.bf16.mxu0 0
  %1268 = vmatpush1.bf16.msra.mxu0 %v1246
  %1269 = vmatprep.subr.bf16.mxu0 0
  %1270 = vmatpush1.bf16.msra.mxu0 %v1247
  %1271 = vmatprep.subr.bf16.mxu0 0
  %1272 = vmatpush1.bf16.msra.mxu0 %v1248
  %1273 = vmatprep.subr.bf16.mxu0 0
  %1274 = vmatpush1.bf16.msra.mxu0 0
  %1275 = vmatprep.subr.bf16.mxu0 0
  %1276 = vmatpush1.bf16.msra.mxu0 0
  %1277 = vmatprep.subr.bf16.mxu0 0
  %1278 = vmatpush1.bf16.msra.mxu0 0
  %1279 = vmatprep.subr.bf16.mxu0 0
  %1280 = vmatpush1.bf16.msra.mxu0 0
  %1281 = vmatprep.subr.bf16.mxu0 0
  %1282 = vmatpush1.bf16.msra.mxu0 0
  %1283 = vmatprep.subr.bf16.mxu0 0
  %1284 = vmatpush1.bf16.msra.mxu0 0
  %1285 = vmatprep.subr.bf16.mxu0 0
  %1286 = vmatpush1.bf16.msra.mxu0 0
  %1287 = vmatprep.subr.bf16.mxu0 0
  %1288 = vmatpush1.bf16.msra.mxu0 0
  %1289 = vmatprep.mubr.bf16.mxu0 0
  %1290 = vmatmul.mubr.bf16.gmra.mrb[0].mxu0 %v1183
  %v1291 = vpop.f32.mrb[0].mxu0
  %v1292 = vadd.f32 %v1207, %v1291
  %v1293 = vpop.f32.mrb[0].mxu0
  %v1294 = vpop.f32.mrb[0].mxu0
  %v1295 = vadd.f32 %v1207, %v1294
  %v1296 = vpop.f32.mrb[0].mxu0
  %1297 = vdwg.mxu0
  %v1298 = vadd.f32 %v1083, %v1292
  %v1299 = vadd.f32 %v1084, %v1295
  %v1300 = vsel %vm61, %v1298, 0.0
  %1301 = vadd.xlane.f32.xlu0 %v1300
  %v1302 = vpop.xlane.xlu0 %1301
  %v1303 = vsel %vm61, %v1299, 0.0
  %1304 = vadd.xlane.f32.xlu0 %v1303
  %v1305 = vpop.xlane.xlu0 %1304
  %v1306 = vmul.f32 %v1302, %v68
  %v1307 = vmul.f32 %v1305, %v68
  %v1308 = vsub.f32 %v1298, %v1306
  %v1309 = vsub.f32 %v1299, %v1307
  %v1310 = vmul.f32 %v1308, %v1308
  %v1311 = vmul.f32 %v1309, %v1309
  %v1312 = vsel %vm61, %v1310, 0.0
  %1313 = vadd.xlane.f32.xlu0 %v1312
  %v1314 = vpop.xlane.xlu0 %1313
  %v1315 = vsel %vm61, %v1311, 0.0
  %1316 = vadd.xlane.f32.xlu0 %v1315
  %v1317 = vpop.xlane.xlu0 %1316
  %v1318 = vmul.f32 %v1314, %v68
  %v1319 = vmul.f32 %v1317, %v68
  %v1320 = vadd.f32 %v1318, 1e-05
  %v1321 = vadd.f32 %v1319, 1e-05
  %v1322 = vrsqrt.pop %v1320
  %v1323 = vrsqrt.pop %v1321
  %v1324 = vmul.f32 %v1308, %v1322
  %v1325 = vmul.f32 %v1309, %v1323
  %v1326 = vpack.c.bf16 %v1325, %v1324
  %s1327 = scalar_lea.vmem %s3, 32
  %v1328 = vld [vmem:[%s1327] sm:$0xf]
  %v1329 = vld [vmem:[%s1327 + $0x4] sm:$0xf]
  %v1330 = vld [vmem:[%s1327 + $0x8] sm:$0xf]
  %v1331 = vld [vmem:[%s1327 + $0xc] sm:$0xf]
  %s1332 = scalar_lea.vmem %s4, 2
  %v1333 = vld [vmem:[%s1332] sm:$0x1]
  %v1335 = vlaneseq
  %v1336 = vshrl.u32 %v1335, 7
  %v1337 = vsub.s32 0, %v1336
  %v1338 = vrot.slane %v1333, %v1337
  %v1344 = vunpack.c.l.b16 %v1328
  %v1345 = vunpack.c.l.b16 %v1329
  %v1346 = vunpack.c.l.b16 %v1330
  %v1347 = vunpack.c.l.b16 %v1331
  %v1348 = vpack.c.b16 %v1345, %v1344
  %v1349 = vpack.c.b16 %v1347, %v1346
  %v1353 = vsel %vm61, %v1326, 0
  %1355 = vmatprep.subr.bf16.mxu0 0
  %1356 = vmatpush1.bf16.msra.mxu0 %v1348
  %1357 = vmatprep.subr.bf16.mxu0 0
  %1358 = vmatpush1.bf16.msra.mxu0 %v1349
  %1359 = vmatprep.subr.bf16.mxu0 0
  %1360 = vmatpush1.bf16.msra.mxu0 0
  %1361 = vmatprep.subr.bf16.mxu0 0
  %1362 = vmatpush1.bf16.msra.mxu0 0
  %1363 = vmatprep.subr.bf16.mxu0 0
  %1364 = vmatpush1.bf16.msra.mxu0 0
  %1365 = vmatprep.subr.bf16.mxu0 0
  %1366 = vmatpush1.bf16.msra.mxu0 0
  %1367 = vmatprep.subr.bf16.mxu0 0
  %1368 = vmatpush1.bf16.msra.mxu0 0
  %1369 = vmatprep.subr.bf16.mxu0 0
  %1370 = vmatpush1.bf16.msra.mxu0 0
  %1371 = vmatprep.subr.bf16.mxu0 0
  %1372 = vmatpush1.bf16.msra.mxu0 0
  %1373 = vmatprep.subr.bf16.mxu0 0
  %1374 = vmatpush1.bf16.msra.mxu0 0
  %1375 = vmatprep.subr.bf16.mxu0 0
  %1376 = vmatpush1.bf16.msra.mxu0 0
  %1377 = vmatprep.subr.bf16.mxu0 0
  %1378 = vmatpush1.bf16.msra.mxu0 0
  %1379 = vmatprep.subr.bf16.mxu0 0
  %1380 = vmatpush1.bf16.msra.mxu0 0
  %1381 = vmatprep.subr.bf16.mxu0 0
  %1382 = vmatpush1.bf16.msra.mxu0 0
  %1383 = vmatprep.subr.bf16.mxu0 0
  %1384 = vmatpush1.bf16.msra.mxu0 0
  %1385 = vmatprep.subr.bf16.mxu0 0
  %1386 = vmatpush1.bf16.msra.mxu0 0
  %1387 = vmatprep.mubr.bf16.mxu0 0
  %1388 = vmatmul.mubr.bf16.gmra.mrb[0].mxu0 %v1353
  %v1389 = vpop.f32.mrb[0].mxu0
  %v1390 = vadd.f32 %v1338, %v1389
  %v1391 = vpop.f32.mrb[0].mxu0
  %v1392 = vpop.f32.mrb[0].mxu0
  %v1393 = vadd.f32 %v1338, %v1392
  %v1394 = vpop.f32.mrb[0].mxu0
  %1395 = vdwg.mxu0
  %v1396 = vmul.f32 %v1390, %v166
  %v1397 = vmul.f32 %v1393, %v168
  %v1398 = vmul.f32 %v1390, %v170
  %v1399 = vmul.f32 %v1393, %v172
  %v1400 = vmul.f32 %v1390, %v174
  %v1401 = vmul.f32 %v1393, %v176
  %v1402 = vmul.f32 %v1390, %v178
  %v1403 = vmul.f32 %v1393, %v180
  %v1404 = vpack.c.bf16 %v1397, %v1396
  %v1405 = vpack.c.bf16 %v1399, %v1398
  %v1406 = vpack.c.bf16 %v1401, %v1400
  %v1407 = vpack.c.bf16 %v1403, %v1402
  %v1408 = vpack.c.bf16 %v1393, %v1390
  %1413 = vrot.lane.b32.xlu0 %v1404, 96
  %v1414 = vpop.permute.xlu0 %1413
  %1415 = vrot.lane.b32.xlu0 %v1405, 96
  %v1416 = vpop.permute.xlu0 %1415
  %1417 = vrot.lane.b32.xlu0 %v1406, 96
  %v1418 = vpop.permute.xlu0 %1417
  %1419 = vrot.lane.b32.xlu0 %v1407, 96
  %v1420 = vpop.permute.xlu0 %1419
  %v1422 = vsel %vm61, %v1408, 0
  %v1425 = vsel %vm61, %v1414, 0
  %v1428 = vsel %vm61, %v1416, 0
  %v1431 = vsel %vm61, %v1418, 0
  %v1434 = vsel %vm61, %v1420, 0
  %1436 = vmatprep.subr.bf16.mxu0 0
  %1437 = vmatpush1.bf16.xpose.msra.mxu0 %v1425
  %1438 = vmatprep.subr.bf16.mxu0 0
  %1439 = vmatpush1.bf16.xpose.msra.mxu0 %v1428
  %1440 = vmatprep.subr.bf16.mxu0 0
  %1441 = vmatpush1.bf16.xpose.msra.mxu0 %v1431
  %1442 = vmatprep.subr.bf16.mxu0 0
  %1443 = vmatpush1.bf16.xpose.msra.mxu0 %v1434
  %1444 = vmatprep.subr.bf16.mxu0 0
  %1445 = vmatpush1.bf16.xpose.msra.mxu0 0
  %1446 = vmatprep.subr.bf16.mxu0 0
  %1447 = vmatpush1.bf16.xpose.msra.mxu0 0
  %1448 = vmatprep.subr.bf16.mxu0 0
  %1449 = vmatpush1.bf16.xpose.msra.mxu0 0
  %1450 = vmatprep.subr.bf16.mxu0 0
  %1451 = vmatpush1.bf16.xpose.msra.mxu0 0
  %1452 = vmatprep.subr.bf16.mxu0 0
  %1453 = vmatpush1.bf16.xpose.msra.mxu0 0
  %1454 = vmatprep.subr.bf16.mxu0 0
  %1455 = vmatpush1.bf16.xpose.msra.mxu0 0
  %1456 = vmatprep.subr.bf16.mxu0 0
  %1457 = vmatpush1.bf16.xpose.msra.mxu0 0
  %1458 = vmatprep.subr.bf16.mxu0 0
  %1459 = vmatpush1.bf16.xpose.msra.mxu0 0
  %1460 = vmatprep.subr.bf16.mxu0 0
  %1461 = vmatpush1.bf16.xpose.msra.mxu0 0
  %1462 = vmatprep.subr.bf16.mxu0 0
  %1463 = vmatpush1.bf16.xpose.msra.mxu0 0
  %1464 = vmatprep.subr.bf16.mxu0 0
  %1465 = vmatpush1.bf16.xpose.msra.mxu0 0
  %1466 = vmatprep.subr.bf16.mxu0 0
  %1467 = vmatpush1.bf16.xpose.msra.mxu0 0
  %1468 = vmatprep.mubr.bf16.mxu0 0
  %1469 = vmatmul.mubr.bf16.gmra.mrb[0].mxu0 %v1422
  %v1470 = vpop.f32.mrb[0].mxu0
  %v1471 = vadd.f32 %v47, %v1470
  %v1472 = vpop.f32.mrb[0].mxu0
  %v1473 = vpop.f32.mrb[0].mxu0
  %v1474 = vadd.f32 %v48, %v1473
  %v1475 = vpop.f32.mrb[0].mxu0
  %1476 = vdwg.mxu0
  %v1477 = vsel %vm270, %v1471, -inf
  %1478 = vmax.xlane.f32.xlu0 %v1477
  %v1479 = vpop.xlane.xlu0 %1478
  %v1480 = vsel %vm270, %v1474, -inf
  %1481 = vmax.xlane.f32.xlu0 %v1480
  %v1482 = vpop.xlane.xlu0 %1481
  %v1483 = vsub.f32 %v1471, %v1479
  %v1484 = vsub.f32 %v1474, %v1482
  %v1485 = vmul.f32 %v1483, 1.442695
  %v1486 = vpow.pop %v1485
  %v1487 = vmul.f32 %v1484, 1.442695
  %v1488 = vpow.pop %v1487
  %v1489 = vpack.c.bf16 %v1488, %v1486
  %v1490 = vmul.f32 %v1390, %v285
  %v1491 = vmul.f32 %v1393, %v287
  %v1492 = vmul.f32 %v1390, %v289
  %v1493 = vmul.f32 %v1393, %v291
  %v1494 = vmul.f32 %v1390, %v293
  %v1495 = vmul.f32 %v1393, %v295
  %v1496 = vmul.f32 %v1390, %v297
  %v1497 = vmul.f32 %v1393, %v299
  %v1498 = vpack.c.bf16 %v1491, %v1490
  %v1499 = vpack.c.bf16 %v1493, %v1492
  %v1500 = vpack.c.bf16 %v1495, %v1494
  %v1501 = vpack.c.bf16 %v1497, %v1496
  %1506 = vrot.lane.b32.xlu0 %v1498, 64
  %v1507 = vpop.permute.xlu0 %1506
  %1508 = vrot.lane.b32.xlu0 %v1499, 64
  %v1509 = vpop.permute.xlu0 %1508
  %1510 = vrot.lane.b32.xlu0 %v1500, 64
  %v1511 = vpop.permute.xlu0 %1510
  %1512 = vrot.lane.b32.xlu0 %v1501, 64
  %v1513 = vpop.permute.xlu0 %1512
  %v1519 = vsel %vm270, %v1489, 0
  %1521 = vmatprep.subr.bf16.mxu0 0
  %1522 = vmatpush1.bf16.msra.mxu0 %v1507
  %1523 = vmatprep.subr.bf16.mxu0 0
  %1524 = vmatpush1.bf16.msra.mxu0 %v1509
  %1525 = vmatprep.subr.bf16.mxu0 0
  %1526 = vmatpush1.bf16.msra.mxu0 %v1511
  %1527 = vmatprep.subr.bf16.mxu0 0
  %1528 = vmatpush1.bf16.msra.mxu0 %v1513
  %1529 = vmatprep.subr.bf16.mxu0 0
  %1530 = vmatpush1.bf16.msra.mxu0 0
  %1531 = vmatprep.subr.bf16.mxu0 0
  %1532 = vmatpush1.bf16.msra.mxu0 0
  %1533 = vmatprep.subr.bf16.mxu0 0
  %1534 = vmatpush1.bf16.msra.mxu0 0
  %1535 = vmatprep.subr.bf16.mxu0 0
  %1536 = vmatpush1.bf16.msra.mxu0 0
  %1537 = vmatprep.subr.bf16.mxu0 0
  %1538 = vmatpush1.bf16.msra.mxu0 0
  %1539 = vmatprep.subr.bf16.mxu0 0
  %1540 = vmatpush1.bf16.msra.mxu0 0
  %1541 = vmatprep.subr.bf16.mxu0 0
  %1542 = vmatpush1.bf16.msra.mxu0 0
  %1543 = vmatprep.subr.bf16.mxu0 0
  %1544 = vmatpush1.bf16.msra.mxu0 0
  %1545 = vmatprep.subr.bf16.mxu0 0
  %1546 = vmatpush1.bf16.msra.mxu0 0
  %1547 = vmatprep.subr.bf16.mxu0 0
  %1548 = vmatpush1.bf16.msra.mxu0 0
  %1549 = vmatprep.subr.bf16.mxu0 0
  %1550 = vmatpush1.bf16.msra.mxu0 0
  %1551 = vmatprep.subr.bf16.mxu0 0
  %1552 = vmatpush1.bf16.msra.mxu0 0
  %1553 = vmatprep.mubr.bf16.mxu0 0
  %1554 = vmatmul.mubr.bf16.gmra.mrb[0].mxu0 %v1519
  %v1555 = vpop.f32.mrb[0].mxu0
  %v1556 = vadd.f32 0.0, %v1555
  %v1557 = vpop.f32.mrb[0].mxu0
  %v1558 = vpop.f32.mrb[0].mxu0
  %v1559 = vadd.f32 0.0, %v1558
  %v1560 = vpop.f32.mrb[0].mxu0
  %1561 = vdwg.mxu0
  %1562 = vmatprep.subr.bf16.mxu0 0
  %1563 = vmatpush1.bf16.msra.mxu0 %v57
  %1564 = vmatprep.subr.bf16.mxu0 0
  %1565 = vmatpush1.bf16.msra.mxu0 %v58
  %1566 = vmatprep.subr.bf16.mxu0 0
  %1567 = vmatpush1.bf16.msra.mxu0 %v59
  %1568 = vmatprep.subr.bf16.mxu0 0
  %1569 = vmatpush1.bf16.msra.mxu0 %v60
  %1570 = vmatprep.subr.bf16.mxu0 0
  %1571 = vmatpush1.bf16.msra.mxu0 0
  %1572 = vmatprep.subr.bf16.mxu0 0
  %1573 = vmatpush1.bf16.msra.mxu0 0
  %1574 = vmatprep.subr.bf16.mxu0 0
  %1575 = vmatpush1.bf16.msra.mxu0 0
  %1576 = vmatprep.subr.bf16.mxu0 0
  %1577 = vmatpush1.bf16.msra.mxu0 0
  %1578 = vmatprep.subr.bf16.mxu0 0
  %1579 = vmatpush1.bf16.msra.mxu0 0
  %1580 = vmatprep.subr.bf16.mxu0 0
  %1581 = vmatpush1.bf16.msra.mxu0 0
  %1582 = vmatprep.subr.bf16.mxu0 0
  %1583 = vmatpush1.bf16.msra.mxu0 0
  %1584 = vmatprep.subr.bf16.mxu0 0
  %1585 = vmatpush1.bf16.msra.mxu0 0
  %1586 = vmatprep.subr.bf16.mxu0 0
  %1587 = vmatpush1.bf16.msra.mxu0 0
  %1588 = vmatprep.subr.bf16.mxu0 0
  %1589 = vmatpush1.bf16.msra.mxu0 0
  %1590 = vmatprep.subr.bf16.mxu0 0
  %1591 = vmatpush1.bf16.msra.mxu0 0
  %1592 = vmatprep.subr.bf16.mxu0 0
  %1593 = vmatpush1.bf16.msra.mxu0 0
  %1594 = vmatprep.mubr.bf16.mxu0 0
  %1595 = vmatmul.mubr.bf16.gmra.mrb[0].mxu0 %v1519
  %v1596 = vpop.f32.mrb[0].mxu0
  %v1597 = vadd.f32 0.0, %v1596
  %v1598 = vpop.f32.mrb[0].mxu0
  %v1599 = vpop.f32.mrb[0].mxu0
  %v1600 = vadd.f32 0.0, %v1599
  %v1601 = vpop.f32.mrb[0].mxu0
  %1602 = vdwg.mxu0
  %v1603 = vrcp.pop %v1597
  %v1604 = vrcp.pop %v1600
  %v1605 = vmul.f32 %v1556, %v1603
  %v1606 = vmul.f32 %v1559, %v1604
  %v1607 = vpack.c.bf16 %v1606, %v1605
  %s1608 = scalar_lea.vmem %s5, 32
  %v1609 = vld [vmem:[%s1608] sm:$0xf]
  %v1610 = vld [vmem:[%s1608 + $0x4] sm:$0xf]
  %v1611 = vld [vmem:[%s1608 + $0x8] sm:$0xf]
  %v1612 = vld [vmem:[%s1608 + $0xc] sm:$0xf]
  %s1613 = scalar_lea.vmem %s6, 2
  %v1614 = vld [vmem:[%s1613] sm:$0x1]
  %v1616 = vlaneseq
  %v1617 = vshrl.u32 %v1616, 7
  %v1618 = vsub.s32 0, %v1617
  %v1619 = vrot.slane %v1614, %v1618
  %v1625 = vunpack.c.l.b16 %v1609
  %v1626 = vunpack.c.l.b16 %v1610
  %v1627 = vunpack.c.l.b16 %v1611
  %v1628 = vunpack.c.l.b16 %v1612
  %v1629 = vpack.c.b16 %v1626, %v1625
  %v1630 = vpack.c.b16 %v1628, %v1627
  %v1634 = vsel %vm61, %v1607, 0
  %1636 = vmatprep.subr.bf16.mxu0 0
  %1637 = vmatpush1.bf16.msra.mxu0 %v1629
  %1638 = vmatprep.subr.bf16.mxu0 0
  %1639 = vmatpush1.bf16.msra.mxu0 %v1630
  %1640 = vmatprep.subr.bf16.mxu0 0
  %1641 = vmatpush1.bf16.msra.mxu0 0
  %1642 = vmatprep.subr.bf16.mxu0 0
  %1643 = vmatpush1.bf16.msra.mxu0 0
  %1644 = vmatprep.subr.bf16.mxu0 0
  %1645 = vmatpush1.bf16.msra.mxu0 0
  %1646 = vmatprep.subr.bf16.mxu0 0
  %1647 = vmatpush1.bf16.msra.mxu0 0
  %1648 = vmatprep.subr.bf16.mxu0 0
  %1649 = vmatpush1.bf16.msra.mxu0 0
  %1650 = vmatprep.subr.bf16.mxu0 0
  %1651 = vmatpush1.bf16.msra.mxu0 0
  %1652 = vmatprep.subr.bf16.mxu0 0
  %1653 = vmatpush1.bf16.msra.mxu0 0
  %1654 = vmatprep.subr.bf16.mxu0 0
  %1655 = vmatpush1.bf16.msra.mxu0 0
  %1656 = vmatprep.subr.bf16.mxu0 0
  %1657 = vmatpush1.bf16.msra.mxu0 0
  %1658 = vmatprep.subr.bf16.mxu0 0
  %1659 = vmatpush1.bf16.msra.mxu0 0
  %1660 = vmatprep.subr.bf16.mxu0 0
  %1661 = vmatpush1.bf16.msra.mxu0 0
  %1662 = vmatprep.subr.bf16.mxu0 0
  %1663 = vmatpush1.bf16.msra.mxu0 0
  %1664 = vmatprep.subr.bf16.mxu0 0
  %1665 = vmatpush1.bf16.msra.mxu0 0
  %1666 = vmatprep.subr.bf16.mxu0 0
  %1667 = vmatpush1.bf16.msra.mxu0 0
  %1668 = vmatprep.mubr.bf16.mxu0 0
  %1669 = vmatmul.mubr.bf16.gmra.mrb[0].mxu0 %v1634
  %v1670 = vpop.f32.mrb[0].mxu0
  %v1671 = vadd.f32 %v1619, %v1670
  %v1672 = vpop.f32.mrb[0].mxu0
  %v1673 = vpop.f32.mrb[0].mxu0
  %v1674 = vadd.f32 %v1619, %v1673
  %v1675 = vpop.f32.mrb[0].mxu0
  %1676 = vdwg.mxu0
  %v1677 = vadd.f32 %v1298, %v1671
  %v1678 = vadd.f32 %v1299, %v1674
  %v1679 = vsel %vm61, %v1677, 0.0
  %1680 = vadd.xlane.f32.xlu0 %v1679
  %v1681 = vpop.xlane.xlu0 %1680
  %v1682 = vsel %vm61, %v1678, 0.0
  %1683 = vadd.xlane.f32.xlu0 %v1682
  %v1684 = vpop.xlane.xlu0 %1683
  %v1685 = vmul.f32 %v1681, %v68
  %v1686 = vmul.f32 %v1684, %v68
  %v1687 = vsub.f32 %v1677, %v1685
  %v1688 = vsub.f32 %v1678, %v1686
  %v1689 = vmul.f32 %v1687, %v1687
  %v1690 = vmul.f32 %v1688, %v1688
  %v1691 = vsel %vm61, %v1689, 0.0
  %1692 = vadd.xlane.f32.xlu0 %v1691
  %v1693 = vpop.xlane.xlu0 %1692
  %v1694 = vsel %vm61, %v1690, 0.0
  %1695 = vadd.xlane.f32.xlu0 %v1694
  %v1696 = vpop.xlane.xlu0 %1695
  %v1697 = vmul.f32 %v1693, %v68
  %v1698 = vmul.f32 %v1696, %v68
  %v1699 = vadd.f32 %v1697, 1e-05
  %v1700 = vadd.f32 %v1698, 1e-05
  %v1701 = vrsqrt.pop %v1699
  %v1702 = vrsqrt.pop %v1700
  %v1703 = vmul.f32 %v1687, %v1701
  %v1704 = vmul.f32 %v1688, %v1702
  %v1705 = vpack.c.bf16 %v1704, %v1703
  %s1706 = scalar_lea.vmem %s7, 32
  %v1707 = vld [vmem:[%s1706] sm:$0xf]
  %v1708 = vld [vmem:[%s1706 + $0x4] sm:$0xf]
  %v1709 = vld [vmem:[%s1706 + $0x8] sm:$0xf]
  %v1710 = vld [vmem:[%s1706 + $0xc] sm:$0xf]
  %s1711 = scalar_lea.vmem %s8, 2
  %v1712 = vld [vmem:[%s1711] sm:$0x1]
  %v1714 = vlaneseq
  %v1715 = vshrl.u32 %v1714, 7
  %v1716 = vsub.s32 0, %v1715
  %v1717 = vrot.slane %v1712, %v1716
  %v1723 = vunpack.c.l.b16 %v1707
  %v1724 = vunpack.c.l.b16 %v1708
  %v1725 = vunpack.c.l.b16 %v1709
  %v1726 = vunpack.c.l.b16 %v1710
  %v1727 = vpack.c.b16 %v1724, %v1723
  %v1728 = vpack.c.b16 %v1726, %v1725
  %v1732 = vsel %vm61, %v1705, 0
  %1734 = vmatprep.subr.bf16.mxu0 0
  %1735 = vmatpush1.bf16.msra.mxu0 %v1727
  %1736 = vmatprep.subr.bf16.mxu0 0
  %1737 = vmatpush1.bf16.msra.mxu0 %v1728
  %1738 = vmatprep.subr.bf16.mxu0 0
  %1739 = vmatpush1.bf16.msra.mxu0 0
  %1740 = vmatprep.subr.bf16.mxu0 0
  %1741 = vmatpush1.bf16.msra.mxu0 0
  %1742 = vmatprep.subr.bf16.mxu0 0
  %1743 = vmatpush1.bf16.msra.mxu0 0
  %1744 = vmatprep.subr.bf16.mxu0 0
  %1745 = vmatpush1.bf16.msra.mxu0 0
  %1746 = vmatprep.subr.bf16.mxu0 0
  %1747 = vmatpush1.bf16.msra.mxu0 0
  %1748 = vmatprep.subr.bf16.mxu0 0
  %1749 = vmatpush1.bf16.msra.mxu0 0
  %1750 = vmatprep.subr.bf16.mxu0 0
  %1751 = vmatpush1.bf16.msra.mxu0 0
  %1752 = vmatprep.subr.bf16.mxu0 0
  %1753 = vmatpush1.bf16.msra.mxu0 0
  %1754 = vmatprep.subr.bf16.mxu0 0
  %1755 = vmatpush1.bf16.msra.mxu0 0
  %1756 = vmatprep.subr.bf16.mxu0 0
  %1757 = vmatpush1.bf16.msra.mxu0 0
  %1758 = vmatprep.subr.bf16.mxu0 0
  %1759 = vmatpush1.bf16.msra.mxu0 0
  %1760 = vmatprep.subr.bf16.mxu0 0
  %1761 = vmatpush1.bf16.msra.mxu0 0
  %1762 = vmatprep.subr.bf16.mxu0 0
  %1763 = vmatpush1.bf16.msra.mxu0 0
  %1764 = vmatprep.subr.bf16.mxu0 0
  %1765 = vmatpush1.bf16.msra.mxu0 0
  %1766 = vmatprep.mubr.bf16.mxu0 0
  %1767 = vmatmul.mubr.bf16.gmra.mrb[0].mxu0 %v1732
  %v1768 = vpop.f32.mrb[0].mxu0
  %v1769 = vadd.f32 %v1717, %v1768
  %v1770 = vpop.f32.mrb[0].mxu0
  %v1771 = vpop.f32.mrb[0].mxu0
  %v1772 = vadd.f32 %v1717, %v1771
  %v1773 = vpop.f32.mrb[0].mxu0
  %1774 = vdwg.mxu0
  %v1775 = vmax.f32 %v1769, 0.0
  %v1776 = vmax.f32 %v1772, 0.0
  %v1777 = vpack.c.bf16 %v1776, %v1775
  %s1778 = scalar_lea.vmem %s9, 128
  %v1779 = vld [vmem:[%s1778] sm:$0xf]
  %v1780 = vld [vmem:[%s1778 + $0x4] sm:$0xf]
  %v1781 = vld [vmem:[%s1778 + $0x8] sm:$0xf]
  %v1782 = vld [vmem:[%s1778 + $0xc] sm:$0xf]
  %v1783 = vld [vmem:[%s1778 + $0x10] sm:$0xf]
  %v1784 = vld [vmem:[%s1778 + $0x14] sm:$0xf]
  %v1785 = vld [vmem:[%s1778 + $0x18] sm:$0xf]
  %v1786 = vld [vmem:[%s1778 + $0x1c] sm:$0xf]
  %v1787 = vld [vmem:[%s1778 + $0x20] sm:$0xf]
  %v1788 = vld [vmem:[%s1778 + $0x24] sm:$0xf]
  %v1789 = vld [vmem:[%s1778 + $0x28] sm:$0xf]
  %v1790 = vld [vmem:[%s1778 + $0x2c] sm:$0xf]
  %v1791 = vld [vmem:[%s1778 + $0x30] sm:$0xf]
  %v1792 = vld [vmem:[%s1778 + $0x34] sm:$0xf]
  %v1793 = vld [vmem:[%s1778 + $0x38] sm:$0xf]
  %v1794 = vld [vmem:[%s1778 + $0x3c] sm:$0xf]
  %s1795 = scalar_lea.vmem %s10, 2
  %v1796 = vld [vmem:[%s1795] sm:$0x1]
  %v1798 = vlaneseq
  %v1799 = vshrl.u32 %v1798, 7
  %v1800 = vsub.s32 0, %v1799
  %v1801 = vrot.slane %v1796, %v1800
  %v1819 = vunpack.c.l.b16 %v1779
  %v1820 = vunpack.c.l.b16 %v1780
  %v1821 = vunpack.c.l.b16 %v1781
  %v1822 = vunpack.c.l.b16 %v1782
  %v1823 = vunpack.c.l.b16 %v1783
  %v1824 = vunpack.c.l.b16 %v1784
  %v1825 = vunpack.c.l.b16 %v1785
  %v1826 = vunpack.c.l.b16 %v1786
  %v1827 = vunpack.c.l.b16 %v1787
  %v1828 = vunpack.c.l.b16 %v1788
  %v1829 = vunpack.c.l.b16 %v1789
  %v1830 = vunpack.c.l.b16 %v1790
  %v1831 = vunpack.c.l.b16 %v1791
  %v1832 = vunpack.c.l.b16 %v1792
  %v1833 = vunpack.c.l.b16 %v1793
  %v1834 = vunpack.c.l.b16 %v1794
  %v1835 = vpack.c.b16 %v1820, %v1819
  %v1836 = vpack.c.b16 %v1822, %v1821
  %v1837 = vpack.c.b16 %v1824, %v1823
  %v1838 = vpack.c.b16 %v1826, %v1825
  %v1839 = vpack.c.b16 %v1828, %v1827
  %v1840 = vpack.c.b16 %v1830, %v1829
  %v1841 = vpack.c.b16 %v1832, %v1831
  %v1842 = vpack.c.b16 %v1834, %v1833
  %1851 = vmatprep.subr.bf16.mxu0 0
  %1852 = vmatpush1.bf16.msra.mxu0 %v1835
  %1853 = vmatprep.subr.bf16.mxu0 0
  %1854 = vmatpush1.bf16.msra.mxu0 %v1836
  %1855 = vmatprep.subr.bf16.mxu0 0
  %1856 = vmatpush1.bf16.msra.mxu0 %v1837
  %1857 = vmatprep.subr.bf16.mxu0 0
  %1858 = vmatpush1.bf16.msra.mxu0 %v1838
  %1859 = vmatprep.subr.bf16.mxu0 0
  %1860 = vmatpush1.bf16.msra.mxu0 %v1839
  %1861 = vmatprep.subr.bf16.mxu0 0
  %1862 = vmatpush1.bf16.msra.mxu0 %v1840
  %1863 = vmatprep.subr.bf16.mxu0 0
  %1864 = vmatpush1.bf16.msra.mxu0 %v1841
  %1865 = vmatprep.subr.bf16.mxu0 0
  %1866 = vmatpush1.bf16.msra.mxu0 %v1842
  %1867 = vmatprep.subr.bf16.mxu0 0
  %1868 = vmatpush1.bf16.msra.mxu0 0
  %1869 = vmatprep.subr.bf16.mxu0 0
  %1870 = vmatpush1.bf16.msra.mxu0 0
  %1871 = vmatprep.subr.bf16.mxu0 0
  %1872 = vmatpush1.bf16.msra.mxu0 0
  %1873 = vmatprep.subr.bf16.mxu0 0
  %1874 = vmatpush1.bf16.msra.mxu0 0
  %1875 = vmatprep.subr.bf16.mxu0 0
  %1876 = vmatpush1.bf16.msra.mxu0 0
  %1877 = vmatprep.subr.bf16.mxu0 0
  %1878 = vmatpush1.bf16.msra.mxu0 0
  %1879 = vmatprep.subr.bf16.mxu0 0
  %1880 = vmatpush1.bf16.msra.mxu0 0
  %1881 = vmatprep.subr.bf16.mxu0 0
  %1882 = vmatpush1.bf16.msra.mxu0 0
  %1883 = vmatprep.mubr.bf16.mxu0 0
  %1884 = vmatmul.mubr.bf16.gmra.mrb[0].mxu0 %v1777
  %v1885 = vpop.f32.mrb[0].mxu0
  %v1886 = vadd.f32 %v1801, %v1885
  %v1887 = vpop.f32.mrb[0].mxu0
  %v1888 = vpop.f32.mrb[0].mxu0
  %v1889 = vadd.f32 %v1801, %v1888
  %v1890 = vpop.f32.mrb[0].mxu0
  %1891 = vdwg.mxu0
  %v1892 = vadd.f32 %v1677, %v1886
  %v1893 = vadd.f32 %v1678, %v1889
  %v1894 = vsel %vm61, %v1892, 0.0
  %1895 = vadd.xlane.f32.xlu0 %v1894
  %v1896 = vpop.xlane.xlu0 %1895
  %v1897 = vsel %vm61, %v1893, 0.0
  %1898 = vadd.xlane.f32.xlu0 %v1897
  %v1899 = vpop.xlane.xlu0 %1898
  %v1900 = vmul.f32 %v1896, %v68
  %v1901 = vmul.f32 %v1899, %v68
  %v1902 = vsub.f32 %v1892, %v1900
  %v1903 = vsub.f32 %v1893, %v1901
  %v1904 = vmul.f32 %v1902, %v1902
  %v1905 = vmul.f32 %v1903, %v1903
  %v1906 = vsel %vm61, %v1904, 0.0
  %1907 = vadd.xlane.f32.xlu0 %v1906
  %v1908 = vpop.xlane.xlu0 %1907
  %v1909 = vsel %vm61, %v1905, 0.0
  %1910 = vadd.xlane.f32.xlu0 %v1909
  %v1911 = vpop.xlane.xlu0 %1910
  %v1912 = vmul.f32 %v1908, %v68
  %v1913 = vmul.f32 %v1911, %v68
  %v1914 = vadd.f32 %v1912, 1e-05
  %v1915 = vadd.f32 %v1913, 1e-05
  %v1916 = vrsqrt.pop %v1914
  %v1917 = vrsqrt.pop %v1915
  %v1918 = vmul.f32 %v1902, %v1916
  %v1919 = vmul.f32 %v1903, %v1917
  %v1920 = vpack.c.bf16 %v1919, %v1918
  %s1921 = scalar_lea.vmem %s3, 48
  %v1922 = vld [vmem:[%s1921] sm:$0xf]
  %v1923 = vld [vmem:[%s1921 + $0x4] sm:$0xf]
  %v1924 = vld [vmem:[%s1921 + $0x8] sm:$0xf]
  %v1925 = vld [vmem:[%s1921 + $0xc] sm:$0xf]
  %s1926 = scalar_lea.vmem %s4, 3
  %v1927 = vld [vmem:[%s1926] sm:$0x1]
  %v1929 = vlaneseq
  %v1930 = vshrl.u32 %v1929, 7
  %v1931 = vsub.s32 0, %v1930
  %v1932 = vrot.slane %v1927, %v1931
  %v1938 = vunpack.c.l.b16 %v1922
  %v1939 = vunpack.c.l.b16 %v1923
  %v1940 = vunpack.c.l.b16 %v1924
  %v1941 = vunpack.c.l.b16 %v1925
  %v1942 = vpack.c.b16 %v1939, %v1938
  %v1943 = vpack.c.b16 %v1941, %v1940
  %v1947 = vsel %vm61, %v1920, 0
  %1949 = vmatprep.subr.bf16.mxu0 0
  %1950 = vmatpush1.bf16.msra.mxu0 %v1942
  %1951 = vmatprep.subr.bf16.mxu0 0
  %1952 = vmatpush1.bf16.msra.mxu0 %v1943
  %1953 = vmatprep.subr.bf16.mxu0 0
  %1954 = vmatpush1.bf16.msra.mxu0 0
  %1955 = vmatprep.subr.bf16.mxu0 0
  %1956 = vmatpush1.bf16.msra.mxu0 0
  %1957 = vmatprep.subr.bf16.mxu0 0
  %1958 = vmatpush1.bf16.msra.mxu0 0
  %1959 = vmatprep.subr.bf16.mxu0 0
  %1960 = vmatpush1.bf16.msra.mxu0 0
  %1961 = vmatprep.subr.bf16.mxu0 0
  %1962 = vmatpush1.bf16.msra.mxu0 0
  %1963 = vmatprep.subr.bf16.mxu0 0
  %1964 = vmatpush1.bf16.msra.mxu0 0
  %1965 = vmatprep.subr.bf16.mxu0 0
  %1966 = vmatpush1.bf16.msra.mxu0 0
  %1967 = vmatprep.subr.bf16.mxu0 0
  %1968 = vmatpush1.bf16.msra.mxu0 0
  %1969 = vmatprep.subr.bf16.mxu0 0
  %1970 = vmatpush1.bf16.msra.mxu0 0
  %1971 = vmatprep.subr.bf16.mxu0 0
  %1972 = vmatpush1.bf16.msra.mxu0 0
  %1973 = vmatprep.subr.bf16.mxu0 0
  %1974 = vmatpush1.bf16.msra.mxu0 0
  %1975 = vmatprep.subr.bf16.mxu0 0
  %1976 = vmatpush1.bf16.msra.mxu0 0
  %1977 = vmatprep.subr.bf16.mxu0 0
  %1978 = vmatpush1.bf16.msra.mxu0 0
  %1979 = vmatprep.subr.bf16.mxu0 0
  %1980 = vmatpush1.bf16.msra.mxu0 0
  %1981 = vmatprep.mubr.bf16.mxu0 0
  %1982 = vmatmul.mubr.bf16.gmra.mrb[0].mxu0 %v1947
  %v1983 = vpop.f32.mrb[0].mxu0
  %v1984 = vadd.f32 %v1932, %v1983
  %v1985 = vpop.f32.mrb[0].mxu0
  %v1986 = vpop.f32.mrb[0].mxu0
  %v1987 = vadd.f32 %v1932, %v1986
  %v1988 = vpop.f32.mrb[0].mxu0
  %1989 = vdwg.mxu0
  %v1990 = vmul.f32 %v1984, %v166
  %v1991 = vmul.f32 %v1987, %v168
  %v1992 = vmul.f32 %v1984, %v170
  %v1993 = vmul.f32 %v1987, %v172
  %v1994 = vmul.f32 %v1984, %v174
  %v1995 = vmul.f32 %v1987, %v176
  %v1996 = vmul.f32 %v1984, %v178
  %v1997 = vmul.f32 %v1987, %v180
  %v1998 = vpack.c.bf16 %v1991, %v1990
  %v1999 = vpack.c.bf16 %v1993, %v1992
  %v2000 = vpack.c.bf16 %v1995, %v1994
  %v2001 = vpack.c.bf16 %v1997, %v1996
  %v2002 = vpack.c.bf16 %v1987, %v1984
  %2007 = vrot.lane.b32.xlu0 %v1998, 96
  %v2008 = vpop.permute.xlu0 %2007
  %2009 = vrot.lane.b32.xlu0 %v1999, 96
  %v2010 = vpop.permute.xlu0 %2009
  %2011 = vrot.lane.b32.xlu0 %v2000, 96
  %v2012 = vpop.permute.xlu0 %2011
  %2013 = vrot.lane.b32.xlu0 %v2001, 96
  %v2014 = vpop.permute.xlu0 %2013
  %v2016 = vsel %vm61, %v2002, 0
  %v2019 = vsel %vm61, %v2008, 0
  %v2022 = vsel %vm61, %v2010, 0
  %v2025 = vsel %vm61, %v2012, 0
  %v2028 = vsel %vm61, %v2014, 0
  %2030 = vmatprep.subr.bf16.mxu0 0
  %2031 = vmatpush1.bf16.xpose.msra.mxu0 %v2019
  %2032 = vmatprep.subr.bf16.mxu0 0
  %2033 = vmatpush1.bf16.xpose.msra.mxu0 %v2022
  %2034 = vmatprep.subr.bf16.mxu0 0
  %2035 = vmatpush1.bf16.xpose.msra.mxu0 %v2025
  %2036 = vmatprep.subr.bf16.mxu0 0
  %2037 = vmatpush1.bf16.xpose.msra.mxu0 %v2028
  %2038 = vmatprep.subr.bf16.mxu0 0
  %2039 = vmatpush1.bf16.xpose.msra.mxu0 0
  %2040 = vmatprep.subr.bf16.mxu0 0
  %2041 = vmatpush1.bf16.xpose.msra.mxu0 0
  %2042 = vmatprep.subr.bf16.mxu0 0
  %2043 = vmatpush1.bf16.xpose.msra.mxu0 0
  %2044 = vmatprep.subr.bf16.mxu0 0
  %2045 = vmatpush1.bf16.xpose.msra.mxu0 0
  %2046 = vmatprep.subr.bf16.mxu0 0
  %2047 = vmatpush1.bf16.xpose.msra.mxu0 0
  %2048 = vmatprep.subr.bf16.mxu0 0
  %2049 = vmatpush1.bf16.xpose.msra.mxu0 0
  %2050 = vmatprep.subr.bf16.mxu0 0
  %2051 = vmatpush1.bf16.xpose.msra.mxu0 0
  %2052 = vmatprep.subr.bf16.mxu0 0
  %2053 = vmatpush1.bf16.xpose.msra.mxu0 0
  %2054 = vmatprep.subr.bf16.mxu0 0
  %2055 = vmatpush1.bf16.xpose.msra.mxu0 0
  %2056 = vmatprep.subr.bf16.mxu0 0
  %2057 = vmatpush1.bf16.xpose.msra.mxu0 0
  %2058 = vmatprep.subr.bf16.mxu0 0
  %2059 = vmatpush1.bf16.xpose.msra.mxu0 0
  %2060 = vmatprep.subr.bf16.mxu0 0
  %2061 = vmatpush1.bf16.xpose.msra.mxu0 0
  %2062 = vmatprep.mubr.bf16.mxu0 0
  %2063 = vmatmul.mubr.bf16.gmra.mrb[0].mxu0 %v2016
  %v2064 = vpop.f32.mrb[0].mxu0
  %v2065 = vadd.f32 %v47, %v2064
  %v2066 = vpop.f32.mrb[0].mxu0
  %v2067 = vpop.f32.mrb[0].mxu0
  %v2068 = vadd.f32 %v48, %v2067
  %v2069 = vpop.f32.mrb[0].mxu0
  %2070 = vdwg.mxu0
  %v2071 = vsel %vm270, %v2065, -inf
  %2072 = vmax.xlane.f32.xlu0 %v2071
  %v2073 = vpop.xlane.xlu0 %2072
  %v2074 = vsel %vm270, %v2068, -inf
  %2075 = vmax.xlane.f32.xlu0 %v2074
  %v2076 = vpop.xlane.xlu0 %2075
  %v2077 = vsub.f32 %v2065, %v2073
  %v2078 = vsub.f32 %v2068, %v2076
  %v2079 = vmul.f32 %v2077, 1.442695
  %v2080 = vpow.pop %v2079
  %v2081 = vmul.f32 %v2078, 1.442695
  %v2082 = vpow.pop %v2081
  %v2083 = vpack.c.bf16 %v2082, %v2080
  %v2084 = vmul.f32 %v1984, %v285
  %v2085 = vmul.f32 %v1987, %v287
  %v2086 = vmul.f32 %v1984, %v289
  %v2087 = vmul.f32 %v1987, %v291
  %v2088 = vmul.f32 %v1984, %v293
  %v2089 = vmul.f32 %v1987, %v295
  %v2090 = vmul.f32 %v1984, %v297
  %v2091 = vmul.f32 %v1987, %v299
  %v2092 = vpack.c.bf16 %v2085, %v2084
  %v2093 = vpack.c.bf16 %v2087, %v2086
  %v2094 = vpack.c.bf16 %v2089, %v2088
  %v2095 = vpack.c.bf16 %v2091, %v2090
  %2100 = vrot.lane.b32.xlu0 %v2092, 64
  %v2101 = vpop.permute.xlu0 %2100
  %2102 = vrot.lane.b32.xlu0 %v2093, 64
  %v2103 = vpop.permute.xlu0 %2102
  %2104 = vrot.lane.b32.xlu0 %v2094, 64
  %v2105 = vpop.permute.xlu0 %2104
  %2106 = vrot.lane.b32.xlu0 %v2095, 64
  %v2107 = vpop.permute.xlu0 %2106
  %v2113 = vsel %vm270, %v2083, 0
  %2115 = vmatprep.subr.bf16.mxu0 0
  %2116 = vmatpush1.bf16.msra.mxu0 %v2101
  %2117 = vmatprep.subr.bf16.mxu0 0
  %2118 = vmatpush1.bf16.msra.mxu0 %v2103
  %2119 = vmatprep.subr.bf16.mxu0 0
  %2120 = vmatpush1.bf16.msra.mxu0 %v2105
  %2121 = vmatprep.subr.bf16.mxu0 0
  %2122 = vmatpush1.bf16.msra.mxu0 %v2107
  %2123 = vmatprep.subr.bf16.mxu0 0
  %2124 = vmatpush1.bf16.msra.mxu0 0
  %2125 = vmatprep.subr.bf16.mxu0 0
  %2126 = vmatpush1.bf16.msra.mxu0 0
  %2127 = vmatprep.subr.bf16.mxu0 0
  %2128 = vmatpush1.bf16.msra.mxu0 0
  %2129 = vmatprep.subr.bf16.mxu0 0
  %2130 = vmatpush1.bf16.msra.mxu0 0
  %2131 = vmatprep.subr.bf16.mxu0 0
  %2132 = vmatpush1.bf16.msra.mxu0 0
  %2133 = vmatprep.subr.bf16.mxu0 0
  %2134 = vmatpush1.bf16.msra.mxu0 0
  %2135 = vmatprep.subr.bf16.mxu0 0
  %2136 = vmatpush1.bf16.msra.mxu0 0
  %2137 = vmatprep.subr.bf16.mxu0 0
  %2138 = vmatpush1.bf16.msra.mxu0 0
  %2139 = vmatprep.subr.bf16.mxu0 0
  %2140 = vmatpush1.bf16.msra.mxu0 0
  %2141 = vmatprep.subr.bf16.mxu0 0
  %2142 = vmatpush1.bf16.msra.mxu0 0
  %2143 = vmatprep.subr.bf16.mxu0 0
  %2144 = vmatpush1.bf16.msra.mxu0 0
  %2145 = vmatprep.subr.bf16.mxu0 0
  %2146 = vmatpush1.bf16.msra.mxu0 0
  %2147 = vmatprep.mubr.bf16.mxu0 0
  %2148 = vmatmul.mubr.bf16.gmra.mrb[0].mxu0 %v2113
  %v2149 = vpop.f32.mrb[0].mxu0
  %v2150 = vadd.f32 0.0, %v2149
  %v2151 = vpop.f32.mrb[0].mxu0
  %v2152 = vpop.f32.mrb[0].mxu0
  %v2153 = vadd.f32 0.0, %v2152
  %v2154 = vpop.f32.mrb[0].mxu0
  %2155 = vdwg.mxu0
  %2156 = vmatprep.subr.bf16.mxu0 0
  %2157 = vmatpush1.bf16.msra.mxu0 %v57
  %2158 = vmatprep.subr.bf16.mxu0 0
  %2159 = vmatpush1.bf16.msra.mxu0 %v58
  %2160 = vmatprep.subr.bf16.mxu0 0
  %2161 = vmatpush1.bf16.msra.mxu0 %v59
  %2162 = vmatprep.subr.bf16.mxu0 0
  %2163 = vmatpush1.bf16.msra.mxu0 %v60
  %2164 = vmatprep.subr.bf16.mxu0 0
  %2165 = vmatpush1.bf16.msra.mxu0 0
  %2166 = vmatprep.subr.bf16.mxu0 0
  %2167 = vmatpush1.bf16.msra.mxu0 0
  %2168 = vmatprep.subr.bf16.mxu0 0
  %2169 = vmatpush1.bf16.msra.mxu0 0
  %2170 = vmatprep.subr.bf16.mxu0 0
  %2171 = vmatpush1.bf16.msra.mxu0 0
  %2172 = vmatprep.subr.bf16.mxu0 0
  %2173 = vmatpush1.bf16.msra.mxu0 0
  %2174 = vmatprep.subr.bf16.mxu0 0
  %2175 = vmatpush1.bf16.msra.mxu0 0
  %2176 = vmatprep.subr.bf16.mxu0 0
  %2177 = vmatpush1.bf16.msra.mxu0 0
  %2178 = vmatprep.subr.bf16.mxu0 0
  %2179 = vmatpush1.bf16.msra.mxu0 0
  %2180 = vmatprep.subr.bf16.mxu0 0
  %2181 = vmatpush1.bf16.msra.mxu0 0
  %2182 = vmatprep.subr.bf16.mxu0 0
  %2183 = vmatpush1.bf16.msra.mxu0 0
  %2184 = vmatprep.subr.bf16.mxu0 0
  %2185 = vmatpush1.bf16.msra.mxu0 0
  %2186 = vmatprep.subr.bf16.mxu0 0
  %2187 = vmatpush1.bf16.msra.mxu0 0
  %2188 = vmatprep.mubr.bf16.mxu0 0
  %2189 = vmatmul.mubr.bf16.gmra.mrb[0].mxu0 %v2113
  %v2190 = vpop.f32.mrb[0].mxu0
  %v2191 = vadd.f32 0.0, %v2190
  %v2192 = vpop.f32.mrb[0].mxu0
  %v2193 = vpop.f32.mrb[0].mxu0
  %v2194 = vadd.f32 0.0, %v2193
  %v2195 = vpop.f32.mrb[0].mxu0
  %2196 = vdwg.mxu0
  %v2197 = vrcp.pop %v2191
  %v2198 = vrcp.pop %v2194
  %v2199 = vmul.f32 %v2150, %v2197
  %v2200 = vmul.f32 %v2153, %v2198
  %v2201 = vpack.c.bf16 %v2200, %v2199
  %s2202 = scalar_lea.vmem %s5, 48
  %v2203 = vld [vmem:[%s2202] sm:$0xf]
  %v2204 = vld [vmem:[%s2202 + $0x4] sm:$0xf]
  %v2205 = vld [vmem:[%s2202 + $0x8] sm:$0xf]
  %v2206 = vld [vmem:[%s2202 + $0xc] sm:$0xf]
  %s2207 = scalar_lea.vmem %s6, 3
  %v2208 = vld [vmem:[%s2207] sm:$0x1]
  %v2210 = vlaneseq
  %v2211 = vshrl.u32 %v2210, 7
  %v2212 = vsub.s32 0, %v2211
  %v2213 = vrot.slane %v2208, %v2212
  %v2219 = vunpack.c.l.b16 %v2203
  %v2220 = vunpack.c.l.b16 %v2204
  %v2221 = vunpack.c.l.b16 %v2205
  %v2222 = vunpack.c.l.b16 %v2206
  %v2223 = vpack.c.b16 %v2220, %v2219
  %v2224 = vpack.c.b16 %v2222, %v2221
  %v2228 = vsel %vm61, %v2201, 0
  %2230 = vmatprep.subr.bf16.mxu0 0
  %2231 = vmatpush1.bf16.msra.mxu0 %v2223
  %2232 = vmatprep.subr.bf16.mxu0 0
  %2233 = vmatpush1.bf16.msra.mxu0 %v2224
  %2234 = vmatprep.subr.bf16.mxu0 0
  %2235 = vmatpush1.bf16.msra.mxu0 0
  %2236 = vmatprep.subr.bf16.mxu0 0
  %2237 = vmatpush1.bf16.msra.mxu0 0
  %2238 = vmatprep.subr.bf16.mxu0 0
  %2239 = vmatpush1.bf16.msra.mxu0 0
  %2240 = vmatprep.subr.bf16.mxu0 0
  %2241 = vmatpush1.bf16.msra.mxu0 0
  %2242 = vmatprep.subr.bf16.mxu0 0
  %2243 = vmatpush1.bf16.msra.mxu0 0
  %2244 = vmatprep.subr.bf16.mxu0 0
  %2245 = vmatpush1.bf16.msra.mxu0 0
  %2246 = vmatprep.subr.bf16.mxu0 0
  %2247 = vmatpush1.bf16.msra.mxu0 0
  %2248 = vmatprep.subr.bf16.mxu0 0
  %2249 = vmatpush1.bf16.msra.mxu0 0
  %2250 = vmatprep.subr.bf16.mxu0 0
  %2251 = vmatpush1.bf16.msra.mxu0 0
  %2252 = vmatprep.subr.bf16.mxu0 0
  %2253 = vmatpush1.bf16.msra.mxu0 0
  %2254 = vmatprep.subr.bf16.mxu0 0
  %2255 = vmatpush1.bf16.msra.mxu0 0
  %2256 = vmatprep.subr.bf16.mxu0 0
  %2257 = vmatpush1.bf16.msra.mxu0 0
  %2258 = vmatprep.subr.bf16.mxu0 0
  %2259 = vmatpush1.bf16.msra.mxu0 0
  %2260 = vmatprep.subr.bf16.mxu0 0
  %2261 = vmatpush1.bf16.msra.mxu0 0
  %2262 = vmatprep.mubr.bf16.mxu0 0
  %2263 = vmatmul.mubr.bf16.gmra.mrb[0].mxu0 %v2228
  %v2264 = vpop.f32.mrb[0].mxu0
  %v2265 = vadd.f32 %v2213, %v2264
  %v2266 = vpop.f32.mrb[0].mxu0
  %v2267 = vpop.f32.mrb[0].mxu0
  %v2268 = vadd.f32 %v2213, %v2267
  %v2269 = vpop.f32.mrb[0].mxu0
  %2270 = vdwg.mxu0
  %v2271 = vadd.f32 %v1892, %v2265
  %v2272 = vadd.f32 %v1893, %v2268
  %v2273 = vsel %vm61, %v2271, 0.0
  %2274 = vadd.xlane.f32.xlu0 %v2273
  %v2275 = vpop.xlane.xlu0 %2274
  %v2276 = vsel %vm61, %v2272, 0.0
  %2277 = vadd.xlane.f32.xlu0 %v2276
  %v2278 = vpop.xlane.xlu0 %2277
  %v2279 = vmul.f32 %v2275, %v68
  %v2280 = vmul.f32 %v2278, %v68
  %v2281 = vsub.f32 %v2271, %v2279
  %v2282 = vsub.f32 %v2272, %v2280
  %v2283 = vmul.f32 %v2281, %v2281
  %v2284 = vmul.f32 %v2282, %v2282
  %v2285 = vsel %vm61, %v2283, 0.0
  %2286 = vadd.xlane.f32.xlu0 %v2285
  %v2287 = vpop.xlane.xlu0 %2286
  %v2288 = vsel %vm61, %v2284, 0.0
  %2289 = vadd.xlane.f32.xlu0 %v2288
  %v2290 = vpop.xlane.xlu0 %2289
  %v2291 = vmul.f32 %v2287, %v68
  %v2292 = vmul.f32 %v2290, %v68
  %v2293 = vadd.f32 %v2291, 1e-05
  %v2294 = vadd.f32 %v2292, 1e-05
  %v2295 = vrsqrt.pop %v2293
  %v2296 = vrsqrt.pop %v2294
  %v2297 = vmul.f32 %v2281, %v2295
  %v2298 = vmul.f32 %v2282, %v2296
  %v2299 = vpack.c.bf16 %v2298, %v2297
  %s2300 = scalar_lea.vmem %s7, 48
  %v2301 = vld [vmem:[%s2300] sm:$0xf]
  %v2302 = vld [vmem:[%s2300 + $0x4] sm:$0xf]
  %v2303 = vld [vmem:[%s2300 + $0x8] sm:$0xf]
  %v2304 = vld [vmem:[%s2300 + $0xc] sm:$0xf]
  %s2305 = scalar_lea.vmem %s8, 3
  %v2306 = vld [vmem:[%s2305] sm:$0x1]
  %v2308 = vlaneseq
  %v2309 = vshrl.u32 %v2308, 7
  %v2310 = vsub.s32 0, %v2309
  %v2311 = vrot.slane %v2306, %v2310
  %v2317 = vunpack.c.l.b16 %v2301
  %v2318 = vunpack.c.l.b16 %v2302
  %v2319 = vunpack.c.l.b16 %v2303
  %v2320 = vunpack.c.l.b16 %v2304
  %v2321 = vpack.c.b16 %v2318, %v2317
  %v2322 = vpack.c.b16 %v2320, %v2319
  %v2326 = vsel %vm61, %v2299, 0
  %2328 = vmatprep.subr.bf16.mxu0 0
  %2329 = vmatpush1.bf16.msra.mxu0 %v2321
  %2330 = vmatprep.subr.bf16.mxu0 0
  %2331 = vmatpush1.bf16.msra.mxu0 %v2322
  %2332 = vmatprep.subr.bf16.mxu0 0
  %2333 = vmatpush1.bf16.msra.mxu0 0
  %2334 = vmatprep.subr.bf16.mxu0 0
  %2335 = vmatpush1.bf16.msra.mxu0 0
  %2336 = vmatprep.subr.bf16.mxu0 0
  %2337 = vmatpush1.bf16.msra.mxu0 0
  %2338 = vmatprep.subr.bf16.mxu0 0
  %2339 = vmatpush1.bf16.msra.mxu0 0
  %2340 = vmatprep.subr.bf16.mxu0 0
  %2341 = vmatpush1.bf16.msra.mxu0 0
  %2342 = vmatprep.subr.bf16.mxu0 0
  %2343 = vmatpush1.bf16.msra.mxu0 0
  %2344 = vmatprep.subr.bf16.mxu0 0
  %2345 = vmatpush1.bf16.msra.mxu0 0
  %2346 = vmatprep.subr.bf16.mxu0 0
  %2347 = vmatpush1.bf16.msra.mxu0 0
  %2348 = vmatprep.subr.bf16.mxu0 0
  %2349 = vmatpush1.bf16.msra.mxu0 0
  %2350 = vmatprep.subr.bf16.mxu0 0
  %2351 = vmatpush1.bf16.msra.mxu0 0
  %2352 = vmatprep.subr.bf16.mxu0 0
  %2353 = vmatpush1.bf16.msra.mxu0 0
  %2354 = vmatprep.subr.bf16.mxu0 0
  %2355 = vmatpush1.bf16.msra.mxu0 0
  %2356 = vmatprep.subr.bf16.mxu0 0
  %2357 = vmatpush1.bf16.msra.mxu0 0
  %2358 = vmatprep.subr.bf16.mxu0 0
  %2359 = vmatpush1.bf16.msra.mxu0 0
  %2360 = vmatprep.mubr.bf16.mxu0 0
  %2361 = vmatmul.mubr.bf16.gmra.mrb[0].mxu0 %v2326
  %v2362 = vpop.f32.mrb[0].mxu0
  %v2363 = vadd.f32 %v2311, %v2362
  %v2364 = vpop.f32.mrb[0].mxu0
  %v2365 = vpop.f32.mrb[0].mxu0
  %v2366 = vadd.f32 %v2311, %v2365
  %v2367 = vpop.f32.mrb[0].mxu0
  %2368 = vdwg.mxu0
  %v2369 = vmax.f32 %v2363, 0.0
  %v2370 = vmax.f32 %v2366, 0.0
  %v2371 = vpack.c.bf16 %v2370, %v2369
  %s2372 = scalar_lea.vmem %s9, 192
  %v2373 = vld [vmem:[%s2372] sm:$0xf]
  %v2374 = vld [vmem:[%s2372 + $0x4] sm:$0xf]
  %v2375 = vld [vmem:[%s2372 + $0x8] sm:$0xf]
  %v2376 = vld [vmem:[%s2372 + $0xc] sm:$0xf]
  %v2377 = vld [vmem:[%s2372 + $0x10] sm:$0xf]
  %v2378 = vld [vmem:[%s2372 + $0x14] sm:$0xf]
  %v2379 = vld [vmem:[%s2372 + $0x18] sm:$0xf]
  %v2380 = vld [vmem:[%s2372 + $0x1c] sm:$0xf]
  %v2381 = vld [vmem:[%s2372 + $0x20] sm:$0xf]
  %v2382 = vld [vmem:[%s2372 + $0x24] sm:$0xf]
  %v2383 = vld [vmem:[%s2372 + $0x28] sm:$0xf]
  %v2384 = vld [vmem:[%s2372 + $0x2c] sm:$0xf]
  %v2385 = vld [vmem:[%s2372 + $0x30] sm:$0xf]
  %v2386 = vld [vmem:[%s2372 + $0x34] sm:$0xf]
  %v2387 = vld [vmem:[%s2372 + $0x38] sm:$0xf]
  %v2388 = vld [vmem:[%s2372 + $0x3c] sm:$0xf]
  %s2389 = scalar_lea.vmem %s10, 3
  %v2390 = vld [vmem:[%s2389] sm:$0x1]
  %v2392 = vlaneseq
  %v2393 = vshrl.u32 %v2392, 7
  %v2394 = vsub.s32 0, %v2393
  %v2395 = vrot.slane %v2390, %v2394
  %v2413 = vunpack.c.l.b16 %v2373
  %v2414 = vunpack.c.l.b16 %v2374
  %v2415 = vunpack.c.l.b16 %v2375
  %v2416 = vunpack.c.l.b16 %v2376
  %v2417 = vunpack.c.l.b16 %v2377
  %v2418 = vunpack.c.l.b16 %v2378
  %v2419 = vunpack.c.l.b16 %v2379
  %v2420 = vunpack.c.l.b16 %v2380
  %v2421 = vunpack.c.l.b16 %v2381
  %v2422 = vunpack.c.l.b16 %v2382
  %v2423 = vunpack.c.l.b16 %v2383
  %v2424 = vunpack.c.l.b16 %v2384
  %v2425 = vunpack.c.l.b16 %v2385
  %v2426 = vunpack.c.l.b16 %v2386
  %v2427 = vunpack.c.l.b16 %v2387
  %v2428 = vunpack.c.l.b16 %v2388
  %v2429 = vpack.c.b16 %v2414, %v2413
  %v2430 = vpack.c.b16 %v2416, %v2415
  %v2431 = vpack.c.b16 %v2418, %v2417
  %v2432 = vpack.c.b16 %v2420, %v2419
  %v2433 = vpack.c.b16 %v2422, %v2421
  %v2434 = vpack.c.b16 %v2424, %v2423
  %v2435 = vpack.c.b16 %v2426, %v2425
  %v2436 = vpack.c.b16 %v2428, %v2427
  %2445 = vmatprep.subr.bf16.mxu0 0
  %2446 = vmatpush1.bf16.msra.mxu0 %v2429
  %2447 = vmatprep.subr.bf16.mxu0 0
  %2448 = vmatpush1.bf16.msra.mxu0 %v2430
  %2449 = vmatprep.subr.bf16.mxu0 0
  %2450 = vmatpush1.bf16.msra.mxu0 %v2431
  %2451 = vmatprep.subr.bf16.mxu0 0
  %2452 = vmatpush1.bf16.msra.mxu0 %v2432
  %2453 = vmatprep.subr.bf16.mxu0 0
  %2454 = vmatpush1.bf16.msra.mxu0 %v2433
  %2455 = vmatprep.subr.bf16.mxu0 0
  %2456 = vmatpush1.bf16.msra.mxu0 %v2434
  %2457 = vmatprep.subr.bf16.mxu0 0
  %2458 = vmatpush1.bf16.msra.mxu0 %v2435
  %2459 = vmatprep.subr.bf16.mxu0 0
  %2460 = vmatpush1.bf16.msra.mxu0 %v2436
  %2461 = vmatprep.subr.bf16.mxu0 0
  %2462 = vmatpush1.bf16.msra.mxu0 0
  %2463 = vmatprep.subr.bf16.mxu0 0
  %2464 = vmatpush1.bf16.msra.mxu0 0
  %2465 = vmatprep.subr.bf16.mxu0 0
  %2466 = vmatpush1.bf16.msra.mxu0 0
  %2467 = vmatprep.subr.bf16.mxu0 0
  %2468 = vmatpush1.bf16.msra.mxu0 0
  %2469 = vmatprep.subr.bf16.mxu0 0
  %2470 = vmatpush1.bf16.msra.mxu0 0
  %2471 = vmatprep.subr.bf16.mxu0 0
  %2472 = vmatpush1.bf16.msra.mxu0 0
  %2473 = vmatprep.subr.bf16.mxu0 0
  %2474 = vmatpush1.bf16.msra.mxu0 0
  %2475 = vmatprep.subr.bf16.mxu0 0
  %2476 = vmatpush1.bf16.msra.mxu0 0
  %2477 = vmatprep.mubr.bf16.mxu0 0
  %2478 = vmatmul.mubr.bf16.gmra.mrb[0].mxu0 %v2371
  %v2479 = vpop.f32.mrb[0].mxu0
  %v2480 = vadd.f32 %v2395, %v2479
  %v2481 = vpop.f32.mrb[0].mxu0
  %v2482 = vpop.f32.mrb[0].mxu0
  %v2483 = vadd.f32 %v2395, %v2482
  %v2484 = vpop.f32.mrb[0].mxu0
  %2485 = vdwg.mxu0
  %v2486 = vadd.f32 %v2271, %v2480
  %v2487 = vadd.f32 %v2272, %v2483
  %v2488 = vsel %vm61, %v2486, 0.0
  %2489 = vadd.xlane.f32.xlu0 %v2488
  %v2490 = vpop.xlane.xlu0 %2489
  %v2491 = vsel %vm61, %v2487, 0.0
  %2492 = vadd.xlane.f32.xlu0 %v2491
  %v2493 = vpop.xlane.xlu0 %2492
  %v2494 = vmul.f32 %v2490, %v68
  %v2495 = vmul.f32 %v2493, %v68
  %v2496 = vsub.f32 %v2486, %v2494
  %v2497 = vsub.f32 %v2487, %v2495
  %v2498 = vmul.f32 %v2496, %v2496
  %v2499 = vmul.f32 %v2497, %v2497
  %v2500 = vsel %vm61, %v2498, 0.0
  %2501 = vadd.xlane.f32.xlu0 %v2500
  %v2502 = vpop.xlane.xlu0 %2501
  %v2503 = vsel %vm61, %v2499, 0.0
  %2504 = vadd.xlane.f32.xlu0 %v2503
  %v2505 = vpop.xlane.xlu0 %2504
  %v2506 = vmul.f32 %v2502, %v68
  %v2507 = vmul.f32 %v2505, %v68
  %v2508 = vadd.f32 %v2506, 1e-05
  %v2509 = vadd.f32 %v2507, 1e-05
  %v2510 = vrsqrt.pop %v2508
  %v2511 = vrsqrt.pop %v2509
  %v2512 = vmul.f32 %v2496, %v2510
  %v2513 = vmul.f32 %v2497, %v2511
  %v2514 = vpack.c.bf16 %v2513, %v2512
  %s2515 = scalar_lea.vmem %s3, 64
  %v2516 = vld [vmem:[%s2515] sm:$0xf]
  %v2517 = vld [vmem:[%s2515 + $0x4] sm:$0xf]
  %v2518 = vld [vmem:[%s2515 + $0x8] sm:$0xf]
  %v2519 = vld [vmem:[%s2515 + $0xc] sm:$0xf]
  %s2520 = scalar_lea.vmem %s4, 4
  %v2521 = vld [vmem:[%s2520] sm:$0x1]
  %v2523 = vlaneseq
  %v2524 = vshrl.u32 %v2523, 7
  %v2525 = vsub.s32 0, %v2524
  %v2526 = vrot.slane %v2521, %v2525
  %v2532 = vunpack.c.l.b16 %v2516
  %v2533 = vunpack.c.l.b16 %v2517
  %v2534 = vunpack.c.l.b16 %v2518
  %v2535 = vunpack.c.l.b16 %v2519
  %v2536 = vpack.c.b16 %v2533, %v2532
  %v2537 = vpack.c.b16 %v2535, %v2534
  %v2541 = vsel %vm61, %v2514, 0
  %2543 = vmatprep.subr.bf16.mxu0 0
  %2544 = vmatpush1.bf16.msra.mxu0 %v2536
  %2545 = vmatprep.subr.bf16.mxu0 0
  %2546 = vmatpush1.bf16.msra.mxu0 %v2537
  %2547 = vmatprep.subr.bf16.mxu0 0
  %2548 = vmatpush1.bf16.msra.mxu0 0
  %2549 = vmatprep.subr.bf16.mxu0 0
  %2550 = vmatpush1.bf16.msra.mxu0 0
  %2551 = vmatprep.subr.bf16.mxu0 0
  %2552 = vmatpush1.bf16.msra.mxu0 0
  %2553 = vmatprep.subr.bf16.mxu0 0
  %2554 = vmatpush1.bf16.msra.mxu0 0
  %2555 = vmatprep.subr.bf16.mxu0 0
  %2556 = vmatpush1.bf16.msra.mxu0 0
  %2557 = vmatprep.subr.bf16.mxu0 0
  %2558 = vmatpush1.bf16.msra.mxu0 0
  %2559 = vmatprep.subr.bf16.mxu0 0
  %2560 = vmatpush1.bf16.msra.mxu0 0
  %2561 = vmatprep.subr.bf16.mxu0 0
  %2562 = vmatpush1.bf16.msra.mxu0 0
  %2563 = vmatprep.subr.bf16.mxu0 0
  %2564 = vmatpush1.bf16.msra.mxu0 0
  %2565 = vmatprep.subr.bf16.mxu0 0
  %2566 = vmatpush1.bf16.msra.mxu0 0
  %2567 = vmatprep.subr.bf16.mxu0 0
  %2568 = vmatpush1.bf16.msra.mxu0 0
  %2569 = vmatprep.subr.bf16.mxu0 0
  %2570 = vmatpush1.bf16.msra.mxu0 0
  %2571 = vmatprep.subr.bf16.mxu0 0
  %2572 = vmatpush1.bf16.msra.mxu0 0
  %2573 = vmatprep.subr.bf16.mxu0 0
  %2574 = vmatpush1.bf16.msra.mxu0 0
  %2575 = vmatprep.mubr.bf16.mxu0 0
  %2576 = vmatmul.mubr.bf16.gmra.mrb[0].mxu0 %v2541
  %v2577 = vpop.f32.mrb[0].mxu0
  %v2578 = vadd.f32 %v2526, %v2577
  %v2579 = vpop.f32.mrb[0].mxu0
  %v2580 = vpop.f32.mrb[0].mxu0
  %v2581 = vadd.f32 %v2526, %v2580
  %v2582 = vpop.f32.mrb[0].mxu0
  %2583 = vdwg.mxu0
  %v2584 = vmul.f32 %v2578, %v166
  %v2585 = vmul.f32 %v2581, %v168
  %v2586 = vmul.f32 %v2578, %v170
  %v2587 = vmul.f32 %v2581, %v172
  %v2588 = vmul.f32 %v2578, %v174
  %v2589 = vmul.f32 %v2581, %v176
  %v2590 = vmul.f32 %v2578, %v178
  %v2591 = vmul.f32 %v2581, %v180
  %v2592 = vpack.c.bf16 %v2585, %v2584
  %v2593 = vpack.c.bf16 %v2587, %v2586
  %v2594 = vpack.c.bf16 %v2589, %v2588
  %v2595 = vpack.c.bf16 %v2591, %v2590
  %v2596 = vpack.c.bf16 %v2581, %v2578
  %2601 = vrot.lane.b32.xlu0 %v2592, 96
  %v2602 = vpop.permute.xlu0 %2601
  %2603 = vrot.lane.b32.xlu0 %v2593, 96
  %v2604 = vpop.permute.xlu0 %2603
  %2605 = vrot.lane.b32.xlu0 %v2594, 96
  %v2606 = vpop.permute.xlu0 %2605
  %2607 = vrot.lane.b32.xlu0 %v2595, 96
  %v2608 = vpop.permute.xlu0 %2607
  %v2610 = vsel %vm61, %v2596, 0
  %v2613 = vsel %vm61, %v2602, 0
  %v2616 = vsel %vm61, %v2604, 0
  %v2619 = vsel %vm61, %v2606, 0
  %v2622 = vsel %vm61, %v2608, 0
  %2624 = vmatprep.subr.bf16.mxu0 0
  %2625 = vmatpush1.bf16.xpose.msra.mxu0 %v2613
  %2626 = vmatprep.subr.bf16.mxu0 0
  %2627 = vmatpush1.bf16.xpose.msra.mxu0 %v2616
  %2628 = vmatprep.subr.bf16.mxu0 0
  %2629 = vmatpush1.bf16.xpose.msra.mxu0 %v2619
  %2630 = vmatprep.subr.bf16.mxu0 0
  %2631 = vmatpush1.bf16.xpose.msra.mxu0 %v2622
  %2632 = vmatprep.subr.bf16.mxu0 0
  %2633 = vmatpush1.bf16.xpose.msra.mxu0 0
  %2634 = vmatprep.subr.bf16.mxu0 0
  %2635 = vmatpush1.bf16.xpose.msra.mxu0 0
  %2636 = vmatprep.subr.bf16.mxu0 0
  %2637 = vmatpush1.bf16.xpose.msra.mxu0 0
  %2638 = vmatprep.subr.bf16.mxu0 0
  %2639 = vmatpush1.bf16.xpose.msra.mxu0 0
  %2640 = vmatprep.subr.bf16.mxu0 0
  %2641 = vmatpush1.bf16.xpose.msra.mxu0 0
  %2642 = vmatprep.subr.bf16.mxu0 0
  %2643 = vmatpush1.bf16.xpose.msra.mxu0 0
  %2644 = vmatprep.subr.bf16.mxu0 0
  %2645 = vmatpush1.bf16.xpose.msra.mxu0 0
  %2646 = vmatprep.subr.bf16.mxu0 0
  %2647 = vmatpush1.bf16.xpose.msra.mxu0 0
  %2648 = vmatprep.subr.bf16.mxu0 0
  %2649 = vmatpush1.bf16.xpose.msra.mxu0 0
  %2650 = vmatprep.subr.bf16.mxu0 0
  %2651 = vmatpush1.bf16.xpose.msra.mxu0 0
  %2652 = vmatprep.subr.bf16.mxu0 0
  %2653 = vmatpush1.bf16.xpose.msra.mxu0 0
  %2654 = vmatprep.subr.bf16.mxu0 0
  %2655 = vmatpush1.bf16.xpose.msra.mxu0 0
  %2656 = vmatprep.mubr.bf16.mxu0 0
  %2657 = vmatmul.mubr.bf16.gmra.mrb[0].mxu0 %v2610
  %v2658 = vpop.f32.mrb[0].mxu0
  %v2659 = vadd.f32 %v47, %v2658
  %v2660 = vpop.f32.mrb[0].mxu0
  %v2661 = vpop.f32.mrb[0].mxu0
  %v2662 = vadd.f32 %v48, %v2661
  %v2663 = vpop.f32.mrb[0].mxu0
  %2664 = vdwg.mxu0
  %v2665 = vsel %vm270, %v2659, -inf
  %2666 = vmax.xlane.f32.xlu0 %v2665
  %v2667 = vpop.xlane.xlu0 %2666
  %v2668 = vsel %vm270, %v2662, -inf
  %2669 = vmax.xlane.f32.xlu0 %v2668
  %v2670 = vpop.xlane.xlu0 %2669
  %v2671 = vsub.f32 %v2659, %v2667
  %v2672 = vsub.f32 %v2662, %v2670
  %v2673 = vmul.f32 %v2671, 1.442695
  %v2674 = vpow.pop %v2673
  %v2675 = vmul.f32 %v2672, 1.442695
  %v2676 = vpow.pop %v2675
  %v2677 = vpack.c.bf16 %v2676, %v2674
  %v2678 = vmul.f32 %v2578, %v285
  %v2679 = vmul.f32 %v2581, %v287
  %v2680 = vmul.f32 %v2578, %v289
  %v2681 = vmul.f32 %v2581, %v291
  %v2682 = vmul.f32 %v2578, %v293
  %v2683 = vmul.f32 %v2581, %v295
  %v2684 = vmul.f32 %v2578, %v297
  %v2685 = vmul.f32 %v2581, %v299
  %v2686 = vpack.c.bf16 %v2679, %v2678
  %v2687 = vpack.c.bf16 %v2681, %v2680
  %v2688 = vpack.c.bf16 %v2683, %v2682
  %v2689 = vpack.c.bf16 %v2685, %v2684
  %2694 = vrot.lane.b32.xlu0 %v2686, 64
  %v2695 = vpop.permute.xlu0 %2694
  %2696 = vrot.lane.b32.xlu0 %v2687, 64
  %v2697 = vpop.permute.xlu0 %2696
  %2698 = vrot.lane.b32.xlu0 %v2688, 64
  %v2699 = vpop.permute.xlu0 %2698
  %2700 = vrot.lane.b32.xlu0 %v2689, 64
  %v2701 = vpop.permute.xlu0 %2700
  %v2707 = vsel %vm270, %v2677, 0
  %2709 = vmatprep.subr.bf16.mxu0 0
  %2710 = vmatpush1.bf16.msra.mxu0 %v2695
  %2711 = vmatprep.subr.bf16.mxu0 0
  %2712 = vmatpush1.bf16.msra.mxu0 %v2697
  %2713 = vmatprep.subr.bf16.mxu0 0
  %2714 = vmatpush1.bf16.msra.mxu0 %v2699
  %2715 = vmatprep.subr.bf16.mxu0 0
  %2716 = vmatpush1.bf16.msra.mxu0 %v2701
  %2717 = vmatprep.subr.bf16.mxu0 0
  %2718 = vmatpush1.bf16.msra.mxu0 0
  %2719 = vmatprep.subr.bf16.mxu0 0
  %2720 = vmatpush1.bf16.msra.mxu0 0
  %2721 = vmatprep.subr.bf16.mxu0 0
  %2722 = vmatpush1.bf16.msra.mxu0 0
  %2723 = vmatprep.subr.bf16.mxu0 0
  %2724 = vmatpush1.bf16.msra.mxu0 0
  %2725 = vmatprep.subr.bf16.mxu0 0
  %2726 = vmatpush1.bf16.msra.mxu0 0
  %2727 = vmatprep.subr.bf16.mxu0 0
  %2728 = vmatpush1.bf16.msra.mxu0 0
  %2729 = vmatprep.subr.bf16.mxu0 0
  %2730 = vmatpush1.bf16.msra.mxu0 0
  %2731 = vmatprep.subr.bf16.mxu0 0
  %2732 = vmatpush1.bf16.msra.mxu0 0
  %2733 = vmatprep.subr.bf16.mxu0 0
  %2734 = vmatpush1.bf16.msra.mxu0 0
  %2735 = vmatprep.subr.bf16.mxu0 0
  %2736 = vmatpush1.bf16.msra.mxu0 0
  %2737 = vmatprep.subr.bf16.mxu0 0
  %2738 = vmatpush1.bf16.msra.mxu0 0
  %2739 = vmatprep.subr.bf16.mxu0 0
  %2740 = vmatpush1.bf16.msra.mxu0 0
  %2741 = vmatprep.mubr.bf16.mxu0 0
  %2742 = vmatmul.mubr.bf16.gmra.mrb[0].mxu0 %v2707
  %v2743 = vpop.f32.mrb[0].mxu0
  %v2744 = vadd.f32 0.0, %v2743
  %v2745 = vpop.f32.mrb[0].mxu0
  %v2746 = vpop.f32.mrb[0].mxu0
  %v2747 = vadd.f32 0.0, %v2746
  %v2748 = vpop.f32.mrb[0].mxu0
  %2749 = vdwg.mxu0
  %2750 = vmatprep.subr.bf16.mxu0 0
  %2751 = vmatpush1.bf16.msra.mxu0 %v57
  %2752 = vmatprep.subr.bf16.mxu0 0
  %2753 = vmatpush1.bf16.msra.mxu0 %v58
  %2754 = vmatprep.subr.bf16.mxu0 0
  %2755 = vmatpush1.bf16.msra.mxu0 %v59
  %2756 = vmatprep.subr.bf16.mxu0 0
  %2757 = vmatpush1.bf16.msra.mxu0 %v60
  %2758 = vmatprep.subr.bf16.mxu0 0
  %2759 = vmatpush1.bf16.msra.mxu0 0
  %2760 = vmatprep.subr.bf16.mxu0 0
  %2761 = vmatpush1.bf16.msra.mxu0 0
  %2762 = vmatprep.subr.bf16.mxu0 0
  %2763 = vmatpush1.bf16.msra.mxu0 0
  %2764 = vmatprep.subr.bf16.mxu0 0
  %2765 = vmatpush1.bf16.msra.mxu0 0
  %2766 = vmatprep.subr.bf16.mxu0 0
  %2767 = vmatpush1.bf16.msra.mxu0 0
  %2768 = vmatprep.subr.bf16.mxu0 0
  %2769 = vmatpush1.bf16.msra.mxu0 0
  %2770 = vmatprep.subr.bf16.mxu0 0
  %2771 = vmatpush1.bf16.msra.mxu0 0
  %2772 = vmatprep.subr.bf16.mxu0 0
  %2773 = vmatpush1.bf16.msra.mxu0 0
  %2774 = vmatprep.subr.bf16.mxu0 0
  %2775 = vmatpush1.bf16.msra.mxu0 0
  %2776 = vmatprep.subr.bf16.mxu0 0
  %2777 = vmatpush1.bf16.msra.mxu0 0
  %2778 = vmatprep.subr.bf16.mxu0 0
  %2779 = vmatpush1.bf16.msra.mxu0 0
  %2780 = vmatprep.subr.bf16.mxu0 0
  %2781 = vmatpush1.bf16.msra.mxu0 0
  %2782 = vmatprep.mubr.bf16.mxu0 0
  %2783 = vmatmul.mubr.bf16.gmra.mrb[0].mxu0 %v2707
  %v2784 = vpop.f32.mrb[0].mxu0
  %v2785 = vadd.f32 0.0, %v2784
  %v2786 = vpop.f32.mrb[0].mxu0
  %v2787 = vpop.f32.mrb[0].mxu0
  %v2788 = vadd.f32 0.0, %v2787
  %v2789 = vpop.f32.mrb[0].mxu0
  %2790 = vdwg.mxu0
  %v2791 = vrcp.pop %v2785
  %v2792 = vrcp.pop %v2788
  %v2793 = vmul.f32 %v2744, %v2791
  %v2794 = vmul.f32 %v2747, %v2792
  %v2795 = vpack.c.bf16 %v2794, %v2793
  %s2796 = scalar_lea.vmem %s5, 64
  %v2797 = vld [vmem:[%s2796] sm:$0xf]
  %v2798 = vld [vmem:[%s2796 + $0x4] sm:$0xf]
  %v2799 = vld [vmem:[%s2796 + $0x8] sm:$0xf]
  %v2800 = vld [vmem:[%s2796 + $0xc] sm:$0xf]
  %s2801 = scalar_lea.vmem %s6, 4
  %v2802 = vld [vmem:[%s2801] sm:$0x1]
  %v2804 = vlaneseq
  %v2805 = vshrl.u32 %v2804, 7
  %v2806 = vsub.s32 0, %v2805
  %v2807 = vrot.slane %v2802, %v2806
  %v2813 = vunpack.c.l.b16 %v2797
  %v2814 = vunpack.c.l.b16 %v2798
  %v2815 = vunpack.c.l.b16 %v2799
  %v2816 = vunpack.c.l.b16 %v2800
  %v2817 = vpack.c.b16 %v2814, %v2813
  %v2818 = vpack.c.b16 %v2816, %v2815
  %v2822 = vsel %vm61, %v2795, 0
  %2824 = vmatprep.subr.bf16.mxu0 0
  %2825 = vmatpush1.bf16.msra.mxu0 %v2817
  %2826 = vmatprep.subr.bf16.mxu0 0
  %2827 = vmatpush1.bf16.msra.mxu0 %v2818
  %2828 = vmatprep.subr.bf16.mxu0 0
  %2829 = vmatpush1.bf16.msra.mxu0 0
  %2830 = vmatprep.subr.bf16.mxu0 0
  %2831 = vmatpush1.bf16.msra.mxu0 0
  %2832 = vmatprep.subr.bf16.mxu0 0
  %2833 = vmatpush1.bf16.msra.mxu0 0
  %2834 = vmatprep.subr.bf16.mxu0 0
  %2835 = vmatpush1.bf16.msra.mxu0 0
  %2836 = vmatprep.subr.bf16.mxu0 0
  %2837 = vmatpush1.bf16.msra.mxu0 0
  %2838 = vmatprep.subr.bf16.mxu0 0
  %2839 = vmatpush1.bf16.msra.mxu0 0
  %2840 = vmatprep.subr.bf16.mxu0 0
  %2841 = vmatpush1.bf16.msra.mxu0 0
  %2842 = vmatprep.subr.bf16.mxu0 0
  %2843 = vmatpush1.bf16.msra.mxu0 0
  %2844 = vmatprep.subr.bf16.mxu0 0
  %2845 = vmatpush1.bf16.msra.mxu0 0
  %2846 = vmatprep.subr.bf16.mxu0 0
  %2847 = vmatpush1.bf16.msra.mxu0 0
  %2848 = vmatprep.subr.bf16.mxu0 0
  %2849 = vmatpush1.bf16.msra.mxu0 0
  %2850 = vmatprep.subr.bf16.mxu0 0
  %2851 = vmatpush1.bf16.msra.mxu0 0
  %2852 = vmatprep.subr.bf16.mxu0 0
  %2853 = vmatpush1.bf16.msra.mxu0 0
  %2854 = vmatprep.subr.bf16.mxu0 0
  %2855 = vmatpush1.bf16.msra.mxu0 0
  %2856 = vmatprep.mubr.bf16.mxu0 0
  %2857 = vmatmul.mubr.bf16.gmra.mrb[0].mxu0 %v2822
  %v2858 = vpop.f32.mrb[0].mxu0
  %v2859 = vadd.f32 %v2807, %v2858
  %v2860 = vpop.f32.mrb[0].mxu0
  %v2861 = vpop.f32.mrb[0].mxu0
  %v2862 = vadd.f32 %v2807, %v2861
  %v2863 = vpop.f32.mrb[0].mxu0
  %2864 = vdwg.mxu0
  %v2865 = vadd.f32 %v2486, %v2859
  %v2866 = vadd.f32 %v2487, %v2862
  %v2867 = vsel %vm61, %v2865, 0.0
  %2868 = vadd.xlane.f32.xlu0 %v2867
  %v2869 = vpop.xlane.xlu0 %2868
  %v2870 = vsel %vm61, %v2866, 0.0
  %2871 = vadd.xlane.f32.xlu0 %v2870
  %v2872 = vpop.xlane.xlu0 %2871
  %v2873 = vmul.f32 %v2869, %v68
  %v2874 = vmul.f32 %v2872, %v68
  %v2875 = vsub.f32 %v2865, %v2873
  %v2876 = vsub.f32 %v2866, %v2874
  %v2877 = vmul.f32 %v2875, %v2875
  %v2878 = vmul.f32 %v2876, %v2876
  %v2879 = vsel %vm61, %v2877, 0.0
  %2880 = vadd.xlane.f32.xlu0 %v2879
  %v2881 = vpop.xlane.xlu0 %2880
  %v2882 = vsel %vm61, %v2878, 0.0
  %2883 = vadd.xlane.f32.xlu0 %v2882
  %v2884 = vpop.xlane.xlu0 %2883
  %v2885 = vmul.f32 %v2881, %v68
  %v2886 = vmul.f32 %v2884, %v68
  %v2887 = vadd.f32 %v2885, 1e-05
  %v2888 = vadd.f32 %v2886, 1e-05
  %v2889 = vrsqrt.pop %v2887
  %v2890 = vrsqrt.pop %v2888
  %v2891 = vmul.f32 %v2875, %v2889
  %v2892 = vmul.f32 %v2876, %v2890
  %v2893 = vpack.c.bf16 %v2892, %v2891
  %s2894 = scalar_lea.vmem %s7, 64
  %v2895 = vld [vmem:[%s2894] sm:$0xf]
  %v2896 = vld [vmem:[%s2894 + $0x4] sm:$0xf]
  %v2897 = vld [vmem:[%s2894 + $0x8] sm:$0xf]
  %v2898 = vld [vmem:[%s2894 + $0xc] sm:$0xf]
  %s2899 = scalar_lea.vmem %s8, 4
  %v2900 = vld [vmem:[%s2899] sm:$0x1]
  %v2902 = vlaneseq
  %v2903 = vshrl.u32 %v2902, 7
  %v2904 = vsub.s32 0, %v2903
  %v2905 = vrot.slane %v2900, %v2904
  %v2911 = vunpack.c.l.b16 %v2895
  %v2912 = vunpack.c.l.b16 %v2896
  %v2913 = vunpack.c.l.b16 %v2897
  %v2914 = vunpack.c.l.b16 %v2898
  %v2915 = vpack.c.b16 %v2912, %v2911
  %v2916 = vpack.c.b16 %v2914, %v2913
  %v2920 = vsel %vm61, %v2893, 0
  %2922 = vmatprep.subr.bf16.mxu0 0
  %2923 = vmatpush1.bf16.msra.mxu0 %v2915
  %2924 = vmatprep.subr.bf16.mxu0 0
  %2925 = vmatpush1.bf16.msra.mxu0 %v2916
  %2926 = vmatprep.subr.bf16.mxu0 0
  %2927 = vmatpush1.bf16.msra.mxu0 0
  %2928 = vmatprep.subr.bf16.mxu0 0
  %2929 = vmatpush1.bf16.msra.mxu0 0
  %2930 = vmatprep.subr.bf16.mxu0 0
  %2931 = vmatpush1.bf16.msra.mxu0 0
  %2932 = vmatprep.subr.bf16.mxu0 0
  %2933 = vmatpush1.bf16.msra.mxu0 0
  %2934 = vmatprep.subr.bf16.mxu0 0
  %2935 = vmatpush1.bf16.msra.mxu0 0
  %2936 = vmatprep.subr.bf16.mxu0 0
  %2937 = vmatpush1.bf16.msra.mxu0 0
  %2938 = vmatprep.subr.bf16.mxu0 0
  %2939 = vmatpush1.bf16.msra.mxu0 0
  %2940 = vmatprep.subr.bf16.mxu0 0
  %2941 = vmatpush1.bf16.msra.mxu0 0
  %2942 = vmatprep.subr.bf16.mxu0 0
  %2943 = vmatpush1.bf16.msra.mxu0 0
  %2944 = vmatprep.subr.bf16.mxu0 0
  %2945 = vmatpush1.bf16.msra.mxu0 0
  %2946 = vmatprep.subr.bf16.mxu0 0
  %2947 = vmatpush1.bf16.msra.mxu0 0
  %2948 = vmatprep.subr.bf16.mxu0 0
  %2949 = vmatpush1.bf16.msra.mxu0 0
  %2950 = vmatprep.subr.bf16.mxu0 0
  %2951 = vmatpush1.bf16.msra.mxu0 0
  %2952 = vmatprep.subr.bf16.mxu0 0
  %2953 = vmatpush1.bf16.msra.mxu0 0
  %2954 = vmatprep.mubr.bf16.mxu0 0
  %2955 = vmatmul.mubr.bf16.gmra.mrb[0].mxu0 %v2920
  %v2956 = vpop.f32.mrb[0].mxu0
  %v2957 = vadd.f32 %v2905, %v2956
  %v2958 = vpop.f32.mrb[0].mxu0
  %v2959 = vpop.f32.mrb[0].mxu0
  %v2960 = vadd.f32 %v2905, %v2959
  %v2961 = vpop.f32.mrb[0].mxu0
  %2962 = vdwg.mxu0
  %v2963 = vmax.f32 %v2957, 0.0
  %v2964 = vmax.f32 %v2960, 0.0
  %v2965 = vpack.c.bf16 %v2964, %v2963
  %s2966 = scalar_lea.vmem %s9, 256
  %v2967 = vld [vmem:[%s2966] sm:$0xf]
  %v2968 = vld [vmem:[%s2966 + $0x4] sm:$0xf]
  %v2969 = vld [vmem:[%s2966 + $0x8] sm:$0xf]
  %v2970 = vld [vmem:[%s2966 + $0xc] sm:$0xf]
  %v2971 = vld [vmem:[%s2966 + $0x10] sm:$0xf]
  %v2972 = vld [vmem:[%s2966 + $0x14] sm:$0xf]
  %v2973 = vld [vmem:[%s2966 + $0x18] sm:$0xf]
  %v2974 = vld [vmem:[%s2966 + $0x1c] sm:$0xf]
  %v2975 = vld [vmem:[%s2966 + $0x20] sm:$0xf]
  %v2976 = vld [vmem:[%s2966 + $0x24] sm:$0xf]
  %v2977 = vld [vmem:[%s2966 + $0x28] sm:$0xf]
  %v2978 = vld [vmem:[%s2966 + $0x2c] sm:$0xf]
  %v2979 = vld [vmem:[%s2966 + $0x30] sm:$0xf]
  %v2980 = vld [vmem:[%s2966 + $0x34] sm:$0xf]
  %v2981 = vld [vmem:[%s2966 + $0x38] sm:$0xf]
  %v2982 = vld [vmem:[%s2966 + $0x3c] sm:$0xf]
  %s2983 = scalar_lea.vmem %s10, 4
  %v2984 = vld [vmem:[%s2983] sm:$0x1]
  %v2986 = vlaneseq
  %v2987 = vshrl.u32 %v2986, 7
  %v2988 = vsub.s32 0, %v2987
  %v2989 = vrot.slane %v2984, %v2988
  %v3007 = vunpack.c.l.b16 %v2967
  %v3008 = vunpack.c.l.b16 %v2968
  %v3009 = vunpack.c.l.b16 %v2969
  %v3010 = vunpack.c.l.b16 %v2970
  %v3011 = vunpack.c.l.b16 %v2971
  %v3012 = vunpack.c.l.b16 %v2972
  %v3013 = vunpack.c.l.b16 %v2973
  %v3014 = vunpack.c.l.b16 %v2974
  %v3015 = vunpack.c.l.b16 %v2975
  %v3016 = vunpack.c.l.b16 %v2976
  %v3017 = vunpack.c.l.b16 %v2977
  %v3018 = vunpack.c.l.b16 %v2978
  %v3019 = vunpack.c.l.b16 %v2979
  %v3020 = vunpack.c.l.b16 %v2980
  %v3021 = vunpack.c.l.b16 %v2981
  %v3022 = vunpack.c.l.b16 %v2982
  %v3023 = vpack.c.b16 %v3008, %v3007
  %v3024 = vpack.c.b16 %v3010, %v3009
  %v3025 = vpack.c.b16 %v3012, %v3011
  %v3026 = vpack.c.b16 %v3014, %v3013
  %v3027 = vpack.c.b16 %v3016, %v3015
  %v3028 = vpack.c.b16 %v3018, %v3017
  %v3029 = vpack.c.b16 %v3020, %v3019
  %v3030 = vpack.c.b16 %v3022, %v3021
  %3039 = vmatprep.subr.bf16.mxu0 0
  %3040 = vmatpush1.bf16.msra.mxu0 %v3023
  %3041 = vmatprep.subr.bf16.mxu0 0
  %3042 = vmatpush1.bf16.msra.mxu0 %v3024
  %3043 = vmatprep.subr.bf16.mxu0 0
  %3044 = vmatpush1.bf16.msra.mxu0 %v3025
  %3045 = vmatprep.subr.bf16.mxu0 0
  %3046 = vmatpush1.bf16.msra.mxu0 %v3026
  %3047 = vmatprep.subr.bf16.mxu0 0
  %3048 = vmatpush1.bf16.msra.mxu0 %v3027
  %3049 = vmatprep.subr.bf16.mxu0 0
  %3050 = vmatpush1.bf16.msra.mxu0 %v3028
  %3051 = vmatprep.subr.bf16.mxu0 0
  %3052 = vmatpush1.bf16.msra.mxu0 %v3029
  %3053 = vmatprep.subr.bf16.mxu0 0
  %3054 = vmatpush1.bf16.msra.mxu0 %v3030
  %3055 = vmatprep.subr.bf16.mxu0 0
  %3056 = vmatpush1.bf16.msra.mxu0 0
  %3057 = vmatprep.subr.bf16.mxu0 0
  %3058 = vmatpush1.bf16.msra.mxu0 0
  %3059 = vmatprep.subr.bf16.mxu0 0
  %3060 = vmatpush1.bf16.msra.mxu0 0
  %3061 = vmatprep.subr.bf16.mxu0 0
  %3062 = vmatpush1.bf16.msra.mxu0 0
  %3063 = vmatprep.subr.bf16.mxu0 0
  %3064 = vmatpush1.bf16.msra.mxu0 0
  %3065 = vmatprep.subr.bf16.mxu0 0
  %3066 = vmatpush1.bf16.msra.mxu0 0
  %3067 = vmatprep.subr.bf16.mxu0 0
  %3068 = vmatpush1.bf16.msra.mxu0 0
  %3069 = vmatprep.subr.bf16.mxu0 0
  %3070 = vmatpush1.bf16.msra.mxu0 0
  %3071 = vmatprep.mubr.bf16.mxu0 0
  %3072 = vmatmul.mubr.bf16.gmra.mrb[0].mxu0 %v2965
  %v3073 = vpop.f32.mrb[0].mxu0
  %v3074 = vadd.f32 %v2989, %v3073
  %v3075 = vpop.f32.mrb[0].mxu0
  %v3076 = vpop.f32.mrb[0].mxu0
  %v3077 = vadd.f32 %v2989, %v3076
  %v3078 = vpop.f32.mrb[0].mxu0
  %3079 = vdwg.mxu0
  %v3080 = vadd.f32 %v2865, %v3074
  %v3081 = vadd.f32 %v2866, %v3077
  %v3082 = vsel %vm61, %v3080, 0.0
  %3083 = vadd.xlane.f32.xlu0 %v3082
  %v3084 = vpop.xlane.xlu0 %3083
  %v3085 = vsel %vm61, %v3081, 0.0
  %3086 = vadd.xlane.f32.xlu0 %v3085
  %v3087 = vpop.xlane.xlu0 %3086
  %v3088 = vmul.f32 %v3084, %v68
  %v3089 = vmul.f32 %v3087, %v68
  %v3090 = vsub.f32 %v3080, %v3088
  %v3091 = vsub.f32 %v3081, %v3089
  %v3092 = vmul.f32 %v3090, %v3090
  %v3093 = vmul.f32 %v3091, %v3091
  %v3094 = vsel %vm61, %v3092, 0.0
  %3095 = vadd.xlane.f32.xlu0 %v3094
  %v3096 = vpop.xlane.xlu0 %3095
  %v3097 = vsel %vm61, %v3093, 0.0
  %3098 = vadd.xlane.f32.xlu0 %v3097
  %v3099 = vpop.xlane.xlu0 %3098
  %v3100 = vmul.f32 %v3096, %v68
  %v3101 = vmul.f32 %v3099, %v68
  %v3102 = vadd.f32 %v3100, 1e-05
  %v3103 = vadd.f32 %v3101, 1e-05
  %v3104 = vrsqrt.pop %v3102
  %v3105 = vrsqrt.pop %v3103
  %v3106 = vmul.f32 %v3090, %v3104
  %v3107 = vmul.f32 %v3091, %v3105
  %v3108 = vpack.c.bf16 %v3107, %v3106
  %s3109 = scalar_lea.vmem %s3, 80
  %v3110 = vld [vmem:[%s3109] sm:$0xf]
  %v3111 = vld [vmem:[%s3109 + $0x4] sm:$0xf]
  %v3112 = vld [vmem:[%s3109 + $0x8] sm:$0xf]
  %v3113 = vld [vmem:[%s3109 + $0xc] sm:$0xf]
  %s3114 = scalar_lea.vmem %s4, 5
  %v3115 = vld [vmem:[%s3114] sm:$0x1]
  %v3117 = vlaneseq
  %v3118 = vshrl.u32 %v3117, 7
  %v3119 = vsub.s32 0, %v3118
  %v3120 = vrot.slane %v3115, %v3119
  %v3126 = vunpack.c.l.b16 %v3110
  %v3127 = vunpack.c.l.b16 %v3111
  %v3128 = vunpack.c.l.b16 %v3112
  %v3129 = vunpack.c.l.b16 %v3113
  %v3130 = vpack.c.b16 %v3127, %v3126
  %v3131 = vpack.c.b16 %v3129, %v3128
  %v3135 = vsel %vm61, %v3108, 0
  %3137 = vmatprep.subr.bf16.mxu0 0
  %3138 = vmatpush1.bf16.msra.mxu0 %v3130
  %3139 = vmatprep.subr.bf16.mxu0 0
  %3140 = vmatpush1.bf16.msra.mxu0 %v3131
  %3141 = vmatprep.subr.bf16.mxu0 0
  %3142 = vmatpush1.bf16.msra.mxu0 0
  %3143 = vmatprep.subr.bf16.mxu0 0
  %3144 = vmatpush1.bf16.msra.mxu0 0
  %3145 = vmatprep.subr.bf16.mxu0 0
  %3146 = vmatpush1.bf16.msra.mxu0 0
  %3147 = vmatprep.subr.bf16.mxu0 0
  %3148 = vmatpush1.bf16.msra.mxu0 0
  %3149 = vmatprep.subr.bf16.mxu0 0
  %3150 = vmatpush1.bf16.msra.mxu0 0
  %3151 = vmatprep.subr.bf16.mxu0 0
  %3152 = vmatpush1.bf16.msra.mxu0 0
  %3153 = vmatprep.subr.bf16.mxu0 0
  %3154 = vmatpush1.bf16.msra.mxu0 0
  %3155 = vmatprep.subr.bf16.mxu0 0
  %3156 = vmatpush1.bf16.msra.mxu0 0
  %3157 = vmatprep.subr.bf16.mxu0 0
  %3158 = vmatpush1.bf16.msra.mxu0 0
  %3159 = vmatprep.subr.bf16.mxu0 0
  %3160 = vmatpush1.bf16.msra.mxu0 0
  %3161 = vmatprep.subr.bf16.mxu0 0
  %3162 = vmatpush1.bf16.msra.mxu0 0
  %3163 = vmatprep.subr.bf16.mxu0 0
  %3164 = vmatpush1.bf16.msra.mxu0 0
  %3165 = vmatprep.subr.bf16.mxu0 0
  %3166 = vmatpush1.bf16.msra.mxu0 0
  %3167 = vmatprep.subr.bf16.mxu0 0
  %3168 = vmatpush1.bf16.msra.mxu0 0
  %3169 = vmatprep.mubr.bf16.mxu0 0
  %3170 = vmatmul.mubr.bf16.gmra.mrb[0].mxu0 %v3135
  %v3171 = vpop.f32.mrb[0].mxu0
  %v3172 = vadd.f32 %v3120, %v3171
  %v3173 = vpop.f32.mrb[0].mxu0
  %v3174 = vpop.f32.mrb[0].mxu0
  %v3175 = vadd.f32 %v3120, %v3174
  %v3176 = vpop.f32.mrb[0].mxu0
  %3177 = vdwg.mxu0
  %v3178 = vmul.f32 %v3172, %v166
  %v3179 = vmul.f32 %v3175, %v168
  %v3180 = vmul.f32 %v3172, %v170
  %v3181 = vmul.f32 %v3175, %v172
  %v3182 = vmul.f32 %v3172, %v174
  %v3183 = vmul.f32 %v3175, %v176
  %v3184 = vmul.f32 %v3172, %v178
  %v3185 = vmul.f32 %v3175, %v180
  %v3186 = vpack.c.bf16 %v3179, %v3178
  %v3187 = vpack.c.bf16 %v3181, %v3180
  %v3188 = vpack.c.bf16 %v3183, %v3182
  %v3189 = vpack.c.bf16 %v3185, %v3184
  %v3190 = vpack.c.bf16 %v3175, %v3172
  %3195 = vrot.lane.b32.xlu0 %v3186, 96
  %v3196 = vpop.permute.xlu0 %3195
  %3197 = vrot.lane.b32.xlu0 %v3187, 96
  %v3198 = vpop.permute.xlu0 %3197
  %3199 = vrot.lane.b32.xlu0 %v3188, 96
  %v3200 = vpop.permute.xlu0 %3199
  %3201 = vrot.lane.b32.xlu0 %v3189, 96
  %v3202 = vpop.permute.xlu0 %3201
  %v3204 = vsel %vm61, %v3190, 0
  %v3207 = vsel %vm61, %v3196, 0
  %v3210 = vsel %vm61, %v3198, 0
  %v3213 = vsel %vm61, %v3200, 0
  %v3216 = vsel %vm61, %v3202, 0
  %3218 = vmatprep.subr.bf16.mxu0 0
  %3219 = vmatpush1.bf16.xpose.msra.mxu0 %v3207
  %3220 = vmatprep.subr.bf16.mxu0 0
  %3221 = vmatpush1.bf16.xpose.msra.mxu0 %v3210
  %3222 = vmatprep.subr.bf16.mxu0 0
  %3223 = vmatpush1.bf16.xpose.msra.mxu0 %v3213
  %3224 = vmatprep.subr.bf16.mxu0 0
  %3225 = vmatpush1.bf16.xpose.msra.mxu0 %v3216
  %3226 = vmatprep.subr.bf16.mxu0 0
  %3227 = vmatpush1.bf16.xpose.msra.mxu0 0
  %3228 = vmatprep.subr.bf16.mxu0 0
  %3229 = vmatpush1.bf16.xpose.msra.mxu0 0
  %3230 = vmatprep.subr.bf16.mxu0 0
  %3231 = vmatpush1.bf16.xpose.msra.mxu0 0
  %3232 = vmatprep.subr.bf16.mxu0 0
  %3233 = vmatpush1.bf16.xpose.msra.mxu0 0
  %3234 = vmatprep.subr.bf16.mxu0 0
  %3235 = vmatpush1.bf16.xpose.msra.mxu0 0
  %3236 = vmatprep.subr.bf16.mxu0 0
  %3237 = vmatpush1.bf16.xpose.msra.mxu0 0
  %3238 = vmatprep.subr.bf16.mxu0 0
  %3239 = vmatpush1.bf16.xpose.msra.mxu0 0
  %3240 = vmatprep.subr.bf16.mxu0 0
  %3241 = vmatpush1.bf16.xpose.msra.mxu0 0
  %3242 = vmatprep.subr.bf16.mxu0 0
  %3243 = vmatpush1.bf16.xpose.msra.mxu0 0
  %3244 = vmatprep.subr.bf16.mxu0 0
  %3245 = vmatpush1.bf16.xpose.msra.mxu0 0
  %3246 = vmatprep.subr.bf16.mxu0 0
  %3247 = vmatpush1.bf16.xpose.msra.mxu0 0
  %3248 = vmatprep.subr.bf16.mxu0 0
  %3249 = vmatpush1.bf16.xpose.msra.mxu0 0
  %3250 = vmatprep.mubr.bf16.mxu0 0
  %3251 = vmatmul.mubr.bf16.gmra.mrb[0].mxu0 %v3204
  %v3252 = vpop.f32.mrb[0].mxu0
  %v3253 = vadd.f32 %v47, %v3252
  %v3254 = vpop.f32.mrb[0].mxu0
  %v3255 = vpop.f32.mrb[0].mxu0
  %v3256 = vadd.f32 %v48, %v3255
  %v3257 = vpop.f32.mrb[0].mxu0
  %3258 = vdwg.mxu0
  %v3259 = vsel %vm270, %v3253, -inf
  %3260 = vmax.xlane.f32.xlu0 %v3259
  %v3261 = vpop.xlane.xlu0 %3260
  %v3262 = vsel %vm270, %v3256, -inf
  %3263 = vmax.xlane.f32.xlu0 %v3262
  %v3264 = vpop.xlane.xlu0 %3263
  %v3265 = vsub.f32 %v3253, %v3261
  %v3266 = vsub.f32 %v3256, %v3264
  %v3267 = vmul.f32 %v3265, 1.442695
  %v3268 = vpow.pop %v3267
  %v3269 = vmul.f32 %v3266, 1.442695
  %v3270 = vpow.pop %v3269
  %v3271 = vpack.c.bf16 %v3270, %v3268
  %v3272 = vmul.f32 %v3172, %v285
  %v3273 = vmul.f32 %v3175, %v287
  %v3274 = vmul.f32 %v3172, %v289
  %v3275 = vmul.f32 %v3175, %v291
  %v3276 = vmul.f32 %v3172, %v293
  %v3277 = vmul.f32 %v3175, %v295
  %v3278 = vmul.f32 %v3172, %v297
  %v3279 = vmul.f32 %v3175, %v299
  %v3280 = vpack.c.bf16 %v3273, %v3272
  %v3281 = vpack.c.bf16 %v3275, %v3274
  %v3282 = vpack.c.bf16 %v3277, %v3276
  %v3283 = vpack.c.bf16 %v3279, %v3278
  %3288 = vrot.lane.b32.xlu0 %v3280, 64
  %v3289 = vpop.permute.xlu0 %3288
  %3290 = vrot.lane.b32.xlu0 %v3281, 64
  %v3291 = vpop.permute.xlu0 %3290
  %3292 = vrot.lane.b32.xlu0 %v3282, 64
  %v3293 = vpop.permute.xlu0 %3292
  %3294 = vrot.lane.b32.xlu0 %v3283, 64
  %v3295 = vpop.permute.xlu0 %3294
  %v3301 = vsel %vm270, %v3271, 0
  %3303 = vmatprep.subr.bf16.mxu0 0
  %3304 = vmatpush1.bf16.msra.mxu0 %v3289
  %3305 = vmatprep.subr.bf16.mxu0 0
  %3306 = vmatpush1.bf16.msra.mxu0 %v3291
  %3307 = vmatprep.subr.bf16.mxu0 0
  %3308 = vmatpush1.bf16.msra.mxu0 %v3293
  %3309 = vmatprep.subr.bf16.mxu0 0
  %3310 = vmatpush1.bf16.msra.mxu0 %v3295
  %3311 = vmatprep.subr.bf16.mxu0 0
  %3312 = vmatpush1.bf16.msra.mxu0 0
  %3313 = vmatprep.subr.bf16.mxu0 0
  %3314 = vmatpush1.bf16.msra.mxu0 0
  %3315 = vmatprep.subr.bf16.mxu0 0
  %3316 = vmatpush1.bf16.msra.mxu0 0
  %3317 = vmatprep.subr.bf16.mxu0 0
  %3318 = vmatpush1.bf16.msra.mxu0 0
  %3319 = vmatprep.subr.bf16.mxu0 0
  %3320 = vmatpush1.bf16.msra.mxu0 0
  %3321 = vmatprep.subr.bf16.mxu0 0
  %3322 = vmatpush1.bf16.msra.mxu0 0
  %3323 = vmatprep.subr.bf16.mxu0 0
  %3324 = vmatpush1.bf16.msra.mxu0 0
  %3325 = vmatprep.subr.bf16.mxu0 0
  %3326 = vmatpush1.bf16.msra.mxu0 0
  %3327 = vmatprep.subr.bf16.mxu0 0
  %3328 = vmatpush1.bf16.msra.mxu0 0
  %3329 = vmatprep.subr.bf16.mxu0 0
  %3330 = vmatpush1.bf16.msra.mxu0 0
  %3331 = vmatprep.subr.bf16.mxu0 0
  %3332 = vmatpush1.bf16.msra.mxu0 0
  %3333 = vmatprep.subr.bf16.mxu0 0
  %3334 = vmatpush1.bf16.msra.mxu0 0
  %3335 = vmatprep.mubr.bf16.mxu0 0
  %3336 = vmatmul.mubr.bf16.gmra.mrb[0].mxu0 %v3301
  %v3337 = vpop.f32.mrb[0].mxu0
  %v3338 = vadd.f32 0.0, %v3337
  %v3339 = vpop.f32.mrb[0].mxu0
  %v3340 = vpop.f32.mrb[0].mxu0
  %v3341 = vadd.f32 0.0, %v3340
  %v3342 = vpop.f32.mrb[0].mxu0
  %3343 = vdwg.mxu0
  %3344 = vmatprep.subr.bf16.mxu0 0
  %3345 = vmatpush1.bf16.msra.mxu0 %v57
  %3346 = vmatprep.subr.bf16.mxu0 0
  %3347 = vmatpush1.bf16.msra.mxu0 %v58
  %3348 = vmatprep.subr.bf16.mxu0 0
  %3349 = vmatpush1.bf16.msra.mxu0 %v59
  %3350 = vmatprep.subr.bf16.mxu0 0
  %3351 = vmatpush1.bf16.msra.mxu0 %v60
  %3352 = vmatprep.subr.bf16.mxu0 0
  %3353 = vmatpush1.bf16.msra.mxu0 0
  %3354 = vmatprep.subr.bf16.mxu0 0
  %3355 = vmatpush1.bf16.msra.mxu0 0
  %3356 = vmatprep.subr.bf16.mxu0 0
  %3357 = vmatpush1.bf16.msra.mxu0 0
  %3358 = vmatprep.subr.bf16.mxu0 0
  %3359 = vmatpush1.bf16.msra.mxu0 0
  %3360 = vmatprep.subr.bf16.mxu0 0
  %3361 = vmatpush1.bf16.msra.mxu0 0
  %3362 = vmatprep.subr.bf16.mxu0 0
  %3363 = vmatpush1.bf16.msra.mxu0 0
  %3364 = vmatprep.subr.bf16.mxu0 0
  %3365 = vmatpush1.bf16.msra.mxu0 0
  %3366 = vmatprep.subr.bf16.mxu0 0
  %3367 = vmatpush1.bf16.msra.mxu0 0
  %3368 = vmatprep.subr.bf16.mxu0 0
  %3369 = vmatpush1.bf16.msra.mxu0 0
  %3370 = vmatprep.subr.bf16.mxu0 0
  %3371 = vmatpush1.bf16.msra.mxu0 0
  %3372 = vmatprep.subr.bf16.mxu0 0
  %3373 = vmatpush1.bf16.msra.mxu0 0
  %3374 = vmatprep.subr.bf16.mxu0 0
  %3375 = vmatpush1.bf16.msra.mxu0 0
  %3376 = vmatprep.mubr.bf16.mxu0 0
  %3377 = vmatmul.mubr.bf16.gmra.mrb[0].mxu0 %v3301
  %v3378 = vpop.f32.mrb[0].mxu0
  %v3379 = vadd.f32 0.0, %v3378
  %v3380 = vpop.f32.mrb[0].mxu0
  %v3381 = vpop.f32.mrb[0].mxu0
  %v3382 = vadd.f32 0.0, %v3381
  %v3383 = vpop.f32.mrb[0].mxu0
  %3384 = vdwg.mxu0
  %v3385 = vrcp.pop %v3379
  %v3386 = vrcp.pop %v3382
  %v3387 = vmul.f32 %v3338, %v3385
  %v3388 = vmul.f32 %v3341, %v3386
  %v3389 = vpack.c.bf16 %v3388, %v3387
  %s3390 = scalar_lea.vmem %s5, 80
  %v3391 = vld [vmem:[%s3390] sm:$0xf]
  %v3392 = vld [vmem:[%s3390 + $0x4] sm:$0xf]
  %v3393 = vld [vmem:[%s3390 + $0x8] sm:$0xf]
  %v3394 = vld [vmem:[%s3390 + $0xc] sm:$0xf]
  %s3395 = scalar_lea.vmem %s6, 5
  %v3396 = vld [vmem:[%s3395] sm:$0x1]
  %v3398 = vlaneseq
  %v3399 = vshrl.u32 %v3398, 7
  %v3400 = vsub.s32 0, %v3399
  %v3401 = vrot.slane %v3396, %v3400
  %v3407 = vunpack.c.l.b16 %v3391
  %v3408 = vunpack.c.l.b16 %v3392
  %v3409 = vunpack.c.l.b16 %v3393
  %v3410 = vunpack.c.l.b16 %v3394
  %v3411 = vpack.c.b16 %v3408, %v3407
  %v3412 = vpack.c.b16 %v3410, %v3409
  %v3416 = vsel %vm61, %v3389, 0
  %3418 = vmatprep.subr.bf16.mxu0 0
  %3419 = vmatpush1.bf16.msra.mxu0 %v3411
  %3420 = vmatprep.subr.bf16.mxu0 0
  %3421 = vmatpush1.bf16.msra.mxu0 %v3412
  %3422 = vmatprep.subr.bf16.mxu0 0
  %3423 = vmatpush1.bf16.msra.mxu0 0
  %3424 = vmatprep.subr.bf16.mxu0 0
  %3425 = vmatpush1.bf16.msra.mxu0 0
  %3426 = vmatprep.subr.bf16.mxu0 0
  %3427 = vmatpush1.bf16.msra.mxu0 0
  %3428 = vmatprep.subr.bf16.mxu0 0
  %3429 = vmatpush1.bf16.msra.mxu0 0
  %3430 = vmatprep.subr.bf16.mxu0 0
  %3431 = vmatpush1.bf16.msra.mxu0 0
  %3432 = vmatprep.subr.bf16.mxu0 0
  %3433 = vmatpush1.bf16.msra.mxu0 0
  %3434 = vmatprep.subr.bf16.mxu0 0
  %3435 = vmatpush1.bf16.msra.mxu0 0
  %3436 = vmatprep.subr.bf16.mxu0 0
  %3437 = vmatpush1.bf16.msra.mxu0 0
  %3438 = vmatprep.subr.bf16.mxu0 0
  %3439 = vmatpush1.bf16.msra.mxu0 0
  %3440 = vmatprep.subr.bf16.mxu0 0
  %3441 = vmatpush1.bf16.msra.mxu0 0
  %3442 = vmatprep.subr.bf16.mxu0 0
  %3443 = vmatpush1.bf16.msra.mxu0 0
  %3444 = vmatprep.subr.bf16.mxu0 0
  %3445 = vmatpush1.bf16.msra.mxu0 0
  %3446 = vmatprep.subr.bf16.mxu0 0
  %3447 = vmatpush1.bf16.msra.mxu0 0
  %3448 = vmatprep.subr.bf16.mxu0 0
  %3449 = vmatpush1.bf16.msra.mxu0 0
  %3450 = vmatprep.mubr.bf16.mxu0 0
  %3451 = vmatmul.mubr.bf16.gmra.mrb[0].mxu0 %v3416
  %v3452 = vpop.f32.mrb[0].mxu0
  %v3453 = vadd.f32 %v3401, %v3452
  %v3454 = vpop.f32.mrb[0].mxu0
  %v3455 = vpop.f32.mrb[0].mxu0
  %v3456 = vadd.f32 %v3401, %v3455
  %v3457 = vpop.f32.mrb[0].mxu0
  %3458 = vdwg.mxu0
  %v3459 = vadd.f32 %v3080, %v3453
  %v3460 = vadd.f32 %v3081, %v3456
  %v3461 = vsel %vm61, %v3459, 0.0
  %3462 = vadd.xlane.f32.xlu0 %v3461
  %v3463 = vpop.xlane.xlu0 %3462
  %v3464 = vsel %vm61, %v3460, 0.0
  %3465 = vadd.xlane.f32.xlu0 %v3464
  %v3466 = vpop.xlane.xlu0 %3465
  %v3467 = vmul.f32 %v3463, %v68
  %v3468 = vmul.f32 %v3466, %v68
  %v3469 = vsub.f32 %v3459, %v3467
  %v3470 = vsub.f32 %v3460, %v3468
  %v3471 = vmul.f32 %v3469, %v3469
  %v3472 = vmul.f32 %v3470, %v3470
  %v3473 = vsel %vm61, %v3471, 0.0
  %3474 = vadd.xlane.f32.xlu0 %v3473
  %v3475 = vpop.xlane.xlu0 %3474
  %v3476 = vsel %vm61, %v3472, 0.0
  %3477 = vadd.xlane.f32.xlu0 %v3476
  %v3478 = vpop.xlane.xlu0 %3477
  %v3479 = vmul.f32 %v3475, %v68
  %v3480 = vmul.f32 %v3478, %v68
  %v3481 = vadd.f32 %v3479, 1e-05
  %v3482 = vadd.f32 %v3480, 1e-05
  %v3483 = vrsqrt.pop %v3481
  %v3484 = vrsqrt.pop %v3482
  %v3485 = vmul.f32 %v3469, %v3483
  %v3486 = vmul.f32 %v3470, %v3484
  %v3487 = vpack.c.bf16 %v3486, %v3485
  %s3488 = scalar_lea.vmem %s7, 80
  %v3489 = vld [vmem:[%s3488] sm:$0xf]
  %v3490 = vld [vmem:[%s3488 + $0x4] sm:$0xf]
  %v3491 = vld [vmem:[%s3488 + $0x8] sm:$0xf]
  %v3492 = vld [vmem:[%s3488 + $0xc] sm:$0xf]
  %s3493 = scalar_lea.vmem %s8, 5
  %v3494 = vld [vmem:[%s3493] sm:$0x1]
  %v3496 = vlaneseq
  %v3497 = vshrl.u32 %v3496, 7
  %v3498 = vsub.s32 0, %v3497
  %v3499 = vrot.slane %v3494, %v3498
  %v3505 = vunpack.c.l.b16 %v3489
  %v3506 = vunpack.c.l.b16 %v3490
  %v3507 = vunpack.c.l.b16 %v3491
  %v3508 = vunpack.c.l.b16 %v3492
  %v3509 = vpack.c.b16 %v3506, %v3505
  %v3510 = vpack.c.b16 %v3508, %v3507
  %v3514 = vsel %vm61, %v3487, 0
  %3516 = vmatprep.subr.bf16.mxu0 0
  %3517 = vmatpush1.bf16.msra.mxu0 %v3509
  %3518 = vmatprep.subr.bf16.mxu0 0
  %3519 = vmatpush1.bf16.msra.mxu0 %v3510
  %3520 = vmatprep.subr.bf16.mxu0 0
  %3521 = vmatpush1.bf16.msra.mxu0 0
  %3522 = vmatprep.subr.bf16.mxu0 0
  %3523 = vmatpush1.bf16.msra.mxu0 0
  %3524 = vmatprep.subr.bf16.mxu0 0
  %3525 = vmatpush1.bf16.msra.mxu0 0
  %3526 = vmatprep.subr.bf16.mxu0 0
  %3527 = vmatpush1.bf16.msra.mxu0 0
  %3528 = vmatprep.subr.bf16.mxu0 0
  %3529 = vmatpush1.bf16.msra.mxu0 0
  %3530 = vmatprep.subr.bf16.mxu0 0
  %3531 = vmatpush1.bf16.msra.mxu0 0
  %3532 = vmatprep.subr.bf16.mxu0 0
  %3533 = vmatpush1.bf16.msra.mxu0 0
  %3534 = vmatprep.subr.bf16.mxu0 0
  %3535 = vmatpush1.bf16.msra.mxu0 0
  %3536 = vmatprep.subr.bf16.mxu0 0
  %3537 = vmatpush1.bf16.msra.mxu0 0
  %3538 = vmatprep.subr.bf16.mxu0 0
  %3539 = vmatpush1.bf16.msra.mxu0 0
  %3540 = vmatprep.subr.bf16.mxu0 0
  %3541 = vmatpush1.bf16.msra.mxu0 0
  %3542 = vmatprep.subr.bf16.mxu0 0
  %3543 = vmatpush1.bf16.msra.mxu0 0
  %3544 = vmatprep.subr.bf16.mxu0 0
  %3545 = vmatpush1.bf16.msra.mxu0 0
  %3546 = vmatprep.subr.bf16.mxu0 0
  %3547 = vmatpush1.bf16.msra.mxu0 0
  %3548 = vmatprep.mubr.bf16.mxu0 0
  %3549 = vmatmul.mubr.bf16.gmra.mrb[0].mxu0 %v3514
  %v3550 = vpop.f32.mrb[0].mxu0
  %v3551 = vadd.f32 %v3499, %v3550
  %v3552 = vpop.f32.mrb[0].mxu0
  %v3553 = vpop.f32.mrb[0].mxu0
  %v3554 = vadd.f32 %v3499, %v3553
  %v3555 = vpop.f32.mrb[0].mxu0
  %3556 = vdwg.mxu0
  %v3557 = vmax.f32 %v3551, 0.0
  %v3558 = vmax.f32 %v3554, 0.0
  %v3559 = vpack.c.bf16 %v3558, %v3557
  %s3560 = scalar_lea.vmem %s9, 320
  %v3561 = vld [vmem:[%s3560] sm:$0xf]
  %v3562 = vld [vmem:[%s3560 + $0x4] sm:$0xf]
  %v3563 = vld [vmem:[%s3560 + $0x8] sm:$0xf]
  %v3564 = vld [vmem:[%s3560 + $0xc] sm:$0xf]
  %v3565 = vld [vmem:[%s3560 + $0x10] sm:$0xf]
  %v3566 = vld [vmem:[%s3560 + $0x14] sm:$0xf]
  %v3567 = vld [vmem:[%s3560 + $0x18] sm:$0xf]
  %v3568 = vld [vmem:[%s3560 + $0x1c] sm:$0xf]
  %v3569 = vld [vmem:[%s3560 + $0x20] sm:$0xf]
  %v3570 = vld [vmem:[%s3560 + $0x24] sm:$0xf]
  %v3571 = vld [vmem:[%s3560 + $0x28] sm:$0xf]
  %v3572 = vld [vmem:[%s3560 + $0x2c] sm:$0xf]
  %v3573 = vld [vmem:[%s3560 + $0x30] sm:$0xf]
  %v3574 = vld [vmem:[%s3560 + $0x34] sm:$0xf]
  %v3575 = vld [vmem:[%s3560 + $0x38] sm:$0xf]
  %v3576 = vld [vmem:[%s3560 + $0x3c] sm:$0xf]
  %s3577 = scalar_lea.vmem %s10, 5
  %v3578 = vld [vmem:[%s3577] sm:$0x1]
  %v3580 = vlaneseq
  %v3581 = vshrl.u32 %v3580, 7
  %v3582 = vsub.s32 0, %v3581
  %v3583 = vrot.slane %v3578, %v3582
  %v3601 = vunpack.c.l.b16 %v3561
  %v3602 = vunpack.c.l.b16 %v3562
  %v3603 = vunpack.c.l.b16 %v3563
  %v3604 = vunpack.c.l.b16 %v3564
  %v3605 = vunpack.c.l.b16 %v3565
  %v3606 = vunpack.c.l.b16 %v3566
  %v3607 = vunpack.c.l.b16 %v3567
  %v3608 = vunpack.c.l.b16 %v3568
  %v3609 = vunpack.c.l.b16 %v3569
  %v3610 = vunpack.c.l.b16 %v3570
  %v3611 = vunpack.c.l.b16 %v3571
  %v3612 = vunpack.c.l.b16 %v3572
  %v3613 = vunpack.c.l.b16 %v3573
  %v3614 = vunpack.c.l.b16 %v3574
  %v3615 = vunpack.c.l.b16 %v3575
  %v3616 = vunpack.c.l.b16 %v3576
  %v3617 = vpack.c.b16 %v3602, %v3601
  %v3618 = vpack.c.b16 %v3604, %v3603
  %v3619 = vpack.c.b16 %v3606, %v3605
  %v3620 = vpack.c.b16 %v3608, %v3607
  %v3621 = vpack.c.b16 %v3610, %v3609
  %v3622 = vpack.c.b16 %v3612, %v3611
  %v3623 = vpack.c.b16 %v3614, %v3613
  %v3624 = vpack.c.b16 %v3616, %v3615
  %3633 = vmatprep.subr.bf16.mxu0 0
  %3634 = vmatpush1.bf16.msra.mxu0 %v3617
  %3635 = vmatprep.subr.bf16.mxu0 0
  %3636 = vmatpush1.bf16.msra.mxu0 %v3618
  %3637 = vmatprep.subr.bf16.mxu0 0
  %3638 = vmatpush1.bf16.msra.mxu0 %v3619
  %3639 = vmatprep.subr.bf16.mxu0 0
  %3640 = vmatpush1.bf16.msra.mxu0 %v3620
  %3641 = vmatprep.subr.bf16.mxu0 0
  %3642 = vmatpush1.bf16.msra.mxu0 %v3621
  %3643 = vmatprep.subr.bf16.mxu0 0
  %3644 = vmatpush1.bf16.msra.mxu0 %v3622
  %3645 = vmatprep.subr.bf16.mxu0 0
  %3646 = vmatpush1.bf16.msra.mxu0 %v3623
  %3647 = vmatprep.subr.bf16.mxu0 0
  %3648 = vmatpush1.bf16.msra.mxu0 %v3624
  %3649 = vmatprep.subr.bf16.mxu0 0
  %3650 = vmatpush1.bf16.msra.mxu0 0
  %3651 = vmatprep.subr.bf16.mxu0 0
  %3652 = vmatpush1.bf16.msra.mxu0 0
  %3653 = vmatprep.subr.bf16.mxu0 0
  %3654 = vmatpush1.bf16.msra.mxu0 0
  %3655 = vmatprep.subr.bf16.mxu0 0
  %3656 = vmatpush1.bf16.msra.mxu0 0
  %3657 = vmatprep.subr.bf16.mxu0 0
  %3658 = vmatpush1.bf16.msra.mxu0 0
  %3659 = vmatprep.subr.bf16.mxu0 0
  %3660 = vmatpush1.bf16.msra.mxu0 0
  %3661 = vmatprep.subr.bf16.mxu0 0
  %3662 = vmatpush1.bf16.msra.mxu0 0
  %3663 = vmatprep.subr.bf16.mxu0 0
  %3664 = vmatpush1.bf16.msra.mxu0 0
  %3665 = vmatprep.mubr.bf16.mxu0 0
  %3666 = vmatmul.mubr.bf16.gmra.mrb[0].mxu0 %v3559
  %v3667 = vpop.f32.mrb[0].mxu0
  %v3668 = vadd.f32 %v3583, %v3667
  %v3669 = vpop.f32.mrb[0].mxu0
  %v3670 = vpop.f32.mrb[0].mxu0
  %v3671 = vadd.f32 %v3583, %v3670
  %v3672 = vpop.f32.mrb[0].mxu0
  %3673 = vdwg.mxu0
  %v3674 = vadd.f32 %v3459, %v3668
  %v3675 = vadd.f32 %v3460, %v3671
  %v3676 = vsel %vm61, %v3674, 0.0
  %3677 = vadd.xlane.f32.xlu0 %v3676
  %v3678 = vpop.xlane.xlu0 %3677
  %v3679 = vsel %vm61, %v3675, 0.0
  %3680 = vadd.xlane.f32.xlu0 %v3679
  %v3681 = vpop.xlane.xlu0 %3680
  %v3682 = vmul.f32 %v3678, %v68
  %v3683 = vmul.f32 %v3681, %v68
  %v3684 = vsub.f32 %v3674, %v3682
  %v3685 = vsub.f32 %v3675, %v3683
  %v3686 = vmul.f32 %v3684, %v3684
  %v3687 = vmul.f32 %v3685, %v3685
  %v3688 = vsel %vm61, %v3686, 0.0
  %3689 = vadd.xlane.f32.xlu0 %v3688
  %v3690 = vpop.xlane.xlu0 %3689
  %v3691 = vsel %vm61, %v3687, 0.0
  %3692 = vadd.xlane.f32.xlu0 %v3691
  %v3693 = vpop.xlane.xlu0 %3692
  %v3694 = vmul.f32 %v3690, %v68
  %v3695 = vmul.f32 %v3693, %v68
  %v3696 = vadd.f32 %v3694, 1e-05
  %v3697 = vadd.f32 %v3695, 1e-05
  %v3698 = vrsqrt.pop %v3696
  %v3699 = vrsqrt.pop %v3697
  %v3700 = vmul.f32 %v3684, %v3698
  %v3701 = vmul.f32 %v3685, %v3699
  %v3702 = vpack.c.bf16 %v3701, %v3700
  %v3703 = vld [vmem:[%s11] sm:$0xf]
  %v3704 = vld [vmem:[%s11 + $0x4] sm:$0xf]
  %v3705 = vld [vmem:[%s11 + $0x8] sm:$0xf]
  %v3706 = vld [vmem:[%s11 + $0xc] sm:$0xf]
  %v3707 = vld [vmem:[%s12] sm:$0x1]
  %v3709 = vlaneseq
  %v3710 = vshrl.u32 %v3709, 7
  %v3711 = vsub.s32 0, %v3710
  %v3712 = vrot.slane %v3707, %v3711
  %v3718 = vunpack.c.l.b16 %v3703
  %v3719 = vunpack.c.l.b16 %v3704
  %v3720 = vunpack.c.l.b16 %v3705
  %v3721 = vunpack.c.l.b16 %v3706
  %v3722 = vpack.c.b16 %v3719, %v3718
  %v3723 = vpack.c.b16 %v3721, %v3720
  %v3727 = vsel %vm61, %v3702, 0
  %3729 = vmatprep.subr.bf16.mxu0 0
  %3730 = vmatpush1.bf16.msra.mxu0 %v3722
  %3731 = vmatprep.subr.bf16.mxu0 0
  %3732 = vmatpush1.bf16.msra.mxu0 %v3723
  %3733 = vmatprep.subr.bf16.mxu0 0
  %3734 = vmatpush1.bf16.msra.mxu0 0
  %3735 = vmatprep.subr.bf16.mxu0 0
  %3736 = vmatpush1.bf16.msra.mxu0 0
  %3737 = vmatprep.subr.bf16.mxu0 0
  %3738 = vmatpush1.bf16.msra.mxu0 0
  %3739 = vmatprep.subr.bf16.mxu0 0
  %3740 = vmatpush1.bf16.msra.mxu0 0
  %3741 = vmatprep.subr.bf16.mxu0 0
  %3742 = vmatpush1.bf16.msra.mxu0 0
  %3743 = vmatprep.subr.bf16.mxu0 0
  %3744 = vmatpush1.bf16.msra.mxu0 0
  %3745 = vmatprep.subr.bf16.mxu0 0
  %3746 = vmatpush1.bf16.msra.mxu0 0
  %3747 = vmatprep.subr.bf16.mxu0 0
  %3748 = vmatpush1.bf16.msra.mxu0 0
  %3749 = vmatprep.subr.bf16.mxu0 0
  %3750 = vmatpush1.bf16.msra.mxu0 0
  %3751 = vmatprep.subr.bf16.mxu0 0
  %3752 = vmatpush1.bf16.msra.mxu0 0
  %3753 = vmatprep.subr.bf16.mxu0 0
  %3754 = vmatpush1.bf16.msra.mxu0 0
  %3755 = vmatprep.subr.bf16.mxu0 0
  %3756 = vmatpush1.bf16.msra.mxu0 0
  %3757 = vmatprep.subr.bf16.mxu0 0
  %3758 = vmatpush1.bf16.msra.mxu0 0
  %3759 = vmatprep.subr.bf16.mxu0 0
  %3760 = vmatpush1.bf16.msra.mxu0 0
  %3761 = vmatprep.mubr.bf16.mxu0 0
  %3762 = vmatmul.mubr.bf16.gmra.mrb[0].mxu0 %v3727
  %v3763 = vpop.f32.mrb[0].mxu0
  %v3764 = vadd.f32 %v3712, %v3763
  %v3765 = vpop.f32.mrb[0].mxu0
  %v3766 = vpop.f32.mrb[0].mxu0
  %v3767 = vadd.f32 %v3712, %v3766
  %v3768 = vpop.f32.mrb[0].mxu0
  %3769 = vdwg.mxu0
  %3770 = vst [vmem:[%s13] sm:$0xff] %v3764
  %3771 = vst [vmem:[%s13 + $0x8] sm:$0xff] %v3767
  // Predicated region
  $region54: #{decoder_transformer_forward.1} parent=0 // pred_check
    _
  $region55: #{decoder_transformer_forward.1} parent=0 // pred_check_branch
    %3773 = sbr.rel (0) target = $region57
  $region56: #{decoder_transformer_forward.1} parent=0 // pred_region
    _
  $region57: #{decoder_transformer_forward.1} parent=0 // pred_fallthru
    _
  // Predicated region
  $region58: #{decoder_transformer_forward.1} parent=0 // pred_check
    _
  $region59: #{decoder_transformer_forward.1} parent=0 // pred_check_branch
    %3775 = sbr.rel (0) target = $region61
  $region60: #{decoder_transformer_forward.1} parent=0 // pred_region
    _
  $region61: #{decoder_transformer_forward.1} parent=0 // pred_fallthru
    _

</llo_original>
